<compile_context>
chip_gen: v7x
topology: tpu7x:2x2x1
jax: 0.10.0
libtpu: 0.0.40
codegen_flags: <defaults>
</compile_context>

<pallas_src>
import jax
import jax.numpy as jnp
from jax.experimental import pallas as pl
from jax.experimental.pallas import tpu as pltpu


def _round_up(x, m):
    return (x + m - 1) // m * m


def gru_seq_kernel(x_ref, wih_ref, whh_ref, bi_ref, bh_ref, h_out_ref):
    """Full GRU recurrence over the sequence in one kernel invocation.

    x_ref    : (S, Bp, Hp)  embedded tokens (compute dtype)
    wih_ref  : (Hp, 3*Hp)   packed input->hidden weights, gates [r|z|n]
    whh_ref  : (Hp, 3*Hp)   packed hidden->hidden weights, gates [r|z|n]
    bi_ref   : (1, 3*Hp)    packed b_ih (f32)
    bh_ref   : (1, 3*Hp)    packed b_hh (f32)
    h_out_ref: (Bp, Hp)     final hidden state (f32)
    """
    seq_len = x_ref.shape[0]
    bp, hp = h_out_ref.shape
    cdtype = wih_ref.dtype

    # Hoist small constants out of the loop (JAX does not CSE broadcasts).
    b_i = bi_ref[...]          # (1, 3*Hp) f32
    b_h = bh_ref[...]          # (1, 3*Hp) f32

    def step(t, h):
        x = x_ref[t]                                              # (Bp, Hp)
        # Two lane-dense fused matmuls per step (was 6 tiny ones).
        gi = jnp.dot(x, wih_ref[...],
                     preferred_element_type=jnp.float32) + b_i    # (Bp, 3*Hp)
        gh = jnp.dot(h.astype(cdtype), whh_ref[...],
                     preferred_element_type=jnp.float32) + b_h    # (Bp, 3*Hp)
        # Gate slices fall on 128-lane boundaries (each gate owns an Hp slot).
        r = jax.nn.sigmoid(gi[:, :hp] + gh[:, :hp])
        z = jax.nn.sigmoid(gi[:, hp:2 * hp] + gh[:, hp:2 * hp])
        n = jnp.tanh(gi[:, 2 * hp:] + r * gh[:, 2 * hp:])
        return (1.0 - z) * n + z * h                              # f32 combine

    h0 = jnp.zeros((bp, hp), jnp.float32)   # PyTorch default: h_0 = 0
    h_final = jax.lax.fori_loop(0, seq_len, step, h0, unroll=seq_len <= 32)
    h_out_ref[...] = h_final


def encoder_forward(token_ids, params, compute_dtype=jnp.float32):
    """token_ids: (seq_len, batch) int32.  Returns (1, batch, hidden) f32."""
    emb_table = params["embedding"]                    # (V, H) f32
    S, B = token_ids.shape
    H = emb_table.shape[1]
    Hp = _round_up(H, 128)                             # lane-dense hidden
    Bp = _round_up(B, 8)                               # sublane-dense batch

    # Embedding lookup (plain-JAX gather glue; not the matmul hot path).
    embedded = jnp.take(emb_table, token_ids, axis=0)  # (S, B, H)
    x = jnp.zeros((S, Bp, Hp), compute_dtype)
    x = x.at[:, :B, :H].set(embedded.astype(compute_dtype))

    # Pack per-gate weights/biases into lane-dense [r|z|n] slabs, one Hp-wide
    # slot per gate so in-kernel gate slices land on 128-lane boundaries.
    wih = jnp.zeros((Hp, 3 * Hp), compute_dtype)
    whh = jnp.zeros((Hp, 3 * Hp), compute_dtype)
    b_i = jnp.zeros((1, 3 * Hp), jnp.float32)
    b_h = jnp.zeros((1, 3 * Hp), jnp.float32)
    for g in range(3):
        lo = g * Hp
        wih = wih.at[:H, lo:lo + H].set(params["w_ih"][g].astype(compute_dtype))
        whh = whh.at[:H, lo:lo + H].set(params["w_hh"][g].astype(compute_dtype))
        b_i = b_i.at[0, lo:lo + H].set(params["b_ih"][g])
        b_h = b_h.at[0, lo:lo + H].set(params["b_hh"][g])

    h_last = pl.pallas_call(
        gru_seq_kernel,
        out_shape=jax.ShapeDtypeStruct((Bp, Hp), jnp.float32),
        grid_spec=pltpu.PrefetchScalarGridSpec(
            num_scalar_prefetch=0,
            grid=(1,),
            in_specs=[
                pl.BlockSpec((S, Bp, Hp), lambda i: (0, 0, 0)),   # sequence
                pl.BlockSpec((Hp, 3 * Hp), lambda i: (0, 0)),     # W_ih packed
                pl.BlockSpec((Hp, 3 * Hp), lambda i: (0, 0)),     # W_hh packed
                pl.BlockSpec((1, 3 * Hp), lambda i: (0, 0)),      # b_ih packed
                pl.BlockSpec((1, 3 * Hp), lambda i: (0, 0)),      # b_hh packed
            ],
            out_specs=pl.BlockSpec((Bp, Hp), lambda i: (0, 0)),
        ),
        compiler_params=pltpu.CompilerParams(
            dimension_semantics=("arbitrary",)),
    )(x, wih, whh, b_i, b_h)

    # Drop padding, add the num_layers=1 leading axis (PyTorch convention).
    return h_last[None, :B, :H]


def init_params(key, vocab_size, hidden):
    """Deterministic synthetic params, matching PyTorch shapes (transposed)."""
    k0, k1, k2, k3, k4 = jax.random.split(key, 5)
    bound = 1.0 / jnp.sqrt(hidden).astype(jnp.float32)
    return {
        # nn.Embedding(input_size, hidden_size): N(0, 1)
        "embedding": jax.random.normal(k0, (vocab_size, hidden), jnp.float32),
        # nn.GRU weights U(-1/sqrt(H), 1/sqrt(H)), stored as (gate, in, out)
        "w_ih": jax.random.uniform(k1, (3, hidden, hidden), jnp.float32, -bound, bound),
        "w_hh": jax.random.uniform(k2, (3, hidden, hidden), jnp.float32, -bound, bound),
        "b_ih": jax.random.uniform(k3, (3, hidden), jnp.float32, -bound, bound),
        "b_hh": jax.random.uniform(k4, (3, hidden), jnp.float32, -bound, bound),
    }


def encoder_reference(token_ids, params):
    """Pure-JAX reference (same math as torch.nn.GRU, h_0 = 0)."""
    emb = jnp.take(params["embedding"], token_ids, axis=0)  # (S, B, H)
    B, H = emb.shape[1], emb.shape[2]

    def step(h, x):
        i_r = x @ params["w_ih"][0] + params["b_ih"][0]
        i_z = x @ params["w_ih"][1] + params["b_ih"][1]
        i_n = x @ params["w_ih"][2] + params["b_ih"][2]
        h_r = h @ params["w_hh"][0] + params["b_hh"][0]
        h_z = h @ params["w_hh"][1] + params["b_hh"][1]
        h_n = h @ params["w_hh"][2] + params["b_hh"][2]
        r = jax.nn.sigmoid(i_r + h_r)
        z = jax.nn.sigmoid(i_z + h_z)
        n = jnp.tanh(i_n + r * h_n)
        return (1.0 - z) * n + z * h, None

    h0 = jnp.zeros((B, H), jnp.float32)
    h_final, _ = jax.lax.scan(step, h0, emb)
    return h_final[None]


if __name__ == "__main__":
    vocab_size = 20   # input_size
    hidden = 32       # hidden_size (small stand-in for 256)
    seq_len = 8
    batch = 2

    key = jax.random.PRNGKey(0)
    pkey, ikey = jax.random.split(key)
    params = init_params(pkey, vocab_size, hidden)
    token_ids = jax.random.randint(ikey, (seq_len, batch), 0, vocab_size, jnp.int32)

    hidden_out = jax.block_until_ready(encoder_forward(token_ids, params))
    ref = encoder_reference(token_ids, params)

    assert hidden_out.shape == (1, batch, hidden)
    assert jnp.allclose(hidden_out, ref, atol=1e-4, rtol=1e-4), (
        f"max err {jnp.max(jnp.abs(hidden_out - ref))}")
    print("KERNEL_OK")
</pallas_src>

<mosaic_0001>
module attributes {stable_mosaic.version = 11 : i64} {
  func.func @gru_seq_kernel(%arg0: i32, %arg1: memref<8x8x128xf32, #tpu.memory_space<vmem>>, %arg2: memref<128x384xf32, #tpu.memory_space<vmem>>, %arg3: memref<128x384xf32, #tpu.memory_space<vmem>>, %arg4: memref<1x384xf32, #tpu.memory_space<vmem>>, %arg5: memref<1x384xf32, #tpu.memory_space<vmem>>, %arg6: memref<8x128xf32, #tpu.memory_space<vmem>>) attributes {dimension_semantics = [#tpu.dimension_semantics<arbitrary>], iteration_bounds = array<i64: 1>, scalar_prefetch = 0 : i64, scratch_operands = 0 : i64, tpu.core_type = #tpu.core_type<tc>, window_params = [{pipeline_mode = #tpu.pipeline_mode<synchronous>, transform_indices = @transform_0, window_bounds = array<i64: 8, 8, 128>}, {pipeline_mode = #tpu.pipeline_mode<synchronous>, transform_indices = @transform_1, window_bounds = array<i64: 128, 384>}, {pipeline_mode = #tpu.pipeline_mode<synchronous>, transform_indices = @transform_2, window_bounds = array<i64: 128, 384>}, {pipeline_mode = #tpu.pipeline_mode<synchronous>, transform_indices = @transform_3, window_bounds = array<i64: 1, 384>}, {pipeline_mode = #tpu.pipeline_mode<synchronous>, transform_indices = @transform_4, window_bounds = array<i64: 1, 384>}, {pipeline_mode = #tpu.pipeline_mode<synchronous>, transform_indices = @transform_5, window_bounds = array<i64: 8, 128>}]} {
    %c0 = arith.constant 0 : index
    %c0_0 = arith.constant 0 : index
    %0 = vector.load %arg4[%c0, %c0_0] : memref<1x384xf32, #tpu.memory_space<vmem>>, vector<1x384xf32>
    %c0_1 = arith.constant 0 : index
    %c0_2 = arith.constant 0 : index
    %1 = vector.load %arg5[%c0_1, %c0_2] : memref<1x384xf32, #tpu.memory_space<vmem>>, vector<1x384xf32>
    %cst = arith.constant 0.000000e+00 : f32
    %2 = vector.broadcast %cst : f32 to vector<8x128xf32>
    %c0_i32 = arith.constant 0 : i32
    %3 = arith.index_cast %c0_i32 : i32 to index
    %c0_3 = arith.constant 0 : index
    %c0_4 = arith.constant 0 : index
    %4 = vector.load %arg1[%3, %c0_3, %c0_4] : memref<8x8x128xf32, #tpu.memory_space<vmem>>, vector<1x8x128xf32>
    %5 = vector.shape_cast %4 : vector<1x8x128xf32> to vector<8x128xf32>
    %c0_5 = arith.constant 0 : index
    %c0_6 = arith.constant 0 : index
    %6 = vector.load %arg2[%c0_5, %c0_6] : memref<128x384xf32, #tpu.memory_space<vmem>>, vector<128x384xf32>
    %cst_7 = arith.constant dense<0.000000e+00> : vector<8x384xf32>
    %7 = tpu.matmul %5, %6, %cst_7 {dimension_numbers = #tpu.dot_dimension_numbers<[1], [0], [0], [1], [0, 0, 1, 1], [], []>} : vector<8x128xf32>, vector<128x384xf32>, vector<8x384xf32> -> vector<8x384xf32>
    %8 = vector.broadcast %0 : vector<1x384xf32> to vector<8x384xf32>
    %9 = arith.addf %7, %8 : vector<8x384xf32>
    %c0_8 = arith.constant 0 : index
    %c0_9 = arith.constant 0 : index
    %10 = vector.load %arg3[%c0_8, %c0_9] : memref<128x384xf32, #tpu.memory_space<vmem>>, vector<128x384xf32>
    %cst_10 = arith.constant dense<0.000000e+00> : vector<8x384xf32>
    %11 = tpu.matmul %2, %10, %cst_10 {dimension_numbers = #tpu.dot_dimension_numbers<[1], [0], [0], [1], [0, 0, 1, 1], [], []>} : vector<8x128xf32>, vector<128x384xf32>, vector<8x384xf32> -> vector<8x384xf32>
    %12 = vector.broadcast %1 : vector<1x384xf32> to vector<8x384xf32>
    %13 = arith.addf %11, %12 : vector<8x384xf32>
    %14 = vector.extract_strided_slice %9 {offsets = [0, 0], sizes = [8, 128], strides = [1, 1]} : vector<8x384xf32> to vector<8x128xf32>
    %15 = vector.extract_strided_slice %13 {offsets = [0, 0], sizes = [8, 128], strides = [1, 1]} : vector<8x384xf32> to vector<8x128xf32>
    %16 = arith.addf %14, %15 : vector<8x128xf32>
    %17 = arith.negf %16 : vector<8x128xf32>
    %18 = math.exp %17 : vector<8x128xf32>
    %cst_11 = arith.constant 1.000000e+00 : f32
    %19 = vector.broadcast %cst_11 : f32 to vector<8x128xf32>
    %20 = arith.addf %19, %18 : vector<8x128xf32>
    %21 = arith.divf %19, %20 : vector<8x128xf32>
    %22 = vector.extract_strided_slice %9 {offsets = [0, 128], sizes = [8, 128], strides = [1, 1]} : vector<8x384xf32> to vector<8x128xf32>
    %23 = vector.extract_strided_slice %13 {offsets = [0, 128], sizes = [8, 128], strides = [1, 1]} : vector<8x384xf32> to vector<8x128xf32>
    %24 = arith.addf %22, %23 : vector<8x128xf32>
    %25 = arith.negf %24 : vector<8x128xf32>
    %26 = math.exp %25 : vector<8x128xf32>
    %cst_12 = arith.constant 1.000000e+00 : f32
    %27 = vector.broadcast %cst_12 : f32 to vector<8x128xf32>
    %28 = arith.addf %27, %26 : vector<8x128xf32>
    %29 = arith.divf %27, %28 : vector<8x128xf32>
    %30 = vector.extract_strided_slice %9 {offsets = [0, 256], sizes = [8, 128], strides = [1, 1]} : vector<8x384xf32> to vector<8x128xf32>
    %31 = vector.extract_strided_slice %13 {offsets = [0, 256], sizes = [8, 128], strides = [1, 1]} : vector<8x384xf32> to vector<8x128xf32>
    %32 = arith.mulf %21, %31 : vector<8x128xf32>
    %33 = arith.addf %30, %32 : vector<8x128xf32>
    %34 = math.tanh %33 : vector<8x128xf32>
    %cst_13 = arith.constant 1.000000e+00 : f32
    %35 = vector.broadcast %cst_13 : f32 to vector<8x128xf32>
    %36 = arith.subf %35, %29 : vector<8x128xf32>
    %37 = arith.mulf %36, %34 : vector<8x128xf32>
    %38 = arith.mulf %29, %2 : vector<8x128xf32>
    %39 = arith.addf %37, %38 : vector<8x128xf32>
    %c1_i32 = arith.constant 1 : i32
    %40 = arith.index_cast %c1_i32 : i32 to index
    %c0_14 = arith.constant 0 : index
    %c0_15 = arith.constant 0 : index
    %41 = vector.load %arg1[%40, %c0_14, %c0_15] : memref<8x8x128xf32, #tpu.memory_space<vmem>>, vector<1x8x128xf32>
    %42 = vector.shape_cast %41 : vector<1x8x128xf32> to vector<8x128xf32>
    %c0_16 = arith.constant 0 : index
    %c0_17 = arith.constant 0 : index
    %43 = vector.load %arg2[%c0_16, %c0_17] : memref<128x384xf32, #tpu.memory_space<vmem>>, vector<128x384xf32>
    %cst_18 = arith.constant dense<0.000000e+00> : vector<8x384xf32>
    %44 = tpu.matmul %42, %43, %cst_18 {dimension_numbers = #tpu.dot_dimension_numbers<[1], [0], [0], [1], [0, 0, 1, 1], [], []>} : vector<8x128xf32>, vector<128x384xf32>, vector<8x384xf32> -> vector<8x384xf32>
    %45 = vector.broadcast %0 : vector<1x384xf32> to vector<8x384xf32>
    %46 = arith.addf %44, %45 : vector<8x384xf32>
    %c0_19 = arith.constant 0 : index
    %c0_20 = arith.constant 0 : index
    %47 = vector.load %arg3[%c0_19, %c0_20] : memref<128x384xf32, #tpu.memory_space<vmem>>, vector<128x384xf32>
    %cst_21 = arith.constant dense<0.000000e+00> : vector<8x384xf32>
    %48 = tpu.matmul %39, %47, %cst_21 {dimension_numbers = #tpu.dot_dimension_numbers<[1], [0], [0], [1], [0, 0, 1, 1], [], []>} : vector<8x128xf32>, vector<128x384xf32>, vector<8x384xf32> -> vector<8x384xf32>
    %49 = vector.broadcast %1 : vector<1x384xf32> to vector<8x384xf32>
    %50 = arith.addf %48, %49 : vector<8x384xf32>
    %51 = vector.extract_strided_slice %46 {offsets = [0, 0], sizes = [8, 128], strides = [1, 1]} : vector<8x384xf32> to vector<8x128xf32>
    %52 = vector.extract_strided_slice %50 {offsets = [0, 0], sizes = [8, 128], strides = [1, 1]} : vector<8x384xf32> to vector<8x128xf32>
    %53 = arith.addf %51, %52 : vector<8x128xf32>
    %54 = arith.negf %53 : vector<8x128xf32>
    %55 = math.exp %54 : vector<8x128xf32>
    %cst_22 = arith.constant 1.000000e+00 : f32
    %56 = vector.broadcast %cst_22 : f32 to vector<8x128xf32>
    %57 = arith.addf %56, %55 : vector<8x128xf32>
    %58 = arith.divf %56, %57 : vector<8x128xf32>
    %59 = vector.extract_strided_slice %46 {offsets = [0, 128], sizes = [8, 128], strides = [1, 1]} : vector<8x384xf32> to vector<8x128xf32>
    %60 = vector.extract_strided_slice %50 {offsets = [0, 128], sizes = [8, 128], strides = [1, 1]} : vector<8x384xf32> to vector<8x128xf32>
    %61 = arith.addf %59, %60 : vector<8x128xf32>
    %62 = arith.negf %61 : vector<8x128xf32>
    %63 = math.exp %62 : vector<8x128xf32>
    %cst_23 = arith.constant 1.000000e+00 : f32
    %64 = vector.broadcast %cst_23 : f32 to vector<8x128xf32>
    %65 = arith.addf %64, %63 : vector<8x128xf32>
    %66 = arith.divf %64, %65 : vector<8x128xf32>
    %67 = vector.extract_strided_slice %46 {offsets = [0, 256], sizes = [8, 128], strides = [1, 1]} : vector<8x384xf32> to vector<8x128xf32>
    %68 = vector.extract_strided_slice %50 {offsets = [0, 256], sizes = [8, 128], strides = [1, 1]} : vector<8x384xf32> to vector<8x128xf32>
    %69 = arith.mulf %58, %68 : vector<8x128xf32>
    %70 = arith.addf %67, %69 : vector<8x128xf32>
    %71 = math.tanh %70 : vector<8x128xf32>
    %cst_24 = arith.constant 1.000000e+00 : f32
    %72 = vector.broadcast %cst_24 : f32 to vector<8x128xf32>
    %73 = arith.subf %72, %66 : vector<8x128xf32>
    %74 = arith.mulf %73, %71 : vector<8x128xf32>
    %75 = arith.mulf %66, %39 : vector<8x128xf32>
    %76 = arith.addf %74, %75 : vector<8x128xf32>
    %c2_i32 = arith.constant 2 : i32
    %77 = arith.index_cast %c2_i32 : i32 to index
    %c0_25 = arith.constant 0 : index
    %c0_26 = arith.constant 0 : index
    %78 = vector.load %arg1[%77, %c0_25, %c0_26] : memref<8x8x128xf32, #tpu.memory_space<vmem>>, vector<1x8x128xf32>
    %79 = vector.shape_cast %78 : vector<1x8x128xf32> to vector<8x128xf32>
    %c0_27 = arith.constant 0 : index
    %c0_28 = arith.constant 0 : index
    %80 = vector.load %arg2[%c0_27, %c0_28] : memref<128x384xf32, #tpu.memory_space<vmem>>, vector<128x384xf32>
    %cst_29 = arith.constant dense<0.000000e+00> : vector<8x384xf32>
    %81 = tpu.matmul %79, %80, %cst_29 {dimension_numbers = #tpu.dot_dimension_numbers<[1], [0], [0], [1], [0, 0, 1, 1], [], []>} : vector<8x128xf32>, vector<128x384xf32>, vector<8x384xf32> -> vector<8x384xf32>
    %82 = vector.broadcast %0 : vector<1x384xf32> to vector<8x384xf32>
    %83 = arith.addf %81, %82 : vector<8x384xf32>
    %c0_30 = arith.constant 0 : index
    %c0_31 = arith.constant 0 : index
    %84 = vector.load %arg3[%c0_30, %c0_31] : memref<128x384xf32, #tpu.memory_space<vmem>>, vector<128x384xf32>
    %cst_32 = arith.constant dense<0.000000e+00> : vector<8x384xf32>
    %85 = tpu.matmul %76, %84, %cst_32 {dimension_numbers = #tpu.dot_dimension_numbers<[1], [0], [0], [1], [0, 0, 1, 1], [], []>} : vector<8x128xf32>, vector<128x384xf32>, vector<8x384xf32> -> vector<8x384xf32>
    %86 = vector.broadcast %1 : vector<1x384xf32> to vector<8x384xf32>
    %87 = arith.addf %85, %86 : vector<8x384xf32>
    %88 = vector.extract_strided_slice %83 {offsets = [0, 0], sizes = [8, 128], strides = [1, 1]} : vector<8x384xf32> to vector<8x128xf32>
    %89 = vector.extract_strided_slice %87 {offsets = [0, 0], sizes = [8, 128], strides = [1, 1]} : vector<8x384xf32> to vector<8x128xf32>
    %90 = arith.addf %88, %89 : vector<8x128xf32>
    %91 = arith.negf %90 : vector<8x128xf32>
    %92 = math.exp %91 : vector<8x128xf32>
    %cst_33 = arith.constant 1.000000e+00 : f32
    %93 = vector.broadcast %cst_33 : f32 to vector<8x128xf32>
    %94 = arith.addf %93, %92 : vector<8x128xf32>
    %95 = arith.divf %93, %94 : vector<8x128xf32>
    %96 = vector.extract_strided_slice %83 {offsets = [0, 128], sizes = [8, 128], strides = [1, 1]} : vector<8x384xf32> to vector<8x128xf32>
    %97 = vector.extract_strided_slice %87 {offsets = [0, 128], sizes = [8, 128], strides = [1, 1]} : vector<8x384xf32> to vector<8x128xf32>
    %98 = arith.addf %96, %97 : vector<8x128xf32>
    %99 = arith.negf %98 : vector<8x128xf32>
    %100 = math.exp %99 : vector<8x128xf32>
    %cst_34 = arith.constant 1.000000e+00 : f32
    %101 = vector.broadcast %cst_34 : f32 to vector<8x128xf32>
    %102 = arith.addf %101, %100 : vector<8x128xf32>
    %103 = arith.divf %101, %102 : vector<8x128xf32>
    %104 = vector.extract_strided_slice %83 {offsets = [0, 256], sizes = [8, 128], strides = [1, 1]} : vector<8x384xf32> to vector<8x128xf32>
    %105 = vector.extract_strided_slice %87 {offsets = [0, 256], sizes = [8, 128], strides = [1, 1]} : vector<8x384xf32> to vector<8x128xf32>
    %106 = arith.mulf %95, %105 : vector<8x128xf32>
    %107 = arith.addf %104, %106 : vector<8x128xf32>
    %108 = math.tanh %107 : vector<8x128xf32>
    %cst_35 = arith.constant 1.000000e+00 : f32
    %109 = vector.broadcast %cst_35 : f32 to vector<8x128xf32>
    %110 = arith.subf %109, %103 : vector<8x128xf32>
    %111 = arith.mulf %110, %108 : vector<8x128xf32>
    %112 = arith.mulf %103, %76 : vector<8x128xf32>
    %113 = arith.addf %111, %112 : vector<8x128xf32>
    %c3_i32 = arith.constant 3 : i32
    %114 = arith.index_cast %c3_i32 : i32 to index
    %c0_36 = arith.constant 0 : index
    %c0_37 = arith.constant 0 : index
    %115 = vector.load %arg1[%114, %c0_36, %c0_37] : memref<8x8x128xf32, #tpu.memory_space<vmem>>, vector<1x8x128xf32>
    %116 = vector.shape_cast %115 : vector<1x8x128xf32> to vector<8x128xf32>
    %c0_38 = arith.constant 0 : index
    %c0_39 = arith.constant 0 : index
    %117 = vector.load %arg2[%c0_38, %c0_39] : memref<128x384xf32, #tpu.memory_space<vmem>>, vector<128x384xf32>
    %cst_40 = arith.constant dense<0.000000e+00> : vector<8x384xf32>
    %118 = tpu.matmul %116, %117, %cst_40 {dimension_numbers = #tpu.dot_dimension_numbers<[1], [0], [0], [1], [0, 0, 1, 1], [], []>} : vector<8x128xf32>, vector<128x384xf32>, vector<8x384xf32> -> vector<8x384xf32>
    %119 = vector.broadcast %0 : vector<1x384xf32> to vector<8x384xf32>
    %120 = arith.addf %118, %119 : vector<8x384xf32>
    %c0_41 = arith.constant 0 : index
    %c0_42 = arith.constant 0 : index
    %121 = vector.load %arg3[%c0_41, %c0_42] : memref<128x384xf32, #tpu.memory_space<vmem>>, vector<128x384xf32>
    %cst_43 = arith.constant dense<0.000000e+00> : vector<8x384xf32>
    %122 = tpu.matmul %113, %121, %cst_43 {dimension_numbers = #tpu.dot_dimension_numbers<[1], [0], [0], [1], [0, 0, 1, 1], [], []>} : vector<8x128xf32>, vector<128x384xf32>, vector<8x384xf32> -> vector<8x384xf32>
    %123 = vector.broadcast %1 : vector<1x384xf32> to vector<8x384xf32>
    %124 = arith.addf %122, %123 : vector<8x384xf32>
    %125 = vector.extract_strided_slice %120 {offsets = [0, 0], sizes = [8, 128], strides = [1, 1]} : vector<8x384xf32> to vector<8x128xf32>
    %126 = vector.extract_strided_slice %124 {offsets = [0, 0], sizes = [8, 128], strides = [1, 1]} : vector<8x384xf32> to vector<8x128xf32>
    %127 = arith.addf %125, %126 : vector<8x128xf32>
    %128 = arith.negf %127 : vector<8x128xf32>
    %129 = math.exp %128 : vector<8x128xf32>
    %cst_44 = arith.constant 1.000000e+00 : f32
    %130 = vector.broadcast %cst_44 : f32 to vector<8x128xf32>
    %131 = arith.addf %130, %129 : vector<8x128xf32>
    %132 = arith.divf %130, %131 : vector<8x128xf32>
    %133 = vector.extract_strided_slice %120 {offsets = [0, 128], sizes = [8, 128], strides = [1, 1]} : vector<8x384xf32> to vector<8x128xf32>
    %134 = vector.extract_strided_slice %124 {offsets = [0, 128], sizes = [8, 128], strides = [1, 1]} : vector<8x384xf32> to vector<8x128xf32>
    %135 = arith.addf %133, %134 : vector<8x128xf32>
    %136 = arith.negf %135 : vector<8x128xf32>
    %137 = math.exp %136 : vector<8x128xf32>
    %cst_45 = arith.constant 1.000000e+00 : f32
    %138 = vector.broadcast %cst_45 : f32 to vector<8x128xf32>
    %139 = arith.addf %138, %137 : vector<8x128xf32>
    %140 = arith.divf %138, %139 : vector<8x128xf32>
    %141 = vector.extract_strided_slice %120 {offsets = [0, 256], sizes = [8, 128], strides = [1, 1]} : vector<8x384xf32> to vector<8x128xf32>
    %142 = vector.extract_strided_slice %124 {offsets = [0, 256], sizes = [8, 128], strides = [1, 1]} : vector<8x384xf32> to vector<8x128xf32>
    %143 = arith.mulf %132, %142 : vector<8x128xf32>
    %144 = arith.addf %141, %143 : vector<8x128xf32>
    %145 = math.tanh %144 : vector<8x128xf32>
    %cst_46 = arith.constant 1.000000e+00 : f32
    %146 = vector.broadcast %cst_46 : f32 to vector<8x128xf32>
    %147 = arith.subf %146, %140 : vector<8x128xf32>
    %148 = arith.mulf %147, %145 : vector<8x128xf32>
    %149 = arith.mulf %140, %113 : vector<8x128xf32>
    %150 = arith.addf %148, %149 : vector<8x128xf32>
    %c4_i32 = arith.constant 4 : i32
    %151 = arith.index_cast %c4_i32 : i32 to index
    %c0_47 = arith.constant 0 : index
    %c0_48 = arith.constant 0 : index
    %152 = vector.load %arg1[%151, %c0_47, %c0_48] : memref<8x8x128xf32, #tpu.memory_space<vmem>>, vector<1x8x128xf32>
    %153 = vector.shape_cast %152 : vector<1x8x128xf32> to vector<8x128xf32>
    %c0_49 = arith.constant 0 : index
    %c0_50 = arith.constant 0 : index
    %154 = vector.load %arg2[%c0_49, %c0_50] : memref<128x384xf32, #tpu.memory_space<vmem>>, vector<128x384xf32>
    %cst_51 = arith.constant dense<0.000000e+00> : vector<8x384xf32>
    %155 = tpu.matmul %153, %154, %cst_51 {dimension_numbers = #tpu.dot_dimension_numbers<[1], [0], [0], [1], [0, 0, 1, 1], [], []>} : vector<8x128xf32>, vector<128x384xf32>, vector<8x384xf32> -> vector<8x384xf32>
    %156 = vector.broadcast %0 : vector<1x384xf32> to vector<8x384xf32>
    %157 = arith.addf %155, %156 : vector<8x384xf32>
    %c0_52 = arith.constant 0 : index
    %c0_53 = arith.constant 0 : index
    %158 = vector.load %arg3[%c0_52, %c0_53] : memref<128x384xf32, #tpu.memory_space<vmem>>, vector<128x384xf32>
    %cst_54 = arith.constant dense<0.000000e+00> : vector<8x384xf32>
    %159 = tpu.matmul %150, %158, %cst_54 {dimension_numbers = #tpu.dot_dimension_numbers<[1], [0], [0], [1], [0, 0, 1, 1], [], []>} : vector<8x128xf32>, vector<128x384xf32>, vector<8x384xf32> -> vector<8x384xf32>
    %160 = vector.broadcast %1 : vector<1x384xf32> to vector<8x384xf32>
    %161 = arith.addf %159, %160 : vector<8x384xf32>
    %162 = vector.extract_strided_slice %157 {offsets = [0, 0], sizes = [8, 128], strides = [1, 1]} : vector<8x384xf32> to vector<8x128xf32>
    %163 = vector.extract_strided_slice %161 {offsets = [0, 0], sizes = [8, 128], strides = [1, 1]} : vector<8x384xf32> to vector<8x128xf32>
    %164 = arith.addf %162, %163 : vector<8x128xf32>
    %165 = arith.negf %164 : vector<8x128xf32>
    %166 = math.exp %165 : vector<8x128xf32>
    %cst_55 = arith.constant 1.000000e+00 : f32
    %167 = vector.broadcast %cst_55 : f32 to vector<8x128xf32>
    %168 = arith.addf %167, %166 : vector<8x128xf32>
    %169 = arith.divf %167, %168 : vector<8x128xf32>
    %170 = vector.extract_strided_slice %157 {offsets = [0, 128], sizes = [8, 128], strides = [1, 1]} : vector<8x384xf32> to vector<8x128xf32>
    %171 = vector.extract_strided_slice %161 {offsets = [0, 128], sizes = [8, 128], strides = [1, 1]} : vector<8x384xf32> to vector<8x128xf32>
    %172 = arith.addf %170, %171 : vector<8x128xf32>
    %173 = arith.negf %172 : vector<8x128xf32>
    %174 = math.exp %173 : vector<8x128xf32>
    %cst_56 = arith.constant 1.000000e+00 : f32
    %175 = vector.broadcast %cst_56 : f32 to vector<8x128xf32>
    %176 = arith.addf %175, %174 : vector<8x128xf32>
    %177 = arith.divf %175, %176 : vector<8x128xf32>
    %178 = vector.extract_strided_slice %157 {offsets = [0, 256], sizes = [8, 128], strides = [1, 1]} : vector<8x384xf32> to vector<8x128xf32>
    %179 = vector.extract_strided_slice %161 {offsets = [0, 256], sizes = [8, 128], strides = [1, 1]} : vector<8x384xf32> to vector<8x128xf32>
    %180 = arith.mulf %169, %179 : vector<8x128xf32>
    %181 = arith.addf %178, %180 : vector<8x128xf32>
    %182 = math.tanh %181 : vector<8x128xf32>
    %cst_57 = arith.constant 1.000000e+00 : f32
    %183 = vector.broadcast %cst_57 : f32 to vector<8x128xf32>
    %184 = arith.subf %183, %177 : vector<8x128xf32>
    %185 = arith.mulf %184, %182 : vector<8x128xf32>
    %186 = arith.mulf %177, %150 : vector<8x128xf32>
    %187 = arith.addf %185, %186 : vector<8x128xf32>
    %c5_i32 = arith.constant 5 : i32
    %188 = arith.index_cast %c5_i32 : i32 to index
    %c0_58 = arith.constant 0 : index
    %c0_59 = arith.constant 0 : index
    %189 = vector.load %arg1[%188, %c0_58, %c0_59] : memref<8x8x128xf32, #tpu.memory_space<vmem>>, vector<1x8x128xf32>
    %190 = vector.shape_cast %189 : vector<1x8x128xf32> to vector<8x128xf32>
    %c0_60 = arith.constant 0 : index
    %c0_61 = arith.constant 0 : index
    %191 = vector.load %arg2[%c0_60, %c0_61] : memref<128x384xf32, #tpu.memory_space<vmem>>, vector<128x384xf32>
    %cst_62 = arith.constant dense<0.000000e+00> : vector<8x384xf32>
    %192 = tpu.matmul %190, %191, %cst_62 {dimension_numbers = #tpu.dot_dimension_numbers<[1], [0], [0], [1], [0, 0, 1, 1], [], []>} : vector<8x128xf32>, vector<128x384xf32>, vector<8x384xf32> -> vector<8x384xf32>
    %193 = vector.broadcast %0 : vector<1x384xf32> to vector<8x384xf32>
    %194 = arith.addf %192, %193 : vector<8x384xf32>
    %c0_63 = arith.constant 0 : index
    %c0_64 = arith.constant 0 : index
    %195 = vector.load %arg3[%c0_63, %c0_64] : memref<128x384xf32, #tpu.memory_space<vmem>>, vector<128x384xf32>
    %cst_65 = arith.constant dense<0.000000e+00> : vector<8x384xf32>
    %196 = tpu.matmul %187, %195, %cst_65 {dimension_numbers = #tpu.dot_dimension_numbers<[1], [0], [0], [1], [0, 0, 1, 1], [], []>} : vector<8x128xf32>, vector<128x384xf32>, vector<8x384xf32> -> vector<8x384xf32>
    %197 = vector.broadcast %1 : vector<1x384xf32> to vector<8x384xf32>
    %198 = arith.addf %196, %197 : vector<8x384xf32>
    %199 = vector.extract_strided_slice %194 {offsets = [0, 0], sizes = [8, 128], strides = [1, 1]} : vector<8x384xf32> to vector<8x128xf32>
    %200 = vector.extract_strided_slice %198 {offsets = [0, 0], sizes = [8, 128], strides = [1, 1]} : vector<8x384xf32> to vector<8x128xf32>
    %201 = arith.addf %199, %200 : vector<8x128xf32>
    %202 = arith.negf %201 : vector<8x128xf32>
    %203 = math.exp %202 : vector<8x128xf32>
    %cst_66 = arith.constant 1.000000e+00 : f32
    %204 = vector.broadcast %cst_66 : f32 to vector<8x128xf32>
    %205 = arith.addf %204, %203 : vector<8x128xf32>
    %206 = arith.divf %204, %205 : vector<8x128xf32>
    %207 = vector.extract_strided_slice %194 {offsets = [0, 128], sizes = [8, 128], strides = [1, 1]} : vector<8x384xf32> to vector<8x128xf32>
    %208 = vector.extract_strided_slice %198 {offsets = [0, 128], sizes = [8, 128], strides = [1, 1]} : vector<8x384xf32> to vector<8x128xf32>
    %209 = arith.addf %207, %208 : vector<8x128xf32>
    %210 = arith.negf %209 : vector<8x128xf32>
    %211 = math.exp %210 : vector<8x128xf32>
    %cst_67 = arith.constant 1.000000e+00 : f32
    %212 = vector.broadcast %cst_67 : f32 to vector<8x128xf32>
    %213 = arith.addf %212, %211 : vector<8x128xf32>
    %214 = arith.divf %212, %213 : vector<8x128xf32>
    %215 = vector.extract_strided_slice %194 {offsets = [0, 256], sizes = [8, 128], strides = [1, 1]} : vector<8x384xf32> to vector<8x128xf32>
    %216 = vector.extract_strided_slice %198 {offsets = [0, 256], sizes = [8, 128], strides = [1, 1]} : vector<8x384xf32> to vector<8x128xf32>
    %217 = arith.mulf %206, %216 : vector<8x128xf32>
    %218 = arith.addf %215, %217 : vector<8x128xf32>
    %219 = math.tanh %218 : vector<8x128xf32>
    %cst_68 = arith.constant 1.000000e+00 : f32
    %220 = vector.broadcast %cst_68 : f32 to vector<8x128xf32>
    %221 = arith.subf %220, %214 : vector<8x128xf32>
    %222 = arith.mulf %221, %219 : vector<8x128xf32>
    %223 = arith.mulf %214, %187 : vector<8x128xf32>
    %224 = arith.addf %222, %223 : vector<8x128xf32>
    %c6_i32 = arith.constant 6 : i32
    %225 = arith.index_cast %c6_i32 : i32 to index
    %c0_69 = arith.constant 0 : index
    %c0_70 = arith.constant 0 : index
    %226 = vector.load %arg1[%225, %c0_69, %c0_70] : memref<8x8x128xf32, #tpu.memory_space<vmem>>, vector<1x8x128xf32>
    %227 = vector.shape_cast %226 : vector<1x8x128xf32> to vector<8x128xf32>
    %c0_71 = arith.constant 0 : index
    %c0_72 = arith.constant 0 : index
    %228 = vector.load %arg2[%c0_71, %c0_72] : memref<128x384xf32, #tpu.memory_space<vmem>>, vector<128x384xf32>
    %cst_73 = arith.constant dense<0.000000e+00> : vector<8x384xf32>
    %229 = tpu.matmul %227, %228, %cst_73 {dimension_numbers = #tpu.dot_dimension_numbers<[1], [0], [0], [1], [0, 0, 1, 1], [], []>} : vector<8x128xf32>, vector<128x384xf32>, vector<8x384xf32> -> vector<8x384xf32>
    %230 = vector.broadcast %0 : vector<1x384xf32> to vector<8x384xf32>
    %231 = arith.addf %229, %230 : vector<8x384xf32>
    %c0_74 = arith.constant 0 : index
    %c0_75 = arith.constant 0 : index
    %232 = vector.load %arg3[%c0_74, %c0_75] : memref<128x384xf32, #tpu.memory_space<vmem>>, vector<128x384xf32>
    %cst_76 = arith.constant dense<0.000000e+00> : vector<8x384xf32>
    %233 = tpu.matmul %224, %232, %cst_76 {dimension_numbers = #tpu.dot_dimension_numbers<[1], [0], [0], [1], [0, 0, 1, 1], [], []>} : vector<8x128xf32>, vector<128x384xf32>, vector<8x384xf32> -> vector<8x384xf32>
    %234 = vector.broadcast %1 : vector<1x384xf32> to vector<8x384xf32>
    %235 = arith.addf %233, %234 : vector<8x384xf32>
    %236 = vector.extract_strided_slice %231 {offsets = [0, 0], sizes = [8, 128], strides = [1, 1]} : vector<8x384xf32> to vector<8x128xf32>
    %237 = vector.extract_strided_slice %235 {offsets = [0, 0], sizes = [8, 128], strides = [1, 1]} : vector<8x384xf32> to vector<8x128xf32>
    %238 = arith.addf %236, %237 : vector<8x128xf32>
    %239 = arith.negf %238 : vector<8x128xf32>
    %240 = math.exp %239 : vector<8x128xf32>
    %cst_77 = arith.constant 1.000000e+00 : f32
    %241 = vector.broadcast %cst_77 : f32 to vector<8x128xf32>
    %242 = arith.addf %241, %240 : vector<8x128xf32>
    %243 = arith.divf %241, %242 : vector<8x128xf32>
    %244 = vector.extract_strided_slice %231 {offsets = [0, 128], sizes = [8, 128], strides = [1, 1]} : vector<8x384xf32> to vector<8x128xf32>
    %245 = vector.extract_strided_slice %235 {offsets = [0, 128], sizes = [8, 128], strides = [1, 1]} : vector<8x384xf32> to vector<8x128xf32>
    %246 = arith.addf %244, %245 : vector<8x128xf32>
    %247 = arith.negf %246 : vector<8x128xf32>
    %248 = math.exp %247 : vector<8x128xf32>
    %cst_78 = arith.constant 1.000000e+00 : f32
    %249 = vector.broadcast %cst_78 : f32 to vector<8x128xf32>
    %250 = arith.addf %249, %248 : vector<8x128xf32>
    %251 = arith.divf %249, %250 : vector<8x128xf32>
    %252 = vector.extract_strided_slice %231 {offsets = [0, 256], sizes = [8, 128], strides = [1, 1]} : vector<8x384xf32> to vector<8x128xf32>
    %253 = vector.extract_strided_slice %235 {offsets = [0, 256], sizes = [8, 128], strides = [1, 1]} : vector<8x384xf32> to vector<8x128xf32>
    %254 = arith.mulf %243, %253 : vector<8x128xf32>
    %255 = arith.addf %252, %254 : vector<8x128xf32>
    %256 = math.tanh %255 : vector<8x128xf32>
    %cst_79 = arith.constant 1.000000e+00 : f32
    %257 = vector.broadcast %cst_79 : f32 to vector<8x128xf32>
    %258 = arith.subf %257, %251 : vector<8x128xf32>
    %259 = arith.mulf %258, %256 : vector<8x128xf32>
    %260 = arith.mulf %251, %224 : vector<8x128xf32>
    %261 = arith.addf %259, %260 : vector<8x128xf32>
    %c7_i32 = arith.constant 7 : i32
    %262 = arith.index_cast %c7_i32 : i32 to index
    %c0_80 = arith.constant 0 : index
    %c0_81 = arith.constant 0 : index
    %263 = vector.load %arg1[%262, %c0_80, %c0_81] : memref<8x8x128xf32, #tpu.memory_space<vmem>>, vector<1x8x128xf32>
    %264 = vector.shape_cast %263 : vector<1x8x128xf32> to vector<8x128xf32>
    %c0_82 = arith.constant 0 : index
    %c0_83 = arith.constant 0 : index
    %265 = vector.load %arg2[%c0_82, %c0_83] : memref<128x384xf32, #tpu.memory_space<vmem>>, vector<128x384xf32>
    %cst_84 = arith.constant dense<0.000000e+00> : vector<8x384xf32>
    %266 = tpu.matmul %264, %265, %cst_84 {dimension_numbers = #tpu.dot_dimension_numbers<[1], [0], [0], [1], [0, 0, 1, 1], [], []>} : vector<8x128xf32>, vector<128x384xf32>, vector<8x384xf32> -> vector<8x384xf32>
    %267 = vector.broadcast %0 : vector<1x384xf32> to vector<8x384xf32>
    %268 = arith.addf %266, %267 : vector<8x384xf32>
    %c0_85 = arith.constant 0 : index
    %c0_86 = arith.constant 0 : index
    %269 = vector.load %arg3[%c0_85, %c0_86] : memref<128x384xf32, #tpu.memory_space<vmem>>, vector<128x384xf32>
    %cst_87 = arith.constant dense<0.000000e+00> : vector<8x384xf32>
    %270 = tpu.matmul %261, %269, %cst_87 {dimension_numbers = #tpu.dot_dimension_numbers<[1], [0], [0], [1], [0, 0, 1, 1], [], []>} : vector<8x128xf32>, vector<128x384xf32>, vector<8x384xf32> -> vector<8x384xf32>
    %271 = vector.broadcast %1 : vector<1x384xf32> to vector<8x384xf32>
    %272 = arith.addf %270, %271 : vector<8x384xf32>
    %273 = vector.extract_strided_slice %268 {offsets = [0, 0], sizes = [8, 128], strides = [1, 1]} : vector<8x384xf32> to vector<8x128xf32>
    %274 = vector.extract_strided_slice %272 {offsets = [0, 0], sizes = [8, 128], strides = [1, 1]} : vector<8x384xf32> to vector<8x128xf32>
    %275 = arith.addf %273, %274 : vector<8x128xf32>
    %276 = arith.negf %275 : vector<8x128xf32>
    %277 = math.exp %276 : vector<8x128xf32>
    %cst_88 = arith.constant 1.000000e+00 : f32
    %278 = vector.broadcast %cst_88 : f32 to vector<8x128xf32>
    %279 = arith.addf %278, %277 : vector<8x128xf32>
    %280 = arith.divf %278, %279 : vector<8x128xf32>
    %281 = vector.extract_strided_slice %268 {offsets = [0, 128], sizes = [8, 128], strides = [1, 1]} : vector<8x384xf32> to vector<8x128xf32>
    %282 = vector.extract_strided_slice %272 {offsets = [0, 128], sizes = [8, 128], strides = [1, 1]} : vector<8x384xf32> to vector<8x128xf32>
    %283 = arith.addf %281, %282 : vector<8x128xf32>
    %284 = arith.negf %283 : vector<8x128xf32>
    %285 = math.exp %284 : vector<8x128xf32>
    %cst_89 = arith.constant 1.000000e+00 : f32
    %286 = vector.broadcast %cst_89 : f32 to vector<8x128xf32>
    %287 = arith.addf %286, %285 : vector<8x128xf32>
    %288 = arith.divf %286, %287 : vector<8x128xf32>
    %289 = vector.extract_strided_slice %268 {offsets = [0, 256], sizes = [8, 128], strides = [1, 1]} : vector<8x384xf32> to vector<8x128xf32>
    %290 = vector.extract_strided_slice %272 {offsets = [0, 256], sizes = [8, 128], strides = [1, 1]} : vector<8x384xf32> to vector<8x128xf32>
    %291 = arith.mulf %280, %290 : vector<8x128xf32>
    %292 = arith.addf %289, %291 : vector<8x128xf32>
    %293 = math.tanh %292 : vector<8x128xf32>
    %cst_90 = arith.constant 1.000000e+00 : f32
    %294 = vector.broadcast %cst_90 : f32 to vector<8x128xf32>
    %295 = arith.subf %294, %288 : vector<8x128xf32>
    %296 = arith.mulf %295, %293 : vector<8x128xf32>
    %297 = arith.mulf %288, %261 : vector<8x128xf32>
    %298 = arith.addf %296, %297 : vector<8x128xf32>
    %c8_i32 = arith.constant 8 : i32
    %c0_91 = arith.constant 0 : index
    %c0_92 = arith.constant 0 : index
    %299 = vector.load %arg6[%c0_91, %c0_92] : memref<8x128xf32, #tpu.memory_space<vmem>>, vector<8x128xf32>
    tpu.vector_store %arg6[%c0_91, %c0_92], %298 {strides = array<i32>} : memref<8x128xf32, #tpu.memory_space<vmem>>, vector<8x128xf32>,
    return
  }
  func.func @transform_0(%arg0: i32) -> (i32, i32, i32) {
    %c0_i32 = arith.constant 0 : i32
    %c0_i32_0 = arith.constant 0 : i32
    %c0_i32_1 = arith.constant 0 : i32
    %c0_i32_2 = arith.constant 0 : i32
    return %c0_i32, %c0_i32_0, %c0_i32_1 : i32, i32, i32
  }
  func.func @transform_1(%arg0: i32) -> (i32, i32) {
    %c0_i32 = arith.constant 0 : i32
    %c0_i32_0 = arith.constant 0 : i32
    %c0_i32_1 = arith.constant 0 : i32
    return %c0_i32, %c0_i32_0 : i32, i32
  }
  func.func @transform_2(%arg0: i32) -> (i32, i32) {
    %c0_i32 = arith.constant 0 : i32
    %c0_i32_0 = arith.constant 0 : i32
    %c0_i32_1 = arith.constant 0 : i32
    return %c0_i32, %c0_i32_0 : i32, i32
  }
  func.func @transform_3(%arg0: i32) -> (i32, i32) {
    %c0_i32 = arith.constant 0 : i32
    %c0_i32_0 = arith.constant 0 : i32
    %c0_i32_1 = arith.constant 0 : i32
    return %c0_i32, %c0_i32_0 : i32, i32
  }
  func.func @transform_4(%arg0: i32) -> (i32, i32) {
    %c0_i32 = arith.constant 0 : i32
    %c0_i32_0 = arith.constant 0 : i32
    %c0_i32_1 = arith.constant 0 : i32
    return %c0_i32, %c0_i32_0 : i32, i32
  }
  func.func @transform_5(%arg0: i32) -> (i32, i32) {
    %c0_i32 = arith.constant 0 : i32
    %c0_i32_0 = arith.constant 0 : i32
    %c0_i32_1 = arith.constant 0 : i32
    return %c0_i32, %c0_i32_0 : i32, i32
  }
}

</mosaic_0001>

<llo_original>
// kernel: tpu_custom_call.1
$region0: #{tpu_custom_call.1}
  #allocation0 [shape = 'u32[]', space=smem, size = 0x4, offset = 0x4, fixed_abs, tag = 'smem constant byte address 0x4 - core index']
  #allocation1 [shape = 'u32[144,128]{1,0:T(1,128)}', space=vmem, size = 0x12000, scoped, tag = 'internal scratch']
  %s0 = inlined_call_operand.hbm [shape: f32[8,8,128], index: 0, kind: input, shape index: {}]
  %s1 = inlined_call_operand.hbm [shape: f32[128,384], index: 1, kind: input, shape index: {}]
  %s2 = inlined_call_operand.hbm [shape: f32[128,384], index: 2, kind: input, shape index: {}]
  %s3 = inlined_call_operand.vmem [shape: f32[1,384], index: 3, kind: input, shape index: {}]
  %s4 = inlined_call_operand.vmem [shape: f32[1,384], index: 4, kind: input, shape index: {}]
  %s5 = inlined_call_operand.hbm [shape: f32[8,128], index: 5, kind: output, shape index: {}]
  %s6 = sld [smem:[#allocation0]]
  $region42: #{tpu_custom_call.1} parent=0
    _
  %s8 = ssub.s32 1, %s6
  %s9 = scalar_select 0, %s8, %s6
  $region1: #{tpu_custom_call.1} parent=0
    #allocation2 [shape = 'u8[32768]{0}', space=vmem, size = 0x8000, scoped, tag = 'input window, operand 0, single buffered']
    #allocation3 [shape = 's32[1]{0}', space=sflag, size = 0x4, scoped, tag = 'scoped memory for tpu_custom_call.1']
    #allocation4 [shape = 's32[1]{0}', space=sflag, size = 0x4, scoped, tag = 'scoped memory for tpu_custom_call.1']
    #allocation5 [shape = 'u8[196608]{0}', space=vmem, size = 0x30000, scoped, tag = 'input window, operand 1, single buffered']
    #allocation6 [shape = 's32[1]{0}', space=sflag, size = 0x4, scoped, tag = 'scoped memory for tpu_custom_call.1']
    #allocation7 [shape = 'u8[196608]{0}', space=vmem, size = 0x30000, scoped, tag = 'input window, operand 2, single buffered']
    #allocation8 [shape = 'u8[4096]{0}', space=vmem, size = 0x1000, scoped, tag = 'output window, operand 0, single buffered']
    %10 = vsyncpa [#allocation3], 0
    %11 = vsyncpa [#allocation6], 0
    %12 = vsyncpa [#allocation4], 0
    // Predicated region
    $region2: #{tpu_custom_call.1} parent=1 // pred_check
      _
    $region3: #{tpu_custom_call.1} parent=1 // pred_check_branch
      %14 = sbr.rel (0) target = $region5
    $region4: #{tpu_custom_call.1} parent=1 // pred_region
      %s16 = ssub.s32 1024, 1024
      %17 = vsyncadd [#allocation3], %s16
      %s18 = sshll.u32 [#allocation2], 4
      %s19 = int_to_ptr.vmem [resolvable:$true] %s18
      %24 = dma.hbm_to_vmem [thread:$0]  %s0, 1024, %s19, [#allocation3], 128, 128, 8
    $region5: #{tpu_custom_call.1} parent=1 // pred_fallthru
      _
    // Predicated region
    $region6: #{tpu_custom_call.1} parent=1 // pred_check
      _
    $region7: #{tpu_custom_call.1} parent=1 // pred_check_branch
      %26 = sbr.rel (0) target = $region9
    $region8: #{tpu_custom_call.1} parent=1 // pred_region
      %s28 = ssub.s32 6144, 6144
      %29 = vsyncadd [#allocation6], %s28
      %s30 = sshll.u32 [#allocation5], 4
      %s31 = int_to_ptr.vmem [resolvable:$true] %s30
      %36 = dma.hbm_to_vmem [thread:$0]  %s1, 6144, %s31, [#allocation6], 384, 384, 24
    $region9: #{tpu_custom_call.1} parent=1 // pred_fallthru
      _
    // Predicated region
    $region10: #{tpu_custom_call.1} parent=1 // pred_check
      _
    $region11: #{tpu_custom_call.1} parent=1 // pred_check_branch
      %38 = sbr.rel (0) target = $region13
    $region12: #{tpu_custom_call.1} parent=1 // pred_region
      %s40 = ssub.s32 6144, 6144
      %41 = vsyncadd [#allocation6], %s40
      %s42 = sshll.u32 [#allocation7], 4
      %s43 = int_to_ptr.vmem [resolvable:$true] %s42
      %48 = dma.hbm_to_vmem [thread:$0]  %s2, 6144, %s43, [#allocation6], 384, 384, 24
    $region13: #{tpu_custom_call.1} parent=1 // pred_fallthru
      _
    // Predicated region
    $region14: #{tpu_custom_call.1} parent=1 // pred_check
      _
    $region15: #{tpu_custom_call.1} parent=1 // pred_check_branch
      %50 = sbr.rel (0) target = $region17
    $region16: #{tpu_custom_call.1} parent=1 // pred_region
      _
    $region17: #{tpu_custom_call.1} parent=1 // pred_fallthru
      _
    // Predicated region
    $region18: #{tpu_custom_call.1} parent=1 // pred_check
      _
    $region19: #{tpu_custom_call.1} parent=1 // pred_check_branch
      %52 = sbr.rel (0) target = $region21
    $region20: #{tpu_custom_call.1} parent=1 // pred_region
      _
    $region21: #{tpu_custom_call.1} parent=1 // pred_fallthru
      _
    // Predicated region
    $region22: #{tpu_custom_call.1} parent=1 // pred_check
      _
    $region23: #{tpu_custom_call.1} parent=1 // pred_check_branch
      %54 = sbr.rel (0) target = $region25
    $region24: #{tpu_custom_call.1} parent=1 // pred_region
      %55 = dma.done [#allocation3], 1024
    $region25: #{tpu_custom_call.1} parent=1 // pred_fallthru
      _
    // Predicated region
    $region26: #{tpu_custom_call.1} parent=1 // pred_check
      _
    $region27: #{tpu_custom_call.1} parent=1 // pred_check_branch
      %57 = sbr.rel (0) target = $region29
    $region28: #{tpu_custom_call.1} parent=1 // pred_region
      %58 = dma.done [#allocation6], 6144
    $region29: #{tpu_custom_call.1} parent=1 // pred_fallthru
      _
    // Predicated region
    $region30: #{tpu_custom_call.1} parent=1 // pred_check
      _
    $region31: #{tpu_custom_call.1} parent=1 // pred_check_branch
      %60 = sbr.rel (0) target = $region33
    $region32: #{tpu_custom_call.1} parent=1 // pred_region
      %61 = dma.done [#allocation6], 6144
    $region33: #{tpu_custom_call.1} parent=1 // pred_fallthru
      _
    %v62 = vld [vmem:[%s3] sm:$0x7]
    %v63 = vld [vmem:[%s4] sm:$0x7]
    %v64 = vld [vmem:[#allocation2] sm:$0xff]
    %v65 = vld [vmem:[#allocation5] sm:$0xff]
    %v66 = vld [vmem:[#allocation5 + $0x8] sm:$0xff]
    %v67 = vld [vmem:[#allocation5 + $0x10] sm:$0xff]
    %v68 = vld [vmem:[#allocation5 + $0x18] sm:$0xff]
    %v69 = vld [vmem:[#allocation5 + $0x20] sm:$0xff]
    %v70 = vld [vmem:[#allocation5 + $0x28] sm:$0xff]
    %v71 = vld [vmem:[#allocation5 + $0x30] sm:$0xff]
    %v72 = vld [vmem:[#allocation5 + $0x38] sm:$0xff]
    %v73 = vld [vmem:[#allocation5 + $0x40] sm:$0xff]
    %v74 = vld [vmem:[#allocation5 + $0x48] sm:$0xff]
    %v75 = vld [vmem:[#allocation5 + $0x50] sm:$0xff]
    %v76 = vld [vmem:[#allocation5 + $0x58] sm:$0xff]
    %v77 = vld [vmem:[#allocation5 + $0x60] sm:$0xff]
    %v78 = vld [vmem:[#allocation5 + $0x68] sm:$0xff]
    %v79 = vld [vmem:[#allocation5 + $0x70] sm:$0xff]
    %v80 = vld [vmem:[#allocation5 + $0x78] sm:$0xff]
    %v81 = vld [vmem:[#allocation5 + $0x80] sm:$0xff]
    %v82 = vld [vmem:[#allocation5 + $0x88] sm:$0xff]
    %v83 = vld [vmem:[#allocation5 + $0x90] sm:$0xff]
    %v84 = vld [vmem:[#allocation5 + $0x98] sm:$0xff]
    %v85 = vld [vmem:[#allocation5 + $0xa0] sm:$0xff]
    %v86 = vld [vmem:[#allocation5 + $0xa8] sm:$0xff]
    %v87 = vld [vmem:[#allocation5 + $0xb0] sm:$0xff]
    %v88 = vld [vmem:[#allocation5 + $0xb8] sm:$0xff]
    %v89 = vld [vmem:[#allocation5 + $0xc0] sm:$0xff]
    %v90 = vld [vmem:[#allocation5 + $0xc8] sm:$0xff]
    %v91 = vld [vmem:[#allocation5 + $0xd0] sm:$0xff]
    %v92 = vld [vmem:[#allocation5 + $0xd8] sm:$0xff]
    %v93 = vld [vmem:[#allocation5 + $0xe0] sm:$0xff]
    %v94 = vld [vmem:[#allocation5 + $0xe8] sm:$0xff]
    %v95 = vld [vmem:[#allocation5 + $0xf0] sm:$0xff]
    %v96 = vld [vmem:[#allocation5 + $0xf8] sm:$0xff]
    %v97 = vld [vmem:[#allocation5 + $0x100] sm:$0xff]
    %v98 = vld [vmem:[#allocation5 + $0x108] sm:$0xff]
    %v99 = vld [vmem:[#allocation5 + $0x110] sm:$0xff]
    %v100 = vld [vmem:[#allocation5 + $0x118] sm:$0xff]
    %v101 = vld [vmem:[#allocation5 + $0x120] sm:$0xff]
    %v102 = vld [vmem:[#allocation5 + $0x128] sm:$0xff]
    %v103 = vld [vmem:[#allocation5 + $0x130] sm:$0xff]
    %v104 = vld [vmem:[#allocation5 + $0x138] sm:$0xff]
    %v105 = vld [vmem:[#allocation5 + $0x140] sm:$0xff]
    %v106 = vld [vmem:[#allocation5 + $0x148] sm:$0xff]
    %v107 = vld [vmem:[#allocation5 + $0x150] sm:$0xff]
    %v108 = vld [vmem:[#allocation5 + $0x158] sm:$0xff]
    %v109 = vld [vmem:[#allocation5 + $0x160] sm:$0xff]
    %v110 = vld [vmem:[#allocation5 + $0x168] sm:$0xff]
    %v111 = vld [vmem:[#allocation5 + $0x170] sm:$0xff]
    %v112 = vld [vmem:[#allocation5 + $0x178] sm:$0xff]
    %v114 = vlaneseq
    %v115 = vshrl.u32 %v114, 7
    %v116 = vsub.s32 0, %v115
    %v117 = vrot.slane %v62, %v116
    %v118 = vlaneseq
    %v119 = vshrl.u32 %v118, 7
    %v120 = vsub.s32 1, %v119
    %v121 = vrot.slane %v62, %v120
    %v122 = vlaneseq
    %v123 = vshrl.u32 %v122, 7
    %v124 = vsub.s32 2, %v123
    %v125 = vrot.slane %v62, %v124
    %129 = vmatprep.subr.mxu0 %v66
    %130 = vmatpush1.msra.mxu0 %v65
    %131 = vmatprep.subr.mxu0 %v69
    %132 = vmatpush1.msra.mxu0 %v68
    %133 = vmatprep.subr.mxu0 %v72
    %134 = vmatpush1.msra.mxu0 %v71
    %135 = vmatprep.subr.mxu0 %v75
    %136 = vmatpush1.msra.mxu0 %v74
    %137 = vmatprep.subr.mxu0 %v78
    %138 = vmatpush1.msra.mxu0 %v77
    %139 = vmatprep.subr.mxu0 %v81
    %140 = vmatpush1.msra.mxu0 %v80
    %141 = vmatprep.subr.mxu0 %v84
    %142 = vmatpush1.msra.mxu0 %v83
    %143 = vmatprep.subr.mxu0 %v87
    %144 = vmatpush1.msra.mxu0 %v86
    %145 = vmatprep.subr.mxu0 %v90
    %146 = vmatpush1.msra.mxu0 %v89
    %147 = vmatprep.subr.mxu0 %v93
    %148 = vmatpush1.msra.mxu0 %v92
    %149 = vmatprep.subr.mxu0 %v96
    %150 = vmatpush1.msra.mxu0 %v95
    %151 = vmatprep.subr.mxu0 %v99
    %152 = vmatpush1.msra.mxu0 %v98
    %153 = vmatprep.subr.mxu0 %v102
    %154 = vmatpush1.msra.mxu0 %v101
    %155 = vmatprep.subr.mxu0 %v105
    %156 = vmatpush1.msra.mxu0 %v104
    %157 = vmatprep.subr.mxu0 %v108
    %158 = vmatpush1.msra.mxu0 %v107
    %159 = vmatprep.subr.mxu0 %v111
    %160 = vmatpush1.msra.mxu0 %v110
    %161 = vmatprep.subr.mxu0 0.0
    %162 = vmatpush1.msra.mxu0 0.0
    %163 = vmatprep.subr.mxu0 0.0
    %164 = vmatpush1.msra.mxu0 0.0
    %165 = vmatprep.subr.mxu0 0.0
    %166 = vmatpush1.msra.mxu0 0.0
    %167 = vmatprep.subr.mxu0 0.0
    %168 = vmatpush1.msra.mxu0 0.0
    %169 = vmatprep.subr.mxu0 0.0
    %170 = vmatpush1.msra.mxu0 0.0
    %171 = vmatprep.subr.mxu0 0.0
    %172 = vmatpush1.msra.mxu0 0.0
    %173 = vmatprep.subr.mxu0 0.0
    %174 = vmatpush1.msra.mxu0 0.0
    %175 = vmatprep.subr.mxu0 0.0
    %176 = vmatpush1.msra.mxu0 0.0
    %177 = vmatprep.subr.mxu0 0.0
    %178 = vmatpush1.msra.mxu0 0.0
    %179 = vmatprep.subr.mxu0 0.0
    %180 = vmatpush1.msra.mxu0 0.0
    %181 = vmatprep.subr.mxu0 0.0
    %182 = vmatpush1.msra.mxu0 0.0
    %183 = vmatprep.subr.mxu0 0.0
    %184 = vmatpush1.msra.mxu0 0.0
    %185 = vmatprep.subr.mxu0 0.0
    %186 = vmatpush1.msra.mxu0 0.0
    %187 = vmatprep.subr.mxu0 0.0
    %188 = vmatpush1.msra.mxu0 0.0
    %189 = vmatprep.subr.mxu0 0.0
    %190 = vmatpush1.msra.mxu0 0.0
    %191 = vmatprep.subr.mxu0 0.0
    %192 = vmatpush1.msra.mxu0 0.0
    %193 = vmatprep.mubr.f32.mxu0 0.0
    %194 = vmatmul.mubr.f32.gmra.mrb[0].mxu0 %v64
    %v195 = vpop.f32.mrb[0].mxu0
    %v196 = vadd.f32 %v117, %v195
    %v197 = vpop.f32.mrb[0].mxu0
    %v198 = vadd.f32 %v121, %v197
    %199 = vdwg.mxu0
    %200 = vmatprep.subr.mxu0 0.0
    %201 = vmatpush1.msra.mxu0 %v67
    %202 = vmatprep.subr.mxu0 0.0
    %203 = vmatpush1.msra.mxu0 %v70
    %204 = vmatprep.subr.mxu0 0.0
    %205 = vmatpush1.msra.mxu0 %v73
    %206 = vmatprep.subr.mxu0 0.0
    %207 = vmatpush1.msra.mxu0 %v76
    %208 = vmatprep.subr.mxu0 0.0
    %209 = vmatpush1.msra.mxu0 %v79
    %210 = vmatprep.subr.mxu0 0.0
    %211 = vmatpush1.msra.mxu0 %v82
    %212 = vmatprep.subr.mxu0 0.0
    %213 = vmatpush1.msra.mxu0 %v85
    %214 = vmatprep.subr.mxu0 0.0
    %215 = vmatpush1.msra.mxu0 %v88
    %216 = vmatprep.subr.mxu0 0.0
    %217 = vmatpush1.msra.mxu0 %v91
    %218 = vmatprep.subr.mxu0 0.0
    %219 = vmatpush1.msra.mxu0 %v94
    %220 = vmatprep.subr.mxu0 0.0
    %221 = vmatpush1.msra.mxu0 %v97
    %222 = vmatprep.subr.mxu0 0.0
    %223 = vmatpush1.msra.mxu0 %v100
    %224 = vmatprep.subr.mxu0 0.0
    %225 = vmatpush1.msra.mxu0 %v103
    %226 = vmatprep.subr.mxu0 0.0
    %227 = vmatpush1.msra.mxu0 %v106
    %228 = vmatprep.subr.mxu0 0.0
    %229 = vmatpush1.msra.mxu0 %v109
    %230 = vmatprep.subr.mxu0 0.0
    %231 = vmatpush1.msra.mxu0 %v112
    %232 = vmatprep.subr.mxu0 0.0
    %233 = vmatpush1.msra.mxu0 0.0
    %234 = vmatprep.subr.mxu0 0.0
    %235 = vmatpush1.msra.mxu0 0.0
    %236 = vmatprep.subr.mxu0 0.0
    %237 = vmatpush1.msra.mxu0 0.0
    %238 = vmatprep.subr.mxu0 0.0
    %239 = vmatpush1.msra.mxu0 0.0
    %240 = vmatprep.subr.mxu0 0.0
    %241 = vmatpush1.msra.mxu0 0.0
    %242 = vmatprep.subr.mxu0 0.0
    %243 = vmatpush1.msra.mxu0 0.0
    %244 = vmatprep.subr.mxu0 0.0
    %245 = vmatpush1.msra.mxu0 0.0
    %246 = vmatprep.subr.mxu0 0.0
    %247 = vmatpush1.msra.mxu0 0.0
    %248 = vmatprep.subr.mxu0 0.0
    %249 = vmatpush1.msra.mxu0 0.0
    %250 = vmatprep.subr.mxu0 0.0
    %251 = vmatpush1.msra.mxu0 0.0
    %252 = vmatprep.subr.mxu0 0.0
    %253 = vmatpush1.msra.mxu0 0.0
    %254 = vmatprep.subr.mxu0 0.0
    %255 = vmatpush1.msra.mxu0 0.0
    %256 = vmatprep.subr.mxu0 0.0
    %257 = vmatpush1.msra.mxu0 0.0
    %258 = vmatprep.subr.mxu0 0.0
    %259 = vmatpush1.msra.mxu0 0.0
    %260 = vmatprep.subr.mxu0 0.0
    %261 = vmatpush1.msra.mxu0 0.0
    %262 = vmatprep.subr.mxu0 0.0
    %263 = vmatpush1.msra.mxu0 0.0
    %264 = vmatprep.mubr.f32.mxu0 0.0
    %265 = vmatmul.mubr.f32.gmra.mrb[0].mxu0 %v64
    %v266 = vpop.f32.mrb[0].mxu0
    %v267 = vadd.f32 %v125, %v266
    %v268 = vpop.f32.mrb[0].mxu0
    %269 = vdwg.mxu0
    %v270 = vld [vmem:[#allocation7] sm:$0xff]
    %v271 = vld [vmem:[#allocation7 + $0x8] sm:$0xff]
    %v272 = vld [vmem:[#allocation7 + $0x10] sm:$0xff]
    %v273 = vld [vmem:[#allocation7 + $0x18] sm:$0xff]
    %v274 = vld [vmem:[#allocation7 + $0x20] sm:$0xff]
    %v275 = vld [vmem:[#allocation7 + $0x28] sm:$0xff]
    %v276 = vld [vmem:[#allocation7 + $0x30] sm:$0xff]
    %v277 = vld [vmem:[#allocation7 + $0x38] sm:$0xff]
    %v278 = vld [vmem:[#allocation7 + $0x40] sm:$0xff]
    %v279 = vld [vmem:[#allocation7 + $0x48] sm:$0xff]
    %v280 = vld [vmem:[#allocation7 + $0x50] sm:$0xff]
    %v281 = vld [vmem:[#allocation7 + $0x58] sm:$0xff]
    %v282 = vld [vmem:[#allocation7 + $0x60] sm:$0xff]
    %v283 = vld [vmem:[#allocation7 + $0x68] sm:$0xff]
    %v284 = vld [vmem:[#allocation7 + $0x70] sm:$0xff]
    %v285 = vld [vmem:[#allocation7 + $0x78] sm:$0xff]
    %v286 = vld [vmem:[#allocation7 + $0x80] sm:$0xff]
    %v287 = vld [vmem:[#allocation7 + $0x88] sm:$0xff]
    %v288 = vld [vmem:[#allocation7 + $0x90] sm:$0xff]
    %v289 = vld [vmem:[#allocation7 + $0x98] sm:$0xff]
    %v290 = vld [vmem:[#allocation7 + $0xa0] sm:$0xff]
    %v291 = vld [vmem:[#allocation7 + $0xa8] sm:$0xff]
    %v292 = vld [vmem:[#allocation7 + $0xb0] sm:$0xff]
    %v293 = vld [vmem:[#allocation7 + $0xb8] sm:$0xff]
    %v294 = vld [vmem:[#allocation7 + $0xc0] sm:$0xff]
    %v295 = vld [vmem:[#allocation7 + $0xc8] sm:$0xff]
    %v296 = vld [vmem:[#allocation7 + $0xd0] sm:$0xff]
    %v297 = vld [vmem:[#allocation7 + $0xd8] sm:$0xff]
    %v298 = vld [vmem:[#allocation7 + $0xe0] sm:$0xff]
    %v299 = vld [vmem:[#allocation7 + $0xe8] sm:$0xff]
    %v300 = vld [vmem:[#allocation7 + $0xf0] sm:$0xff]
    %v301 = vld [vmem:[#allocation7 + $0xf8] sm:$0xff]
    %v302 = vld [vmem:[#allocation7 + $0x100] sm:$0xff]
    %v303 = vld [vmem:[#allocation7 + $0x108] sm:$0xff]
    %v304 = vld [vmem:[#allocation7 + $0x110] sm:$0xff]
    %v305 = vld [vmem:[#allocation7 + $0x118] sm:$0xff]
    %v306 = vld [vmem:[#allocation7 + $0x120] sm:$0xff]
    %v307 = vld [vmem:[#allocation7 + $0x128] sm:$0xff]
    %v308 = vld [vmem:[#allocation7 + $0x130] sm:$0xff]
    %v309 = vld [vmem:[#allocation7 + $0x138] sm:$0xff]
    %v310 = vld [vmem:[#allocation7 + $0x140] sm:$0xff]
    %v311 = vld [vmem:[#allocation7 + $0x148] sm:$0xff]
    %v312 = vld [vmem:[#allocation7 + $0x150] sm:$0xff]
    %v313 = vld [vmem:[#allocation7 + $0x158] sm:$0xff]
    %v314 = vld [vmem:[#allocation7 + $0x160] sm:$0xff]
    %v315 = vld [vmem:[#allocation7 + $0x168] sm:$0xff]
    %v316 = vld [vmem:[#allocation7 + $0x170] sm:$0xff]
    %v317 = vld [vmem:[#allocation7 + $0x178] sm:$0xff]
    %v319 = vlaneseq
    %v320 = vshrl.u32 %v319, 7
    %v321 = vsub.s32 0, %v320
    %v322 = vrot.slane %v63, %v321
    %v323 = vlaneseq
    %v324 = vshrl.u32 %v323, 7
    %v325 = vsub.s32 1, %v324
    %v326 = vrot.slane %v63, %v325
    %v327 = vlaneseq
    %v328 = vshrl.u32 %v327, 7
    %v329 = vsub.s32 2, %v328
    %v330 = vrot.slane %v63, %v329
    %334 = vmatprep.subr.mxu0 %v271
    %335 = vmatpush1.msra.mxu0 %v270
    %336 = vmatprep.subr.mxu0 %v274
    %337 = vmatpush1.msra.mxu0 %v273
    %338 = vmatprep.subr.mxu0 %v277
    %339 = vmatpush1.msra.mxu0 %v276
    %340 = vmatprep.subr.mxu0 %v280
    %341 = vmatpush1.msra.mxu0 %v279
    %342 = vmatprep.subr.mxu0 %v283
    %343 = vmatpush1.msra.mxu0 %v282
    %344 = vmatprep.subr.mxu0 %v286
    %345 = vmatpush1.msra.mxu0 %v285
    %346 = vmatprep.subr.mxu0 %v289
    %347 = vmatpush1.msra.mxu0 %v288
    %348 = vmatprep.subr.mxu0 %v292
    %349 = vmatpush1.msra.mxu0 %v291
    %350 = vmatprep.subr.mxu0 %v295
    %351 = vmatpush1.msra.mxu0 %v294
    %352 = vmatprep.subr.mxu0 %v298
    %353 = vmatpush1.msra.mxu0 %v297
    %354 = vmatprep.subr.mxu0 %v301
    %355 = vmatpush1.msra.mxu0 %v300
    %356 = vmatprep.subr.mxu0 %v304
    %357 = vmatpush1.msra.mxu0 %v303
    %358 = vmatprep.subr.mxu0 %v307
    %359 = vmatpush1.msra.mxu0 %v306
    %360 = vmatprep.subr.mxu0 %v310
    %361 = vmatpush1.msra.mxu0 %v309
    %362 = vmatprep.subr.mxu0 %v313
    %363 = vmatpush1.msra.mxu0 %v312
    %364 = vmatprep.subr.mxu0 %v316
    %365 = vmatpush1.msra.mxu0 %v315
    %366 = vmatprep.subr.mxu0 0.0
    %367 = vmatpush1.msra.mxu0 0.0
    %368 = vmatprep.subr.mxu0 0.0
    %369 = vmatpush1.msra.mxu0 0.0
    %370 = vmatprep.subr.mxu0 0.0
    %371 = vmatpush1.msra.mxu0 0.0
    %372 = vmatprep.subr.mxu0 0.0
    %373 = vmatpush1.msra.mxu0 0.0
    %374 = vmatprep.subr.mxu0 0.0
    %375 = vmatpush1.msra.mxu0 0.0
    %376 = vmatprep.subr.mxu0 0.0
    %377 = vmatpush1.msra.mxu0 0.0
    %378 = vmatprep.subr.mxu0 0.0
    %379 = vmatpush1.msra.mxu0 0.0
    %380 = vmatprep.subr.mxu0 0.0
    %381 = vmatpush1.msra.mxu0 0.0
    %382 = vmatprep.subr.mxu0 0.0
    %383 = vmatpush1.msra.mxu0 0.0
    %384 = vmatprep.subr.mxu0 0.0
    %385 = vmatpush1.msra.mxu0 0.0
    %386 = vmatprep.subr.mxu0 0.0
    %387 = vmatpush1.msra.mxu0 0.0
    %388 = vmatprep.subr.mxu0 0.0
    %389 = vmatpush1.msra.mxu0 0.0
    %390 = vmatprep.subr.mxu0 0.0
    %391 = vmatpush1.msra.mxu0 0.0
    %392 = vmatprep.subr.mxu0 0.0
    %393 = vmatpush1.msra.mxu0 0.0
    %394 = vmatprep.subr.mxu0 0.0
    %395 = vmatpush1.msra.mxu0 0.0
    %396 = vmatprep.subr.mxu0 0.0
    %397 = vmatpush1.msra.mxu0 0.0
    %398 = vmatprep.mubr.f32.mxu0 0.0
    %399 = vmatmul.mubr.f32.gmra.mrb[0].mxu0 0.0
    %v400 = vpop.f32.mrb[0].mxu0
    %v401 = vadd.f32 %v322, %v400
    %v402 = vpop.f32.mrb[0].mxu0
    %v403 = vadd.f32 %v326, %v402
    %404 = vdwg.mxu0
    %405 = vmatprep.subr.mxu0 0.0
    %406 = vmatpush1.msra.mxu0 %v272
    %407 = vmatprep.subr.mxu0 0.0
    %408 = vmatpush1.msra.mxu0 %v275
    %409 = vmatprep.subr.mxu0 0.0
    %410 = vmatpush1.msra.mxu0 %v278
    %411 = vmatprep.subr.mxu0 0.0
    %412 = vmatpush1.msra.mxu0 %v281
    %413 = vmatprep.subr.mxu0 0.0
    %414 = vmatpush1.msra.mxu0 %v284
    %415 = vmatprep.subr.mxu0 0.0
    %416 = vmatpush1.msra.mxu0 %v287
    %417 = vmatprep.subr.mxu0 0.0
    %418 = vmatpush1.msra.mxu0 %v290
    %419 = vmatprep.subr.mxu0 0.0
    %420 = vmatpush1.msra.mxu0 %v293
    %421 = vmatprep.subr.mxu0 0.0
    %422 = vmatpush1.msra.mxu0 %v296
    %423 = vmatprep.subr.mxu0 0.0
    %424 = vmatpush1.msra.mxu0 %v299
    %425 = vmatprep.subr.mxu0 0.0
    %426 = vmatpush1.msra.mxu0 %v302
    %427 = vmatprep.subr.mxu0 0.0
    %428 = vmatpush1.msra.mxu0 %v305
    %429 = vmatprep.subr.mxu0 0.0
    %430 = vmatpush1.msra.mxu0 %v308
    %431 = vmatprep.subr.mxu0 0.0
    %432 = vmatpush1.msra.mxu0 %v311
    %433 = vmatprep.subr.mxu0 0.0
    %434 = vmatpush1.msra.mxu0 %v314
    %435 = vmatprep.subr.mxu0 0.0
    %436 = vmatpush1.msra.mxu0 %v317
    %437 = vmatprep.subr.mxu0 0.0
    %438 = vmatpush1.msra.mxu0 0.0
    %439 = vmatprep.subr.mxu0 0.0
    %440 = vmatpush1.msra.mxu0 0.0
    %441 = vmatprep.subr.mxu0 0.0
    %442 = vmatpush1.msra.mxu0 0.0
    %443 = vmatprep.subr.mxu0 0.0
    %444 = vmatpush1.msra.mxu0 0.0
    %445 = vmatprep.subr.mxu0 0.0
    %446 = vmatpush1.msra.mxu0 0.0
    %447 = vmatprep.subr.mxu0 0.0
    %448 = vmatpush1.msra.mxu0 0.0
    %449 = vmatprep.subr.mxu0 0.0
    %450 = vmatpush1.msra.mxu0 0.0
    %451 = vmatprep.subr.mxu0 0.0
    %452 = vmatpush1.msra.mxu0 0.0
    %453 = vmatprep.subr.mxu0 0.0
    %454 = vmatpush1.msra.mxu0 0.0
    %455 = vmatprep.subr.mxu0 0.0
    %456 = vmatpush1.msra.mxu0 0.0
    %457 = vmatprep.subr.mxu0 0.0
    %458 = vmatpush1.msra.mxu0 0.0
    %459 = vmatprep.subr.mxu0 0.0
    %460 = vmatpush1.msra.mxu0 0.0
    %461 = vmatprep.subr.mxu0 0.0
    %462 = vmatpush1.msra.mxu0 0.0
    %463 = vmatprep.subr.mxu0 0.0
    %464 = vmatpush1.msra.mxu0 0.0
    %465 = vmatprep.subr.mxu0 0.0
    %466 = vmatpush1.msra.mxu0 0.0
    %467 = vmatprep.subr.mxu0 0.0
    %468 = vmatpush1.msra.mxu0 0.0
    %469 = vmatprep.mubr.f32.mxu0 0.0
    %470 = vmatmul.mubr.f32.gmra.mrb[0].mxu0 0.0
    %v471 = vpop.f32.mrb[0].mxu0
    %v472 = vadd.f32 %v330, %v471
    %v473 = vpop.f32.mrb[0].mxu0
    %474 = vdwg.mxu0
    %v475 = vadd.f32 %v196, %v401
    %v476 = vxor.u32 %v475, 2147483648
    %v477 = vmul.f32 %v476, 1.442695
    %v478 = vpow.pop %v477
    %v479 = vadd.f32 %v478, 1.0
    %v480 = vrcp.pop %v479
    %v481 = vmul.f32 1.0, %v480
    %v482 = vadd.f32 %v198, %v403
    %v483 = vxor.u32 %v482, 2147483648
    %v484 = vmul.f32 %v483, 1.442695
    %v485 = vpow.pop %v484
    %v486 = vadd.f32 %v485, 1.0
    %v487 = vrcp.pop %v486
    %v488 = vmul.f32 1.0, %v487
    %v489 = vmul.f32 %v481, %v472
    %v490 = vadd.f32 %v267, %v489
    %v491 = vtanh.pop %v490
    %v492 = vsub.f32 1.0, %v488
    %v493 = vmul.f32 %v492, %v491
    %v494 = vmul.f32 %v488, 0.0
    %v495 = vadd.f32 %v493, %v494
    %s496 = scalar_lea.vmem [#allocation2], 8
    %v497 = vld [vmem:[%s496] sm:$0xff]
    %498 = vmatprep.subr.mxu0 %v66
    %499 = vmatpush1.msra.mxu0 %v65
    %500 = vmatprep.subr.mxu0 %v69
    %501 = vmatpush1.msra.mxu0 %v68
    %502 = vmatprep.subr.mxu0 %v72
    %503 = vmatpush1.msra.mxu0 %v71
    %504 = vmatprep.subr.mxu0 %v75
    %505 = vmatpush1.msra.mxu0 %v74
    %506 = vmatprep.subr.mxu0 %v78
    %507 = vmatpush1.msra.mxu0 %v77
    %508 = vmatprep.subr.mxu0 %v81
    %509 = vmatpush1.msra.mxu0 %v80
    %510 = vmatprep.subr.mxu0 %v84
    %511 = vmatpush1.msra.mxu0 %v83
    %512 = vmatprep.subr.mxu0 %v87
    %513 = vmatpush1.msra.mxu0 %v86
    %514 = vmatprep.subr.mxu0 %v90
    %515 = vmatpush1.msra.mxu0 %v89
    %516 = vmatprep.subr.mxu0 %v93
    %517 = vmatpush1.msra.mxu0 %v92
    %518 = vmatprep.subr.mxu0 %v96
    %519 = vmatpush1.msra.mxu0 %v95
    %520 = vmatprep.subr.mxu0 %v99
    %521 = vmatpush1.msra.mxu0 %v98
    %522 = vmatprep.subr.mxu0 %v102
    %523 = vmatpush1.msra.mxu0 %v101
    %524 = vmatprep.subr.mxu0 %v105
    %525 = vmatpush1.msra.mxu0 %v104
    %526 = vmatprep.subr.mxu0 %v108
    %527 = vmatpush1.msra.mxu0 %v107
    %528 = vmatprep.subr.mxu0 %v111
    %529 = vmatpush1.msra.mxu0 %v110
    %530 = vmatprep.subr.mxu0 0.0
    %531 = vmatpush1.msra.mxu0 0.0
    %532 = vmatprep.subr.mxu0 0.0
    %533 = vmatpush1.msra.mxu0 0.0
    %534 = vmatprep.subr.mxu0 0.0
    %535 = vmatpush1.msra.mxu0 0.0
    %536 = vmatprep.subr.mxu0 0.0
    %537 = vmatpush1.msra.mxu0 0.0
    %538 = vmatprep.subr.mxu0 0.0
    %539 = vmatpush1.msra.mxu0 0.0
    %540 = vmatprep.subr.mxu0 0.0
    %541 = vmatpush1.msra.mxu0 0.0
    %542 = vmatprep.subr.mxu0 0.0
    %543 = vmatpush1.msra.mxu0 0.0
    %544 = vmatprep.subr.mxu0 0.0
    %545 = vmatpush1.msra.mxu0 0.0
    %546 = vmatprep.subr.mxu0 0.0
    %547 = vmatpush1.msra.mxu0 0.0
    %548 = vmatprep.subr.mxu0 0.0
    %549 = vmatpush1.msra.mxu0 0.0
    %550 = vmatprep.subr.mxu0 0.0
    %551 = vmatpush1.msra.mxu0 0.0
    %552 = vmatprep.subr.mxu0 0.0
    %553 = vmatpush1.msra.mxu0 0.0
    %554 = vmatprep.subr.mxu0 0.0
    %555 = vmatpush1.msra.mxu0 0.0
    %556 = vmatprep.subr.mxu0 0.0
    %557 = vmatpush1.msra.mxu0 0.0
    %558 = vmatprep.subr.mxu0 0.0
    %559 = vmatpush1.msra.mxu0 0.0
    %560 = vmatprep.subr.mxu0 0.0
    %561 = vmatpush1.msra.mxu0 0.0
    %562 = vmatprep.mubr.f32.mxu0 0.0
    %563 = vmatmul.mubr.f32.gmra.mrb[0].mxu0 %v497
    %v564 = vpop.f32.mrb[0].mxu0
    %v565 = vadd.f32 %v117, %v564
    %v566 = vpop.f32.mrb[0].mxu0
    %v567 = vadd.f32 %v121, %v566
    %568 = vdwg.mxu0
    %569 = vmatprep.subr.mxu0 0.0
    %570 = vmatpush1.msra.mxu0 %v67
    %571 = vmatprep.subr.mxu0 0.0
    %572 = vmatpush1.msra.mxu0 %v70
    %573 = vmatprep.subr.mxu0 0.0
    %574 = vmatpush1.msra.mxu0 %v73
    %575 = vmatprep.subr.mxu0 0.0
    %576 = vmatpush1.msra.mxu0 %v76
    %577 = vmatprep.subr.mxu0 0.0
    %578 = vmatpush1.msra.mxu0 %v79
    %579 = vmatprep.subr.mxu0 0.0
    %580 = vmatpush1.msra.mxu0 %v82
    %581 = vmatprep.subr.mxu0 0.0
    %582 = vmatpush1.msra.mxu0 %v85
    %583 = vmatprep.subr.mxu0 0.0
    %584 = vmatpush1.msra.mxu0 %v88
    %585 = vmatprep.subr.mxu0 0.0
    %586 = vmatpush1.msra.mxu0 %v91
    %587 = vmatprep.subr.mxu0 0.0
    %588 = vmatpush1.msra.mxu0 %v94
    %589 = vmatprep.subr.mxu0 0.0
    %590 = vmatpush1.msra.mxu0 %v97
    %591 = vmatprep.subr.mxu0 0.0
    %592 = vmatpush1.msra.mxu0 %v100
    %593 = vmatprep.subr.mxu0 0.0
    %594 = vmatpush1.msra.mxu0 %v103
    %595 = vmatprep.subr.mxu0 0.0
    %596 = vmatpush1.msra.mxu0 %v106
    %597 = vmatprep.subr.mxu0 0.0
    %598 = vmatpush1.msra.mxu0 %v109
    %599 = vmatprep.subr.mxu0 0.0
    %600 = vmatpush1.msra.mxu0 %v112
    %601 = vmatprep.subr.mxu0 0.0
    %602 = vmatpush1.msra.mxu0 0.0
    %603 = vmatprep.subr.mxu0 0.0
    %604 = vmatpush1.msra.mxu0 0.0
    %605 = vmatprep.subr.mxu0 0.0
    %606 = vmatpush1.msra.mxu0 0.0
    %607 = vmatprep.subr.mxu0 0.0
    %608 = vmatpush1.msra.mxu0 0.0
    %609 = vmatprep.subr.mxu0 0.0
    %610 = vmatpush1.msra.mxu0 0.0
    %611 = vmatprep.subr.mxu0 0.0
    %612 = vmatpush1.msra.mxu0 0.0
    %613 = vmatprep.subr.mxu0 0.0
    %614 = vmatpush1.msra.mxu0 0.0
    %615 = vmatprep.subr.mxu0 0.0
    %616 = vmatpush1.msra.mxu0 0.0
    %617 = vmatprep.subr.mxu0 0.0
    %618 = vmatpush1.msra.mxu0 0.0
    %619 = vmatprep.subr.mxu0 0.0
    %620 = vmatpush1.msra.mxu0 0.0
    %621 = vmatprep.subr.mxu0 0.0
    %622 = vmatpush1.msra.mxu0 0.0
    %623 = vmatprep.subr.mxu0 0.0
    %624 = vmatpush1.msra.mxu0 0.0
    %625 = vmatprep.subr.mxu0 0.0
    %626 = vmatpush1.msra.mxu0 0.0
    %627 = vmatprep.subr.mxu0 0.0
    %628 = vmatpush1.msra.mxu0 0.0
    %629 = vmatprep.subr.mxu0 0.0
    %630 = vmatpush1.msra.mxu0 0.0
    %631 = vmatprep.subr.mxu0 0.0
    %632 = vmatpush1.msra.mxu0 0.0
    %633 = vmatprep.mubr.f32.mxu0 0.0
    %634 = vmatmul.mubr.f32.gmra.mrb[0].mxu0 %v497
    %v635 = vpop.f32.mrb[0].mxu0
    %v636 = vadd.f32 %v125, %v635
    %v637 = vpop.f32.mrb[0].mxu0
    %638 = vdwg.mxu0
    %639 = vmatprep.subr.mxu0 %v271
    %640 = vmatpush1.msra.mxu0 %v270
    %641 = vmatprep.subr.mxu0 %v274
    %642 = vmatpush1.msra.mxu0 %v273
    %643 = vmatprep.subr.mxu0 %v277
    %644 = vmatpush1.msra.mxu0 %v276
    %645 = vmatprep.subr.mxu0 %v280
    %646 = vmatpush1.msra.mxu0 %v279
    %647 = vmatprep.subr.mxu0 %v283
    %648 = vmatpush1.msra.mxu0 %v282
    %649 = vmatprep.subr.mxu0 %v286
    %650 = vmatpush1.msra.mxu0 %v285
    %651 = vmatprep.subr.mxu0 %v289
    %652 = vmatpush1.msra.mxu0 %v288
    %653 = vmatprep.subr.mxu0 %v292
    %654 = vmatpush1.msra.mxu0 %v291
    %655 = vmatprep.subr.mxu0 %v295
    %656 = vmatpush1.msra.mxu0 %v294
    %657 = vmatprep.subr.mxu0 %v298
    %658 = vmatpush1.msra.mxu0 %v297
    %659 = vmatprep.subr.mxu0 %v301
    %660 = vmatpush1.msra.mxu0 %v300
    %661 = vmatprep.subr.mxu0 %v304
    %662 = vmatpush1.msra.mxu0 %v303
    %663 = vmatprep.subr.mxu0 %v307
    %664 = vmatpush1.msra.mxu0 %v306
    %665 = vmatprep.subr.mxu0 %v310
    %666 = vmatpush1.msra.mxu0 %v309
    %667 = vmatprep.subr.mxu0 %v313
    %668 = vmatpush1.msra.mxu0 %v312
    %669 = vmatprep.subr.mxu0 %v316
    %670 = vmatpush1.msra.mxu0 %v315
    %671 = vmatprep.subr.mxu0 0.0
    %672 = vmatpush1.msra.mxu0 0.0
    %673 = vmatprep.subr.mxu0 0.0
    %674 = vmatpush1.msra.mxu0 0.0
    %675 = vmatprep.subr.mxu0 0.0
    %676 = vmatpush1.msra.mxu0 0.0
    %677 = vmatprep.subr.mxu0 0.0
    %678 = vmatpush1.msra.mxu0 0.0
    %679 = vmatprep.subr.mxu0 0.0
    %680 = vmatpush1.msra.mxu0 0.0
    %681 = vmatprep.subr.mxu0 0.0
    %682 = vmatpush1.msra.mxu0 0.0
    %683 = vmatprep.subr.mxu0 0.0
    %684 = vmatpush1.msra.mxu0 0.0
    %685 = vmatprep.subr.mxu0 0.0
    %686 = vmatpush1.msra.mxu0 0.0
    %687 = vmatprep.subr.mxu0 0.0
    %688 = vmatpush1.msra.mxu0 0.0
    %689 = vmatprep.subr.mxu0 0.0
    %690 = vmatpush1.msra.mxu0 0.0
    %691 = vmatprep.subr.mxu0 0.0
    %692 = vmatpush1.msra.mxu0 0.0
    %693 = vmatprep.subr.mxu0 0.0
    %694 = vmatpush1.msra.mxu0 0.0
    %695 = vmatprep.subr.mxu0 0.0
    %696 = vmatpush1.msra.mxu0 0.0
    %697 = vmatprep.subr.mxu0 0.0
    %698 = vmatpush1.msra.mxu0 0.0
    %699 = vmatprep.subr.mxu0 0.0
    %700 = vmatpush1.msra.mxu0 0.0
    %701 = vmatprep.subr.mxu0 0.0
    %702 = vmatpush1.msra.mxu0 0.0
    %703 = vmatprep.mubr.f32.mxu0 0.0
    %704 = vmatmul.mubr.f32.gmra.mrb[0].mxu0 %v495
    %v705 = vpop.f32.mrb[0].mxu0
    %v706 = vadd.f32 %v322, %v705
    %v707 = vpop.f32.mrb[0].mxu0
    %v708 = vadd.f32 %v326, %v707
    %709 = vdwg.mxu0
    %710 = vmatprep.subr.mxu0 0.0
    %711 = vmatpush1.msra.mxu0 %v272
    %712 = vmatprep.subr.mxu0 0.0
    %713 = vmatpush1.msra.mxu0 %v275
    %714 = vmatprep.subr.mxu0 0.0
    %715 = vmatpush1.msra.mxu0 %v278
    %716 = vmatprep.subr.mxu0 0.0
    %717 = vmatpush1.msra.mxu0 %v281
    %718 = vmatprep.subr.mxu0 0.0
    %719 = vmatpush1.msra.mxu0 %v284
    %720 = vmatprep.subr.mxu0 0.0
    %721 = vmatpush1.msra.mxu0 %v287
    %722 = vmatprep.subr.mxu0 0.0
    %723 = vmatpush1.msra.mxu0 %v290
    %724 = vmatprep.subr.mxu0 0.0
    %725 = vmatpush1.msra.mxu0 %v293
    %726 = vmatprep.subr.mxu0 0.0
    %727 = vmatpush1.msra.mxu0 %v296
    %728 = vmatprep.subr.mxu0 0.0
    %729 = vmatpush1.msra.mxu0 %v299
    %730 = vmatprep.subr.mxu0 0.0
    %731 = vmatpush1.msra.mxu0 %v302
    %732 = vmatprep.subr.mxu0 0.0
    %733 = vmatpush1.msra.mxu0 %v305
    %734 = vmatprep.subr.mxu0 0.0
    %735 = vmatpush1.msra.mxu0 %v308
    %736 = vmatprep.subr.mxu0 0.0
    %737 = vmatpush1.msra.mxu0 %v311
    %738 = vmatprep.subr.mxu0 0.0
    %739 = vmatpush1.msra.mxu0 %v314
    %740 = vmatprep.subr.mxu0 0.0
    %741 = vmatpush1.msra.mxu0 %v317
    %742 = vmatprep.subr.mxu0 0.0
    %743 = vmatpush1.msra.mxu0 0.0
    %744 = vmatprep.subr.mxu0 0.0
    %745 = vmatpush1.msra.mxu0 0.0
    %746 = vmatprep.subr.mxu0 0.0
    %747 = vmatpush1.msra.mxu0 0.0
    %748 = vmatprep.subr.mxu0 0.0
    %749 = vmatpush1.msra.mxu0 0.0
    %750 = vmatprep.subr.mxu0 0.0
    %751 = vmatpush1.msra.mxu0 0.0
    %752 = vmatprep.subr.mxu0 0.0
    %753 = vmatpush1.msra.mxu0 0.0
    %754 = vmatprep.subr.mxu0 0.0
    %755 = vmatpush1.msra.mxu0 0.0
    %756 = vmatprep.subr.mxu0 0.0
    %757 = vmatpush1.msra.mxu0 0.0
    %758 = vmatprep.subr.mxu0 0.0
    %759 = vmatpush1.msra.mxu0 0.0
    %760 = vmatprep.subr.mxu0 0.0
    %761 = vmatpush1.msra.mxu0 0.0
    %762 = vmatprep.subr.mxu0 0.0
    %763 = vmatpush1.msra.mxu0 0.0
    %764 = vmatprep.subr.mxu0 0.0
    %765 = vmatpush1.msra.mxu0 0.0
    %766 = vmatprep.subr.mxu0 0.0
    %767 = vmatpush1.msra.mxu0 0.0
    %768 = vmatprep.subr.mxu0 0.0
    %769 = vmatpush1.msra.mxu0 0.0
    %770 = vmatprep.subr.mxu0 0.0
    %771 = vmatpush1.msra.mxu0 0.0
    %772 = vmatprep.subr.mxu0 0.0
    %773 = vmatpush1.msra.mxu0 0.0
    %774 = vmatprep.mubr.f32.mxu0 0.0
    %775 = vmatmul.mubr.f32.gmra.mrb[0].mxu0 %v495
    %v776 = vpop.f32.mrb[0].mxu0
    %v777 = vadd.f32 %v330, %v776
    %v778 = vpop.f32.mrb[0].mxu0
    %779 = vdwg.mxu0
    %v780 = vadd.f32 %v565, %v706
    %v781 = vxor.u32 %v780, 2147483648
    %v782 = vmul.f32 %v781, 1.442695
    %v783 = vpow.pop %v782
    %v784 = vadd.f32 %v783, 1.0
    %v785 = vrcp.pop %v784
    %v786 = vmul.f32 1.0, %v785
    %v787 = vadd.f32 %v567, %v708
    %v788 = vxor.u32 %v787, 2147483648
    %v789 = vmul.f32 %v788, 1.442695
    %v790 = vpow.pop %v789
    %v791 = vadd.f32 %v790, 1.0
    %v792 = vrcp.pop %v791
    %v793 = vmul.f32 1.0, %v792
    %v794 = vmul.f32 %v786, %v777
    %v795 = vadd.f32 %v636, %v794
    %v796 = vtanh.pop %v795
    %v797 = vsub.f32 1.0, %v793
    %v798 = vmul.f32 %v797, %v796
    %v799 = vmul.f32 %v793, %v495
    %v800 = vadd.f32 %v798, %v799
    %s801 = scalar_lea.vmem [#allocation2], 16
    %v802 = vld [vmem:[%s801] sm:$0xff]
    %803 = vmatprep.subr.mxu0 %v66
    %804 = vmatpush1.msra.mxu0 %v65
    %805 = vmatprep.subr.mxu0 %v69
    %806 = vmatpush1.msra.mxu0 %v68
    %807 = vmatprep.subr.mxu0 %v72
    %808 = vmatpush1.msra.mxu0 %v71
    %809 = vmatprep.subr.mxu0 %v75
    %810 = vmatpush1.msra.mxu0 %v74
    %811 = vmatprep.subr.mxu0 %v78
    %812 = vmatpush1.msra.mxu0 %v77
    %813 = vmatprep.subr.mxu0 %v81
    %814 = vmatpush1.msra.mxu0 %v80
    %815 = vmatprep.subr.mxu0 %v84
    %816 = vmatpush1.msra.mxu0 %v83
    %817 = vmatprep.subr.mxu0 %v87
    %818 = vmatpush1.msra.mxu0 %v86
    %819 = vmatprep.subr.mxu0 %v90
    %820 = vmatpush1.msra.mxu0 %v89
    %821 = vmatprep.subr.mxu0 %v93
    %822 = vmatpush1.msra.mxu0 %v92
    %823 = vmatprep.subr.mxu0 %v96
    %824 = vmatpush1.msra.mxu0 %v95
    %825 = vmatprep.subr.mxu0 %v99
    %826 = vmatpush1.msra.mxu0 %v98
    %827 = vmatprep.subr.mxu0 %v102
    %828 = vmatpush1.msra.mxu0 %v101
    %829 = vmatprep.subr.mxu0 %v105
    %830 = vmatpush1.msra.mxu0 %v104
    %831 = vmatprep.subr.mxu0 %v108
    %832 = vmatpush1.msra.mxu0 %v107
    %833 = vmatprep.subr.mxu0 %v111
    %834 = vmatpush1.msra.mxu0 %v110
    %835 = vmatprep.subr.mxu0 0.0
    %836 = vmatpush1.msra.mxu0 0.0
    %837 = vmatprep.subr.mxu0 0.0
    %838 = vmatpush1.msra.mxu0 0.0
    %839 = vmatprep.subr.mxu0 0.0
    %840 = vmatpush1.msra.mxu0 0.0
    %841 = vmatprep.subr.mxu0 0.0
    %842 = vmatpush1.msra.mxu0 0.0
    %843 = vmatprep.subr.mxu0 0.0
    %844 = vmatpush1.msra.mxu0 0.0
    %845 = vmatprep.subr.mxu0 0.0
    %846 = vmatpush1.msra.mxu0 0.0
    %847 = vmatprep.subr.mxu0 0.0
    %848 = vmatpush1.msra.mxu0 0.0
    %849 = vmatprep.subr.mxu0 0.0
    %850 = vmatpush1.msra.mxu0 0.0
    %851 = vmatprep.subr.mxu0 0.0
    %852 = vmatpush1.msra.mxu0 0.0
    %853 = vmatprep.subr.mxu0 0.0
    %854 = vmatpush1.msra.mxu0 0.0
    %855 = vmatprep.subr.mxu0 0.0
    %856 = vmatpush1.msra.mxu0 0.0
    %857 = vmatprep.subr.mxu0 0.0
    %858 = vmatpush1.msra.mxu0 0.0
    %859 = vmatprep.subr.mxu0 0.0
    %860 = vmatpush1.msra.mxu0 0.0
    %861 = vmatprep.subr.mxu0 0.0
    %862 = vmatpush1.msra.mxu0 0.0
    %863 = vmatprep.subr.mxu0 0.0
    %864 = vmatpush1.msra.mxu0 0.0
    %865 = vmatprep.subr.mxu0 0.0
    %866 = vmatpush1.msra.mxu0 0.0
    %867 = vmatprep.mubr.f32.mxu0 0.0
    %868 = vmatmul.mubr.f32.gmra.mrb[0].mxu0 %v802
    %v869 = vpop.f32.mrb[0].mxu0
    %v870 = vadd.f32 %v117, %v869
    %v871 = vpop.f32.mrb[0].mxu0
    %v872 = vadd.f32 %v121, %v871
    %873 = vdwg.mxu0
    %874 = vmatprep.subr.mxu0 0.0
    %875 = vmatpush1.msra.mxu0 %v67
    %876 = vmatprep.subr.mxu0 0.0
    %877 = vmatpush1.msra.mxu0 %v70
    %878 = vmatprep.subr.mxu0 0.0
    %879 = vmatpush1.msra.mxu0 %v73
    %880 = vmatprep.subr.mxu0 0.0
    %881 = vmatpush1.msra.mxu0 %v76
    %882 = vmatprep.subr.mxu0 0.0
    %883 = vmatpush1.msra.mxu0 %v79
    %884 = vmatprep.subr.mxu0 0.0
    %885 = vmatpush1.msra.mxu0 %v82
    %886 = vmatprep.subr.mxu0 0.0
    %887 = vmatpush1.msra.mxu0 %v85
    %888 = vmatprep.subr.mxu0 0.0
    %889 = vmatpush1.msra.mxu0 %v88
    %890 = vmatprep.subr.mxu0 0.0
    %891 = vmatpush1.msra.mxu0 %v91
    %892 = vmatprep.subr.mxu0 0.0
    %893 = vmatpush1.msra.mxu0 %v94
    %894 = vmatprep.subr.mxu0 0.0
    %895 = vmatpush1.msra.mxu0 %v97
    %896 = vmatprep.subr.mxu0 0.0
    %897 = vmatpush1.msra.mxu0 %v100
    %898 = vmatprep.subr.mxu0 0.0
    %899 = vmatpush1.msra.mxu0 %v103
    %900 = vmatprep.subr.mxu0 0.0
    %901 = vmatpush1.msra.mxu0 %v106
    %902 = vmatprep.subr.mxu0 0.0
    %903 = vmatpush1.msra.mxu0 %v109
    %904 = vmatprep.subr.mxu0 0.0
    %905 = vmatpush1.msra.mxu0 %v112
    %906 = vmatprep.subr.mxu0 0.0
    %907 = vmatpush1.msra.mxu0 0.0
    %908 = vmatprep.subr.mxu0 0.0
    %909 = vmatpush1.msra.mxu0 0.0
    %910 = vmatprep.subr.mxu0 0.0
    %911 = vmatpush1.msra.mxu0 0.0
    %912 = vmatprep.subr.mxu0 0.0
    %913 = vmatpush1.msra.mxu0 0.0
    %914 = vmatprep.subr.mxu0 0.0
    %915 = vmatpush1.msra.mxu0 0.0
    %916 = vmatprep.subr.mxu0 0.0
    %917 = vmatpush1.msra.mxu0 0.0
    %918 = vmatprep.subr.mxu0 0.0
    %919 = vmatpush1.msra.mxu0 0.0
    %920 = vmatprep.subr.mxu0 0.0
    %921 = vmatpush1.msra.mxu0 0.0
    %922 = vmatprep.subr.mxu0 0.0
    %923 = vmatpush1.msra.mxu0 0.0
    %924 = vmatprep.subr.mxu0 0.0
    %925 = vmatpush1.msra.mxu0 0.0
    %926 = vmatprep.subr.mxu0 0.0
    %927 = vmatpush1.msra.mxu0 0.0
    %928 = vmatprep.subr.mxu0 0.0
    %929 = vmatpush1.msra.mxu0 0.0
    %930 = vmatprep.subr.mxu0 0.0
    %931 = vmatpush1.msra.mxu0 0.0
    %932 = vmatprep.subr.mxu0 0.0
    %933 = vmatpush1.msra.mxu0 0.0
    %934 = vmatprep.subr.mxu0 0.0
    %935 = vmatpush1.msra.mxu0 0.0
    %936 = vmatprep.subr.mxu0 0.0
    %937 = vmatpush1.msra.mxu0 0.0
    %938 = vmatprep.mubr.f32.mxu0 0.0
    %939 = vmatmul.mubr.f32.gmra.mrb[0].mxu0 %v802
    %v940 = vpop.f32.mrb[0].mxu0
    %v941 = vadd.f32 %v125, %v940
    %v942 = vpop.f32.mrb[0].mxu0
    %943 = vdwg.mxu0
    %944 = vmatprep.subr.mxu0 %v271
    %945 = vmatpush1.msra.mxu0 %v270
    %946 = vmatprep.subr.mxu0 %v274
    %947 = vmatpush1.msra.mxu0 %v273
    %948 = vmatprep.subr.mxu0 %v277
    %949 = vmatpush1.msra.mxu0 %v276
    %950 = vmatprep.subr.mxu0 %v280
    %951 = vmatpush1.msra.mxu0 %v279
    %952 = vmatprep.subr.mxu0 %v283
    %953 = vmatpush1.msra.mxu0 %v282
    %954 = vmatprep.subr.mxu0 %v286
    %955 = vmatpush1.msra.mxu0 %v285
    %956 = vmatprep.subr.mxu0 %v289
    %957 = vmatpush1.msra.mxu0 %v288
    %958 = vmatprep.subr.mxu0 %v292
    %959 = vmatpush1.msra.mxu0 %v291
    %960 = vmatprep.subr.mxu0 %v295
    %961 = vmatpush1.msra.mxu0 %v294
    %962 = vmatprep.subr.mxu0 %v298
    %963 = vmatpush1.msra.mxu0 %v297
    %964 = vmatprep.subr.mxu0 %v301
    %965 = vmatpush1.msra.mxu0 %v300
    %966 = vmatprep.subr.mxu0 %v304
    %967 = vmatpush1.msra.mxu0 %v303
    %968 = vmatprep.subr.mxu0 %v307
    %969 = vmatpush1.msra.mxu0 %v306
    %970 = vmatprep.subr.mxu0 %v310
    %971 = vmatpush1.msra.mxu0 %v309
    %972 = vmatprep.subr.mxu0 %v313
    %973 = vmatpush1.msra.mxu0 %v312
    %974 = vmatprep.subr.mxu0 %v316
    %975 = vmatpush1.msra.mxu0 %v315
    %976 = vmatprep.subr.mxu0 0.0
    %977 = vmatpush1.msra.mxu0 0.0
    %978 = vmatprep.subr.mxu0 0.0
    %979 = vmatpush1.msra.mxu0 0.0
    %980 = vmatprep.subr.mxu0 0.0
    %981 = vmatpush1.msra.mxu0 0.0
    %982 = vmatprep.subr.mxu0 0.0
    %983 = vmatpush1.msra.mxu0 0.0
    %984 = vmatprep.subr.mxu0 0.0
    %985 = vmatpush1.msra.mxu0 0.0
    %986 = vmatprep.subr.mxu0 0.0
    %987 = vmatpush1.msra.mxu0 0.0
    %988 = vmatprep.subr.mxu0 0.0
    %989 = vmatpush1.msra.mxu0 0.0
    %990 = vmatprep.subr.mxu0 0.0
    %991 = vmatpush1.msra.mxu0 0.0
    %992 = vmatprep.subr.mxu0 0.0
    %993 = vmatpush1.msra.mxu0 0.0
    %994 = vmatprep.subr.mxu0 0.0
    %995 = vmatpush1.msra.mxu0 0.0
    %996 = vmatprep.subr.mxu0 0.0
    %997 = vmatpush1.msra.mxu0 0.0
    %998 = vmatprep.subr.mxu0 0.0
    %999 = vmatpush1.msra.mxu0 0.0
    %1000 = vmatprep.subr.mxu0 0.0
    %1001 = vmatpush1.msra.mxu0 0.0
    %1002 = vmatprep.subr.mxu0 0.0
    %1003 = vmatpush1.msra.mxu0 0.0
    %1004 = vmatprep.subr.mxu0 0.0
    %1005 = vmatpush1.msra.mxu0 0.0
    %1006 = vmatprep.subr.mxu0 0.0
    %1007 = vmatpush1.msra.mxu0 0.0
    %1008 = vmatprep.mubr.f32.mxu0 0.0
    %1009 = vmatmul.mubr.f32.gmra.mrb[0].mxu0 %v800
    %v1010 = vpop.f32.mrb[0].mxu0
    %v1011 = vadd.f32 %v322, %v1010
    %v1012 = vpop.f32.mrb[0].mxu0
    %v1013 = vadd.f32 %v326, %v1012
    %1014 = vdwg.mxu0
    %1015 = vmatprep.subr.mxu0 0.0
    %1016 = vmatpush1.msra.mxu0 %v272
    %1017 = vmatprep.subr.mxu0 0.0
    %1018 = vmatpush1.msra.mxu0 %v275
    %1019 = vmatprep.subr.mxu0 0.0
    %1020 = vmatpush1.msra.mxu0 %v278
    %1021 = vmatprep.subr.mxu0 0.0
    %1022 = vmatpush1.msra.mxu0 %v281
    %1023 = vmatprep.subr.mxu0 0.0
    %1024 = vmatpush1.msra.mxu0 %v284
    %1025 = vmatprep.subr.mxu0 0.0
    %1026 = vmatpush1.msra.mxu0 %v287
    %1027 = vmatprep.subr.mxu0 0.0
    %1028 = vmatpush1.msra.mxu0 %v290
    %1029 = vmatprep.subr.mxu0 0.0
    %1030 = vmatpush1.msra.mxu0 %v293
    %1031 = vmatprep.subr.mxu0 0.0
    %1032 = vmatpush1.msra.mxu0 %v296
    %1033 = vmatprep.subr.mxu0 0.0
    %1034 = vmatpush1.msra.mxu0 %v299
    %1035 = vmatprep.subr.mxu0 0.0
    %1036 = vmatpush1.msra.mxu0 %v302
    %1037 = vmatprep.subr.mxu0 0.0
    %1038 = vmatpush1.msra.mxu0 %v305
    %1039 = vmatprep.subr.mxu0 0.0
    %1040 = vmatpush1.msra.mxu0 %v308
    %1041 = vmatprep.subr.mxu0 0.0
    %1042 = vmatpush1.msra.mxu0 %v311
    %1043 = vmatprep.subr.mxu0 0.0
    %1044 = vmatpush1.msra.mxu0 %v314
    %1045 = vmatprep.subr.mxu0 0.0
    %1046 = vmatpush1.msra.mxu0 %v317
    %1047 = vmatprep.subr.mxu0 0.0
    %1048 = vmatpush1.msra.mxu0 0.0
    %1049 = vmatprep.subr.mxu0 0.0
    %1050 = vmatpush1.msra.mxu0 0.0
    %1051 = vmatprep.subr.mxu0 0.0
    %1052 = vmatpush1.msra.mxu0 0.0
    %1053 = vmatprep.subr.mxu0 0.0
    %1054 = vmatpush1.msra.mxu0 0.0
    %1055 = vmatprep.subr.mxu0 0.0
    %1056 = vmatpush1.msra.mxu0 0.0
    %1057 = vmatprep.subr.mxu0 0.0
    %1058 = vmatpush1.msra.mxu0 0.0
    %1059 = vmatprep.subr.mxu0 0.0
    %1060 = vmatpush1.msra.mxu0 0.0
    %1061 = vmatprep.subr.mxu0 0.0
    %1062 = vmatpush1.msra.mxu0 0.0
    %1063 = vmatprep.subr.mxu0 0.0
    %1064 = vmatpush1.msra.mxu0 0.0
    %1065 = vmatprep.subr.mxu0 0.0
    %1066 = vmatpush1.msra.mxu0 0.0
    %1067 = vmatprep.subr.mxu0 0.0
    %1068 = vmatpush1.msra.mxu0 0.0
    %1069 = vmatprep.subr.mxu0 0.0
    %1070 = vmatpush1.msra.mxu0 0.0
    %1071 = vmatprep.subr.mxu0 0.0
    %1072 = vmatpush1.msra.mxu0 0.0
    %1073 = vmatprep.subr.mxu0 0.0
    %1074 = vmatpush1.msra.mxu0 0.0
    %1075 = vmatprep.subr.mxu0 0.0
    %1076 = vmatpush1.msra.mxu0 0.0
    %1077 = vmatprep.subr.mxu0 0.0
    %1078 = vmatpush1.msra.mxu0 0.0
    %1079 = vmatprep.mubr.f32.mxu0 0.0
    %1080 = vmatmul.mubr.f32.gmra.mrb[0].mxu0 %v800
    %v1081 = vpop.f32.mrb[0].mxu0
    %v1082 = vadd.f32 %v330, %v1081
    %v1083 = vpop.f32.mrb[0].mxu0
    %1084 = vdwg.mxu0
    %v1085 = vadd.f32 %v870, %v1011
    %v1086 = vxor.u32 %v1085, 2147483648
    %v1087 = vmul.f32 %v1086, 1.442695
    %v1088 = vpow.pop %v1087
    %v1089 = vadd.f32 %v1088, 1.0
    %v1090 = vrcp.pop %v1089
    %v1091 = vmul.f32 1.0, %v1090
    %v1092 = vadd.f32 %v872, %v1013
    %v1093 = vxor.u32 %v1092, 2147483648
    %v1094 = vmul.f32 %v1093, 1.442695
    %v1095 = vpow.pop %v1094
    %v1096 = vadd.f32 %v1095, 1.0
    %v1097 = vrcp.pop %v1096
    %v1098 = vmul.f32 1.0, %v1097
    %v1099 = vmul.f32 %v1091, %v1082
    %v1100 = vadd.f32 %v941, %v1099
    %v1101 = vtanh.pop %v1100
    %v1102 = vsub.f32 1.0, %v1098
    %v1103 = vmul.f32 %v1102, %v1101
    %v1104 = vmul.f32 %v1098, %v800
    %v1105 = vadd.f32 %v1103, %v1104
    %s1106 = scalar_lea.vmem [#allocation2], 24
    %v1107 = vld [vmem:[%s1106] sm:$0xff]
    %1108 = vmatprep.subr.mxu0 %v66
    %1109 = vmatpush1.msra.mxu0 %v65
    %1110 = vmatprep.subr.mxu0 %v69
    %1111 = vmatpush1.msra.mxu0 %v68
    %1112 = vmatprep.subr.mxu0 %v72
    %1113 = vmatpush1.msra.mxu0 %v71
    %1114 = vmatprep.subr.mxu0 %v75
    %1115 = vmatpush1.msra.mxu0 %v74
    %1116 = vmatprep.subr.mxu0 %v78
    %1117 = vmatpush1.msra.mxu0 %v77
    %1118 = vmatprep.subr.mxu0 %v81
    %1119 = vmatpush1.msra.mxu0 %v80
    %1120 = vmatprep.subr.mxu0 %v84
    %1121 = vmatpush1.msra.mxu0 %v83
    %1122 = vmatprep.subr.mxu0 %v87
    %1123 = vmatpush1.msra.mxu0 %v86
    %1124 = vmatprep.subr.mxu0 %v90
    %1125 = vmatpush1.msra.mxu0 %v89
    %1126 = vmatprep.subr.mxu0 %v93
    %1127 = vmatpush1.msra.mxu0 %v92
    %1128 = vmatprep.subr.mxu0 %v96
    %1129 = vmatpush1.msra.mxu0 %v95
    %1130 = vmatprep.subr.mxu0 %v99
    %1131 = vmatpush1.msra.mxu0 %v98
    %1132 = vmatprep.subr.mxu0 %v102
    %1133 = vmatpush1.msra.mxu0 %v101
    %1134 = vmatprep.subr.mxu0 %v105
    %1135 = vmatpush1.msra.mxu0 %v104
    %1136 = vmatprep.subr.mxu0 %v108
    %1137 = vmatpush1.msra.mxu0 %v107
    %1138 = vmatprep.subr.mxu0 %v111
    %1139 = vmatpush1.msra.mxu0 %v110
    %1140 = vmatprep.subr.mxu0 0.0
    %1141 = vmatpush1.msra.mxu0 0.0
    %1142 = vmatprep.subr.mxu0 0.0
    %1143 = vmatpush1.msra.mxu0 0.0
    %1144 = vmatprep.subr.mxu0 0.0
    %1145 = vmatpush1.msra.mxu0 0.0
    %1146 = vmatprep.subr.mxu0 0.0
    %1147 = vmatpush1.msra.mxu0 0.0
    %1148 = vmatprep.subr.mxu0 0.0
    %1149 = vmatpush1.msra.mxu0 0.0
    %1150 = vmatprep.subr.mxu0 0.0
    %1151 = vmatpush1.msra.mxu0 0.0
    %1152 = vmatprep.subr.mxu0 0.0
    %1153 = vmatpush1.msra.mxu0 0.0
    %1154 = vmatprep.subr.mxu0 0.0
    %1155 = vmatpush1.msra.mxu0 0.0
    %1156 = vmatprep.subr.mxu0 0.0
    %1157 = vmatpush1.msra.mxu0 0.0
    %1158 = vmatprep.subr.mxu0 0.0
    %1159 = vmatpush1.msra.mxu0 0.0
    %1160 = vmatprep.subr.mxu0 0.0
    %1161 = vmatpush1.msra.mxu0 0.0
    %1162 = vmatprep.subr.mxu0 0.0
    %1163 = vmatpush1.msra.mxu0 0.0
    %1164 = vmatprep.subr.mxu0 0.0
    %1165 = vmatpush1.msra.mxu0 0.0
    %1166 = vmatprep.subr.mxu0 0.0
    %1167 = vmatpush1.msra.mxu0 0.0
    %1168 = vmatprep.subr.mxu0 0.0
    %1169 = vmatpush1.msra.mxu0 0.0
    %1170 = vmatprep.subr.mxu0 0.0
    %1171 = vmatpush1.msra.mxu0 0.0
    %1172 = vmatprep.mubr.f32.mxu0 0.0
    %1173 = vmatmul.mubr.f32.gmra.mrb[0].mxu0 %v1107
    %v1174 = vpop.f32.mrb[0].mxu0
    %v1175 = vadd.f32 %v117, %v1174
    %v1176 = vpop.f32.mrb[0].mxu0
    %v1177 = vadd.f32 %v121, %v1176
    %1178 = vdwg.mxu0
    %1179 = vmatprep.subr.mxu0 0.0
    %1180 = vmatpush1.msra.mxu0 %v67
    %1181 = vmatprep.subr.mxu0 0.0
    %1182 = vmatpush1.msra.mxu0 %v70
    %1183 = vmatprep.subr.mxu0 0.0
    %1184 = vmatpush1.msra.mxu0 %v73
    %1185 = vmatprep.subr.mxu0 0.0
    %1186 = vmatpush1.msra.mxu0 %v76
    %1187 = vmatprep.subr.mxu0 0.0
    %1188 = vmatpush1.msra.mxu0 %v79
    %1189 = vmatprep.subr.mxu0 0.0
    %1190 = vmatpush1.msra.mxu0 %v82
    %1191 = vmatprep.subr.mxu0 0.0
    %1192 = vmatpush1.msra.mxu0 %v85
    %1193 = vmatprep.subr.mxu0 0.0
    %1194 = vmatpush1.msra.mxu0 %v88
    %1195 = vmatprep.subr.mxu0 0.0
    %1196 = vmatpush1.msra.mxu0 %v91
    %1197 = vmatprep.subr.mxu0 0.0
    %1198 = vmatpush1.msra.mxu0 %v94
    %1199 = vmatprep.subr.mxu0 0.0
    %1200 = vmatpush1.msra.mxu0 %v97
    %1201 = vmatprep.subr.mxu0 0.0
    %1202 = vmatpush1.msra.mxu0 %v100
    %1203 = vmatprep.subr.mxu0 0.0
    %1204 = vmatpush1.msra.mxu0 %v103
    %1205 = vmatprep.subr.mxu0 0.0
    %1206 = vmatpush1.msra.mxu0 %v106
    %1207 = vmatprep.subr.mxu0 0.0
    %1208 = vmatpush1.msra.mxu0 %v109
    %1209 = vmatprep.subr.mxu0 0.0
    %1210 = vmatpush1.msra.mxu0 %v112
    %1211 = vmatprep.subr.mxu0 0.0
    %1212 = vmatpush1.msra.mxu0 0.0
    %1213 = vmatprep.subr.mxu0 0.0
    %1214 = vmatpush1.msra.mxu0 0.0
    %1215 = vmatprep.subr.mxu0 0.0
    %1216 = vmatpush1.msra.mxu0 0.0
    %1217 = vmatprep.subr.mxu0 0.0
    %1218 = vmatpush1.msra.mxu0 0.0
    %1219 = vmatprep.subr.mxu0 0.0
    %1220 = vmatpush1.msra.mxu0 0.0
    %1221 = vmatprep.subr.mxu0 0.0
    %1222 = vmatpush1.msra.mxu0 0.0
    %1223 = vmatprep.subr.mxu0 0.0
    %1224 = vmatpush1.msra.mxu0 0.0
    %1225 = vmatprep.subr.mxu0 0.0
    %1226 = vmatpush1.msra.mxu0 0.0
    %1227 = vmatprep.subr.mxu0 0.0
    %1228 = vmatpush1.msra.mxu0 0.0
    %1229 = vmatprep.subr.mxu0 0.0
    %1230 = vmatpush1.msra.mxu0 0.0
    %1231 = vmatprep.subr.mxu0 0.0
    %1232 = vmatpush1.msra.mxu0 0.0
    %1233 = vmatprep.subr.mxu0 0.0
    %1234 = vmatpush1.msra.mxu0 0.0
    %1235 = vmatprep.subr.mxu0 0.0
    %1236 = vmatpush1.msra.mxu0 0.0
    %1237 = vmatprep.subr.mxu0 0.0
    %1238 = vmatpush1.msra.mxu0 0.0
    %1239 = vmatprep.subr.mxu0 0.0
    %1240 = vmatpush1.msra.mxu0 0.0
    %1241 = vmatprep.subr.mxu0 0.0
    %1242 = vmatpush1.msra.mxu0 0.0
    %1243 = vmatprep.mubr.f32.mxu0 0.0
    %1244 = vmatmul.mubr.f32.gmra.mrb[0].mxu0 %v1107
    %v1245 = vpop.f32.mrb[0].mxu0
    %v1246 = vadd.f32 %v125, %v1245
    %v1247 = vpop.f32.mrb[0].mxu0
    %1248 = vdwg.mxu0
    %1249 = vmatprep.subr.mxu0 %v271
    %1250 = vmatpush1.msra.mxu0 %v270
    %1251 = vmatprep.subr.mxu0 %v274
    %1252 = vmatpush1.msra.mxu0 %v273
    %1253 = vmatprep.subr.mxu0 %v277
    %1254 = vmatpush1.msra.mxu0 %v276
    %1255 = vmatprep.subr.mxu0 %v280
    %1256 = vmatpush1.msra.mxu0 %v279
    %1257 = vmatprep.subr.mxu0 %v283
    %1258 = vmatpush1.msra.mxu0 %v282
    %1259 = vmatprep.subr.mxu0 %v286
    %1260 = vmatpush1.msra.mxu0 %v285
    %1261 = vmatprep.subr.mxu0 %v289
    %1262 = vmatpush1.msra.mxu0 %v288
    %1263 = vmatprep.subr.mxu0 %v292
    %1264 = vmatpush1.msra.mxu0 %v291
    %1265 = vmatprep.subr.mxu0 %v295
    %1266 = vmatpush1.msra.mxu0 %v294
    %1267 = vmatprep.subr.mxu0 %v298
    %1268 = vmatpush1.msra.mxu0 %v297
    %1269 = vmatprep.subr.mxu0 %v301
    %1270 = vmatpush1.msra.mxu0 %v300
    %1271 = vmatprep.subr.mxu0 %v304
    %1272 = vmatpush1.msra.mxu0 %v303
    %1273 = vmatprep.subr.mxu0 %v307
    %1274 = vmatpush1.msra.mxu0 %v306
    %1275 = vmatprep.subr.mxu0 %v310
    %1276 = vmatpush1.msra.mxu0 %v309
    %1277 = vmatprep.subr.mxu0 %v313
    %1278 = vmatpush1.msra.mxu0 %v312
    %1279 = vmatprep.subr.mxu0 %v316
    %1280 = vmatpush1.msra.mxu0 %v315
    %1281 = vmatprep.subr.mxu0 0.0
    %1282 = vmatpush1.msra.mxu0 0.0
    %1283 = vmatprep.subr.mxu0 0.0
    %1284 = vmatpush1.msra.mxu0 0.0
    %1285 = vmatprep.subr.mxu0 0.0
    %1286 = vmatpush1.msra.mxu0 0.0
    %1287 = vmatprep.subr.mxu0 0.0
    %1288 = vmatpush1.msra.mxu0 0.0
    %1289 = vmatprep.subr.mxu0 0.0
    %1290 = vmatpush1.msra.mxu0 0.0
    %1291 = vmatprep.subr.mxu0 0.0
    %1292 = vmatpush1.msra.mxu0 0.0
    %1293 = vmatprep.subr.mxu0 0.0
    %1294 = vmatpush1.msra.mxu0 0.0
    %1295 = vmatprep.subr.mxu0 0.0
    %1296 = vmatpush1.msra.mxu0 0.0
    %1297 = vmatprep.subr.mxu0 0.0
    %1298 = vmatpush1.msra.mxu0 0.0
    %1299 = vmatprep.subr.mxu0 0.0
    %1300 = vmatpush1.msra.mxu0 0.0
    %1301 = vmatprep.subr.mxu0 0.0
    %1302 = vmatpush1.msra.mxu0 0.0
    %1303 = vmatprep.subr.mxu0 0.0
    %1304 = vmatpush1.msra.mxu0 0.0
    %1305 = vmatprep.subr.mxu0 0.0
    %1306 = vmatpush1.msra.mxu0 0.0
    %1307 = vmatprep.subr.mxu0 0.0
    %1308 = vmatpush1.msra.mxu0 0.0
    %1309 = vmatprep.subr.mxu0 0.0
    %1310 = vmatpush1.msra.mxu0 0.0
    %1311 = vmatprep.subr.mxu0 0.0
    %1312 = vmatpush1.msra.mxu0 0.0
    %1313 = vmatprep.mubr.f32.mxu0 0.0
    %1314 = vmatmul.mubr.f32.gmra.mrb[0].mxu0 %v1105
    %v1315 = vpop.f32.mrb[0].mxu0
    %v1316 = vadd.f32 %v322, %v1315
    %v1317 = vpop.f32.mrb[0].mxu0
    %v1318 = vadd.f32 %v326, %v1317
    %1319 = vdwg.mxu0
    %1320 = vmatprep.subr.mxu0 0.0
    %1321 = vmatpush1.msra.mxu0 %v272
    %1322 = vmatprep.subr.mxu0 0.0
    %1323 = vmatpush1.msra.mxu0 %v275
    %1324 = vmatprep.subr.mxu0 0.0
    %1325 = vmatpush1.msra.mxu0 %v278
    %1326 = vmatprep.subr.mxu0 0.0
    %1327 = vmatpush1.msra.mxu0 %v281
    %1328 = vmatprep.subr.mxu0 0.0
    %1329 = vmatpush1.msra.mxu0 %v284
    %1330 = vmatprep.subr.mxu0 0.0
    %1331 = vmatpush1.msra.mxu0 %v287
    %1332 = vmatprep.subr.mxu0 0.0
    %1333 = vmatpush1.msra.mxu0 %v290
    %1334 = vmatprep.subr.mxu0 0.0
    %1335 = vmatpush1.msra.mxu0 %v293
    %1336 = vmatprep.subr.mxu0 0.0
    %1337 = vmatpush1.msra.mxu0 %v296
    %1338 = vmatprep.subr.mxu0 0.0
    %1339 = vmatpush1.msra.mxu0 %v299
    %1340 = vmatprep.subr.mxu0 0.0
    %1341 = vmatpush1.msra.mxu0 %v302
    %1342 = vmatprep.subr.mxu0 0.0
    %1343 = vmatpush1.msra.mxu0 %v305
    %1344 = vmatprep.subr.mxu0 0.0
    %1345 = vmatpush1.msra.mxu0 %v308
    %1346 = vmatprep.subr.mxu0 0.0
    %1347 = vmatpush1.msra.mxu0 %v311
    %1348 = vmatprep.subr.mxu0 0.0
    %1349 = vmatpush1.msra.mxu0 %v314
    %1350 = vmatprep.subr.mxu0 0.0
    %1351 = vmatpush1.msra.mxu0 %v317
    %1352 = vmatprep.subr.mxu0 0.0
    %1353 = vmatpush1.msra.mxu0 0.0
    %1354 = vmatprep.subr.mxu0 0.0
    %1355 = vmatpush1.msra.mxu0 0.0
    %1356 = vmatprep.subr.mxu0 0.0
    %1357 = vmatpush1.msra.mxu0 0.0
    %1358 = vmatprep.subr.mxu0 0.0
    %1359 = vmatpush1.msra.mxu0 0.0
    %1360 = vmatprep.subr.mxu0 0.0
    %1361 = vmatpush1.msra.mxu0 0.0
    %1362 = vmatprep.subr.mxu0 0.0
    %1363 = vmatpush1.msra.mxu0 0.0
    %1364 = vmatprep.subr.mxu0 0.0
    %1365 = vmatpush1.msra.mxu0 0.0
    %1366 = vmatprep.subr.mxu0 0.0
    %1367 = vmatpush1.msra.mxu0 0.0
    %1368 = vmatprep.subr.mxu0 0.0
    %1369 = vmatpush1.msra.mxu0 0.0
    %1370 = vmatprep.subr.mxu0 0.0
    %1371 = vmatpush1.msra.mxu0 0.0
    %1372 = vmatprep.subr.mxu0 0.0
    %1373 = vmatpush1.msra.mxu0 0.0
    %1374 = vmatprep.subr.mxu0 0.0
    %1375 = vmatpush1.msra.mxu0 0.0
    %1376 = vmatprep.subr.mxu0 0.0
    %1377 = vmatpush1.msra.mxu0 0.0
    %1378 = vmatprep.subr.mxu0 0.0
    %1379 = vmatpush1.msra.mxu0 0.0
    %1380 = vmatprep.subr.mxu0 0.0
    %1381 = vmatpush1.msra.mxu0 0.0
    %1382 = vmatprep.subr.mxu0 0.0
    %1383 = vmatpush1.msra.mxu0 0.0
    %1384 = vmatprep.mubr.f32.mxu0 0.0
    %1385 = vmatmul.mubr.f32.gmra.mrb[0].mxu0 %v1105
    %v1386 = vpop.f32.mrb[0].mxu0
    %v1387 = vadd.f32 %v330, %v1386
    %v1388 = vpop.f32.mrb[0].mxu0
    %1389 = vdwg.mxu0
    %v1390 = vadd.f32 %v1175, %v1316
    %v1391 = vxor.u32 %v1390, 2147483648
    %v1392 = vmul.f32 %v1391, 1.442695
    %v1393 = vpow.pop %v1392
    %v1394 = vadd.f32 %v1393, 1.0
    %v1395 = vrcp.pop %v1394
    %v1396 = vmul.f32 1.0, %v1395
    %v1397 = vadd.f32 %v1177, %v1318
    %v1398 = vxor.u32 %v1397, 2147483648
    %v1399 = vmul.f32 %v1398, 1.442695
    %v1400 = vpow.pop %v1399
    %v1401 = vadd.f32 %v1400, 1.0
    %v1402 = vrcp.pop %v1401
    %v1403 = vmul.f32 1.0, %v1402
    %v1404 = vmul.f32 %v1396, %v1387
    %v1405 = vadd.f32 %v1246, %v1404
    %v1406 = vtanh.pop %v1405
    %v1407 = vsub.f32 1.0, %v1403
    %v1408 = vmul.f32 %v1407, %v1406
    %v1409 = vmul.f32 %v1403, %v1105
    %v1410 = vadd.f32 %v1408, %v1409
    %s1411 = scalar_lea.vmem [#allocation2], 32
    %v1412 = vld [vmem:[%s1411] sm:$0xff]
    %1413 = vmatprep.subr.mxu0 %v66
    %1414 = vmatpush1.msra.mxu0 %v65
    %1415 = vmatprep.subr.mxu0 %v69
    %1416 = vmatpush1.msra.mxu0 %v68
    %1417 = vmatprep.subr.mxu0 %v72
    %1418 = vmatpush1.msra.mxu0 %v71
    %1419 = vmatprep.subr.mxu0 %v75
    %1420 = vmatpush1.msra.mxu0 %v74
    %1421 = vmatprep.subr.mxu0 %v78
    %1422 = vmatpush1.msra.mxu0 %v77
    %1423 = vmatprep.subr.mxu0 %v81
    %1424 = vmatpush1.msra.mxu0 %v80
    %1425 = vmatprep.subr.mxu0 %v84
    %1426 = vmatpush1.msra.mxu0 %v83
    %1427 = vmatprep.subr.mxu0 %v87
    %1428 = vmatpush1.msra.mxu0 %v86
    %1429 = vmatprep.subr.mxu0 %v90
    %1430 = vmatpush1.msra.mxu0 %v89
    %1431 = vmatprep.subr.mxu0 %v93
    %1432 = vmatpush1.msra.mxu0 %v92
    %1433 = vmatprep.subr.mxu0 %v96
    %1434 = vmatpush1.msra.mxu0 %v95
    %1435 = vmatprep.subr.mxu0 %v99
    %1436 = vmatpush1.msra.mxu0 %v98
    %1437 = vmatprep.subr.mxu0 %v102
    %1438 = vmatpush1.msra.mxu0 %v101
    %1439 = vmatprep.subr.mxu0 %v105
    %1440 = vmatpush1.msra.mxu0 %v104
    %1441 = vmatprep.subr.mxu0 %v108
    %1442 = vmatpush1.msra.mxu0 %v107
    %1443 = vmatprep.subr.mxu0 %v111
    %1444 = vmatpush1.msra.mxu0 %v110
    %1445 = vmatprep.subr.mxu0 0.0
    %1446 = vmatpush1.msra.mxu0 0.0
    %1447 = vmatprep.subr.mxu0 0.0
    %1448 = vmatpush1.msra.mxu0 0.0
    %1449 = vmatprep.subr.mxu0 0.0
    %1450 = vmatpush1.msra.mxu0 0.0
    %1451 = vmatprep.subr.mxu0 0.0
    %1452 = vmatpush1.msra.mxu0 0.0
    %1453 = vmatprep.subr.mxu0 0.0
    %1454 = vmatpush1.msra.mxu0 0.0
    %1455 = vmatprep.subr.mxu0 0.0
    %1456 = vmatpush1.msra.mxu0 0.0
    %1457 = vmatprep.subr.mxu0 0.0
    %1458 = vmatpush1.msra.mxu0 0.0
    %1459 = vmatprep.subr.mxu0 0.0
    %1460 = vmatpush1.msra.mxu0 0.0
    %1461 = vmatprep.subr.mxu0 0.0
    %1462 = vmatpush1.msra.mxu0 0.0
    %1463 = vmatprep.subr.mxu0 0.0
    %1464 = vmatpush1.msra.mxu0 0.0
    %1465 = vmatprep.subr.mxu0 0.0
    %1466 = vmatpush1.msra.mxu0 0.0
    %1467 = vmatprep.subr.mxu0 0.0
    %1468 = vmatpush1.msra.mxu0 0.0
    %1469 = vmatprep.subr.mxu0 0.0
    %1470 = vmatpush1.msra.mxu0 0.0
    %1471 = vmatprep.subr.mxu0 0.0
    %1472 = vmatpush1.msra.mxu0 0.0
    %1473 = vmatprep.subr.mxu0 0.0
    %1474 = vmatpush1.msra.mxu0 0.0
    %1475 = vmatprep.subr.mxu0 0.0
    %1476 = vmatpush1.msra.mxu0 0.0
    %1477 = vmatprep.mubr.f32.mxu0 0.0
    %1478 = vmatmul.mubr.f32.gmra.mrb[0].mxu0 %v1412
    %v1479 = vpop.f32.mrb[0].mxu0
    %v1480 = vadd.f32 %v117, %v1479
    %v1481 = vpop.f32.mrb[0].mxu0
    %v1482 = vadd.f32 %v121, %v1481
    %1483 = vdwg.mxu0
    %1484 = vmatprep.subr.mxu0 0.0
    %1485 = vmatpush1.msra.mxu0 %v67
    %1486 = vmatprep.subr.mxu0 0.0
    %1487 = vmatpush1.msra.mxu0 %v70
    %1488 = vmatprep.subr.mxu0 0.0
    %1489 = vmatpush1.msra.mxu0 %v73
    %1490 = vmatprep.subr.mxu0 0.0
    %1491 = vmatpush1.msra.mxu0 %v76
    %1492 = vmatprep.subr.mxu0 0.0
    %1493 = vmatpush1.msra.mxu0 %v79
    %1494 = vmatprep.subr.mxu0 0.0
    %1495 = vmatpush1.msra.mxu0 %v82
    %1496 = vmatprep.subr.mxu0 0.0
    %1497 = vmatpush1.msra.mxu0 %v85
    %1498 = vmatprep.subr.mxu0 0.0
    %1499 = vmatpush1.msra.mxu0 %v88
    %1500 = vmatprep.subr.mxu0 0.0
    %1501 = vmatpush1.msra.mxu0 %v91
    %1502 = vmatprep.subr.mxu0 0.0
    %1503 = vmatpush1.msra.mxu0 %v94
    %1504 = vmatprep.subr.mxu0 0.0
    %1505 = vmatpush1.msra.mxu0 %v97
    %1506 = vmatprep.subr.mxu0 0.0
    %1507 = vmatpush1.msra.mxu0 %v100
    %1508 = vmatprep.subr.mxu0 0.0
    %1509 = vmatpush1.msra.mxu0 %v103
    %1510 = vmatprep.subr.mxu0 0.0
    %1511 = vmatpush1.msra.mxu0 %v106
    %1512 = vmatprep.subr.mxu0 0.0
    %1513 = vmatpush1.msra.mxu0 %v109
    %1514 = vmatprep.subr.mxu0 0.0
    %1515 = vmatpush1.msra.mxu0 %v112
    %1516 = vmatprep.subr.mxu0 0.0
    %1517 = vmatpush1.msra.mxu0 0.0
    %1518 = vmatprep.subr.mxu0 0.0
    %1519 = vmatpush1.msra.mxu0 0.0
    %1520 = vmatprep.subr.mxu0 0.0
    %1521 = vmatpush1.msra.mxu0 0.0
    %1522 = vmatprep.subr.mxu0 0.0
    %1523 = vmatpush1.msra.mxu0 0.0
    %1524 = vmatprep.subr.mxu0 0.0
    %1525 = vmatpush1.msra.mxu0 0.0
    %1526 = vmatprep.subr.mxu0 0.0
    %1527 = vmatpush1.msra.mxu0 0.0
    %1528 = vmatprep.subr.mxu0 0.0
    %1529 = vmatpush1.msra.mxu0 0.0
    %1530 = vmatprep.subr.mxu0 0.0
    %1531 = vmatpush1.msra.mxu0 0.0
    %1532 = vmatprep.subr.mxu0 0.0
    %1533 = vmatpush1.msra.mxu0 0.0
    %1534 = vmatprep.subr.mxu0 0.0
    %1535 = vmatpush1.msra.mxu0 0.0
    %1536 = vmatprep.subr.mxu0 0.0
    %1537 = vmatpush1.msra.mxu0 0.0
    %1538 = vmatprep.subr.mxu0 0.0
    %1539 = vmatpush1.msra.mxu0 0.0
    %1540 = vmatprep.subr.mxu0 0.0
    %1541 = vmatpush1.msra.mxu0 0.0
    %1542 = vmatprep.subr.mxu0 0.0
    %1543 = vmatpush1.msra.mxu0 0.0
    %1544 = vmatprep.subr.mxu0 0.0
    %1545 = vmatpush1.msra.mxu0 0.0
    %1546 = vmatprep.subr.mxu0 0.0
    %1547 = vmatpush1.msra.mxu0 0.0
    %1548 = vmatprep.mubr.f32.mxu0 0.0
    %1549 = vmatmul.mubr.f32.gmra.mrb[0].mxu0 %v1412
    %v1550 = vpop.f32.mrb[0].mxu0
    %v1551 = vadd.f32 %v125, %v1550
    %v1552 = vpop.f32.mrb[0].mxu0
    %1553 = vdwg.mxu0
    %1554 = vmatprep.subr.mxu0 %v271
    %1555 = vmatpush1.msra.mxu0 %v270
    %1556 = vmatprep.subr.mxu0 %v274
    %1557 = vmatpush1.msra.mxu0 %v273
    %1558 = vmatprep.subr.mxu0 %v277
    %1559 = vmatpush1.msra.mxu0 %v276
    %1560 = vmatprep.subr.mxu0 %v280
    %1561 = vmatpush1.msra.mxu0 %v279
    %1562 = vmatprep.subr.mxu0 %v283
    %1563 = vmatpush1.msra.mxu0 %v282
    %1564 = vmatprep.subr.mxu0 %v286
    %1565 = vmatpush1.msra.mxu0 %v285
    %1566 = vmatprep.subr.mxu0 %v289
    %1567 = vmatpush1.msra.mxu0 %v288
    %1568 = vmatprep.subr.mxu0 %v292
    %1569 = vmatpush1.msra.mxu0 %v291
    %1570 = vmatprep.subr.mxu0 %v295
    %1571 = vmatpush1.msra.mxu0 %v294
    %1572 = vmatprep.subr.mxu0 %v298
    %1573 = vmatpush1.msra.mxu0 %v297
    %1574 = vmatprep.subr.mxu0 %v301
    %1575 = vmatpush1.msra.mxu0 %v300
    %1576 = vmatprep.subr.mxu0 %v304
    %1577 = vmatpush1.msra.mxu0 %v303
    %1578 = vmatprep.subr.mxu0 %v307
    %1579 = vmatpush1.msra.mxu0 %v306
    %1580 = vmatprep.subr.mxu0 %v310
    %1581 = vmatpush1.msra.mxu0 %v309
    %1582 = vmatprep.subr.mxu0 %v313
    %1583 = vmatpush1.msra.mxu0 %v312
    %1584 = vmatprep.subr.mxu0 %v316
    %1585 = vmatpush1.msra.mxu0 %v315
    %1586 = vmatprep.subr.mxu0 0.0
    %1587 = vmatpush1.msra.mxu0 0.0
    %1588 = vmatprep.subr.mxu0 0.0
    %1589 = vmatpush1.msra.mxu0 0.0
    %1590 = vmatprep.subr.mxu0 0.0
    %1591 = vmatpush1.msra.mxu0 0.0
    %1592 = vmatprep.subr.mxu0 0.0
    %1593 = vmatpush1.msra.mxu0 0.0
    %1594 = vmatprep.subr.mxu0 0.0
    %1595 = vmatpush1.msra.mxu0 0.0
    %1596 = vmatprep.subr.mxu0 0.0
    %1597 = vmatpush1.msra.mxu0 0.0
    %1598 = vmatprep.subr.mxu0 0.0
    %1599 = vmatpush1.msra.mxu0 0.0
    %1600 = vmatprep.subr.mxu0 0.0
    %1601 = vmatpush1.msra.mxu0 0.0
    %1602 = vmatprep.subr.mxu0 0.0
    %1603 = vmatpush1.msra.mxu0 0.0
    %1604 = vmatprep.subr.mxu0 0.0
    %1605 = vmatpush1.msra.mxu0 0.0
    %1606 = vmatprep.subr.mxu0 0.0
    %1607 = vmatpush1.msra.mxu0 0.0
    %1608 = vmatprep.subr.mxu0 0.0
    %1609 = vmatpush1.msra.mxu0 0.0
    %1610 = vmatprep.subr.mxu0 0.0
    %1611 = vmatpush1.msra.mxu0 0.0
    %1612 = vmatprep.subr.mxu0 0.0
    %1613 = vmatpush1.msra.mxu0 0.0
    %1614 = vmatprep.subr.mxu0 0.0
    %1615 = vmatpush1.msra.mxu0 0.0
    %1616 = vmatprep.subr.mxu0 0.0
    %1617 = vmatpush1.msra.mxu0 0.0
    %1618 = vmatprep.mubr.f32.mxu0 0.0
    %1619 = vmatmul.mubr.f32.gmra.mrb[0].mxu0 %v1410
    %v1620 = vpop.f32.mrb[0].mxu0
    %v1621 = vadd.f32 %v322, %v1620
    %v1622 = vpop.f32.mrb[0].mxu0
    %v1623 = vadd.f32 %v326, %v1622
    %1624 = vdwg.mxu0
    %1625 = vmatprep.subr.mxu0 0.0
    %1626 = vmatpush1.msra.mxu0 %v272
    %1627 = vmatprep.subr.mxu0 0.0
    %1628 = vmatpush1.msra.mxu0 %v275
    %1629 = vmatprep.subr.mxu0 0.0
    %1630 = vmatpush1.msra.mxu0 %v278
    %1631 = vmatprep.subr.mxu0 0.0
    %1632 = vmatpush1.msra.mxu0 %v281
    %1633 = vmatprep.subr.mxu0 0.0
    %1634 = vmatpush1.msra.mxu0 %v284
    %1635 = vmatprep.subr.mxu0 0.0
    %1636 = vmatpush1.msra.mxu0 %v287
    %1637 = vmatprep.subr.mxu0 0.0
    %1638 = vmatpush1.msra.mxu0 %v290
    %1639 = vmatprep.subr.mxu0 0.0
    %1640 = vmatpush1.msra.mxu0 %v293
    %1641 = vmatprep.subr.mxu0 0.0
    %1642 = vmatpush1.msra.mxu0 %v296
    %1643 = vmatprep.subr.mxu0 0.0
    %1644 = vmatpush1.msra.mxu0 %v299
    %1645 = vmatprep.subr.mxu0 0.0
    %1646 = vmatpush1.msra.mxu0 %v302
    %1647 = vmatprep.subr.mxu0 0.0
    %1648 = vmatpush1.msra.mxu0 %v305
    %1649 = vmatprep.subr.mxu0 0.0
    %1650 = vmatpush1.msra.mxu0 %v308
    %1651 = vmatprep.subr.mxu0 0.0
    %1652 = vmatpush1.msra.mxu0 %v311
    %1653 = vmatprep.subr.mxu0 0.0
    %1654 = vmatpush1.msra.mxu0 %v314
    %1655 = vmatprep.subr.mxu0 0.0
    %1656 = vmatpush1.msra.mxu0 %v317
    %1657 = vmatprep.subr.mxu0 0.0
    %1658 = vmatpush1.msra.mxu0 0.0
    %1659 = vmatprep.subr.mxu0 0.0
    %1660 = vmatpush1.msra.mxu0 0.0
    %1661 = vmatprep.subr.mxu0 0.0
    %1662 = vmatpush1.msra.mxu0 0.0
    %1663 = vmatprep.subr.mxu0 0.0
    %1664 = vmatpush1.msra.mxu0 0.0
    %1665 = vmatprep.subr.mxu0 0.0
    %1666 = vmatpush1.msra.mxu0 0.0
    %1667 = vmatprep.subr.mxu0 0.0
    %1668 = vmatpush1.msra.mxu0 0.0
    %1669 = vmatprep.subr.mxu0 0.0
    %1670 = vmatpush1.msra.mxu0 0.0
    %1671 = vmatprep.subr.mxu0 0.0
    %1672 = vmatpush1.msra.mxu0 0.0
    %1673 = vmatprep.subr.mxu0 0.0
    %1674 = vmatpush1.msra.mxu0 0.0
    %1675 = vmatprep.subr.mxu0 0.0
    %1676 = vmatpush1.msra.mxu0 0.0
    %1677 = vmatprep.subr.mxu0 0.0
    %1678 = vmatpush1.msra.mxu0 0.0
    %1679 = vmatprep.subr.mxu0 0.0
    %1680 = vmatpush1.msra.mxu0 0.0
    %1681 = vmatprep.subr.mxu0 0.0
    %1682 = vmatpush1.msra.mxu0 0.0
    %1683 = vmatprep.subr.mxu0 0.0
    %1684 = vmatpush1.msra.mxu0 0.0
    %1685 = vmatprep.subr.mxu0 0.0
    %1686 = vmatpush1.msra.mxu0 0.0
    %1687 = vmatprep.subr.mxu0 0.0
    %1688 = vmatpush1.msra.mxu0 0.0
    %1689 = vmatprep.mubr.f32.mxu0 0.0
    %1690 = vmatmul.mubr.f32.gmra.mrb[0].mxu0 %v1410
    %v1691 = vpop.f32.mrb[0].mxu0
    %v1692 = vadd.f32 %v330, %v1691
    %v1693 = vpop.f32.mrb[0].mxu0
    %1694 = vdwg.mxu0
    %v1695 = vadd.f32 %v1480, %v1621
    %v1696 = vxor.u32 %v1695, 2147483648
    %v1697 = vmul.f32 %v1696, 1.442695
    %v1698 = vpow.pop %v1697
    %v1699 = vadd.f32 %v1698, 1.0
    %v1700 = vrcp.pop %v1699
    %v1701 = vmul.f32 1.0, %v1700
    %v1702 = vadd.f32 %v1482, %v1623
    %v1703 = vxor.u32 %v1702, 2147483648
    %v1704 = vmul.f32 %v1703, 1.442695
    %v1705 = vpow.pop %v1704
    %v1706 = vadd.f32 %v1705, 1.0
    %v1707 = vrcp.pop %v1706
    %v1708 = vmul.f32 1.0, %v1707
    %v1709 = vmul.f32 %v1701, %v1692
    %v1710 = vadd.f32 %v1551, %v1709
    %v1711 = vtanh.pop %v1710
    %v1712 = vsub.f32 1.0, %v1708
    %v1713 = vmul.f32 %v1712, %v1711
    %v1714 = vmul.f32 %v1708, %v1410
    %v1715 = vadd.f32 %v1713, %v1714
    %s1716 = scalar_lea.vmem [#allocation2], 40
    %v1717 = vld [vmem:[%s1716] sm:$0xff]
    %1718 = vmatprep.subr.mxu0 %v66
    %1719 = vmatpush1.msra.mxu0 %v65
    %1720 = vmatprep.subr.mxu0 %v69
    %1721 = vmatpush1.msra.mxu0 %v68
    %1722 = vmatprep.subr.mxu0 %v72
    %1723 = vmatpush1.msra.mxu0 %v71
    %1724 = vmatprep.subr.mxu0 %v75
    %1725 = vmatpush1.msra.mxu0 %v74
    %1726 = vmatprep.subr.mxu0 %v78
    %1727 = vmatpush1.msra.mxu0 %v77
    %1728 = vmatprep.subr.mxu0 %v81
    %1729 = vmatpush1.msra.mxu0 %v80
    %1730 = vmatprep.subr.mxu0 %v84
    %1731 = vmatpush1.msra.mxu0 %v83
    %1732 = vmatprep.subr.mxu0 %v87
    %1733 = vmatpush1.msra.mxu0 %v86
    %1734 = vmatprep.subr.mxu0 %v90
    %1735 = vmatpush1.msra.mxu0 %v89
    %1736 = vmatprep.subr.mxu0 %v93
    %1737 = vmatpush1.msra.mxu0 %v92
    %1738 = vmatprep.subr.mxu0 %v96
    %1739 = vmatpush1.msra.mxu0 %v95
    %1740 = vmatprep.subr.mxu0 %v99
    %1741 = vmatpush1.msra.mxu0 %v98
    %1742 = vmatprep.subr.mxu0 %v102
    %1743 = vmatpush1.msra.mxu0 %v101
    %1744 = vmatprep.subr.mxu0 %v105
    %1745 = vmatpush1.msra.mxu0 %v104
    %1746 = vmatprep.subr.mxu0 %v108
    %1747 = vmatpush1.msra.mxu0 %v107
    %1748 = vmatprep.subr.mxu0 %v111
    %1749 = vmatpush1.msra.mxu0 %v110
    %1750 = vmatprep.subr.mxu0 0.0
    %1751 = vmatpush1.msra.mxu0 0.0
    %1752 = vmatprep.subr.mxu0 0.0
    %1753 = vmatpush1.msra.mxu0 0.0
    %1754 = vmatprep.subr.mxu0 0.0
    %1755 = vmatpush1.msra.mxu0 0.0
    %1756 = vmatprep.subr.mxu0 0.0
    %1757 = vmatpush1.msra.mxu0 0.0
    %1758 = vmatprep.subr.mxu0 0.0
    %1759 = vmatpush1.msra.mxu0 0.0
    %1760 = vmatprep.subr.mxu0 0.0
    %1761 = vmatpush1.msra.mxu0 0.0
    %1762 = vmatprep.subr.mxu0 0.0
    %1763 = vmatpush1.msra.mxu0 0.0
    %1764 = vmatprep.subr.mxu0 0.0
    %1765 = vmatpush1.msra.mxu0 0.0
    %1766 = vmatprep.subr.mxu0 0.0
    %1767 = vmatpush1.msra.mxu0 0.0
    %1768 = vmatprep.subr.mxu0 0.0
    %1769 = vmatpush1.msra.mxu0 0.0
    %1770 = vmatprep.subr.mxu0 0.0
    %1771 = vmatpush1.msra.mxu0 0.0
    %1772 = vmatprep.subr.mxu0 0.0
    %1773 = vmatpush1.msra.mxu0 0.0
    %1774 = vmatprep.subr.mxu0 0.0
    %1775 = vmatpush1.msra.mxu0 0.0
    %1776 = vmatprep.subr.mxu0 0.0
    %1777 = vmatpush1.msra.mxu0 0.0
    %1778 = vmatprep.subr.mxu0 0.0
    %1779 = vmatpush1.msra.mxu0 0.0
    %1780 = vmatprep.subr.mxu0 0.0
    %1781 = vmatpush1.msra.mxu0 0.0
    %1782 = vmatprep.mubr.f32.mxu0 0.0
    %1783 = vmatmul.mubr.f32.gmra.mrb[0].mxu0 %v1717
    %v1784 = vpop.f32.mrb[0].mxu0
    %v1785 = vadd.f32 %v117, %v1784
    %v1786 = vpop.f32.mrb[0].mxu0
    %v1787 = vadd.f32 %v121, %v1786
    %1788 = vdwg.mxu0
    %1789 = vmatprep.subr.mxu0 0.0
    %1790 = vmatpush1.msra.mxu0 %v67
    %1791 = vmatprep.subr.mxu0 0.0
    %1792 = vmatpush1.msra.mxu0 %v70
    %1793 = vmatprep.subr.mxu0 0.0
    %1794 = vmatpush1.msra.mxu0 %v73
    %1795 = vmatprep.subr.mxu0 0.0
    %1796 = vmatpush1.msra.mxu0 %v76
    %1797 = vmatprep.subr.mxu0 0.0
    %1798 = vmatpush1.msra.mxu0 %v79
    %1799 = vmatprep.subr.mxu0 0.0
    %1800 = vmatpush1.msra.mxu0 %v82
    %1801 = vmatprep.subr.mxu0 0.0
    %1802 = vmatpush1.msra.mxu0 %v85
    %1803 = vmatprep.subr.mxu0 0.0
    %1804 = vmatpush1.msra.mxu0 %v88
    %1805 = vmatprep.subr.mxu0 0.0
    %1806 = vmatpush1.msra.mxu0 %v91
    %1807 = vmatprep.subr.mxu0 0.0
    %1808 = vmatpush1.msra.mxu0 %v94
    %1809 = vmatprep.subr.mxu0 0.0
    %1810 = vmatpush1.msra.mxu0 %v97
    %1811 = vmatprep.subr.mxu0 0.0
    %1812 = vmatpush1.msra.mxu0 %v100
    %1813 = vmatprep.subr.mxu0 0.0
    %1814 = vmatpush1.msra.mxu0 %v103
    %1815 = vmatprep.subr.mxu0 0.0
    %1816 = vmatpush1.msra.mxu0 %v106
    %1817 = vmatprep.subr.mxu0 0.0
    %1818 = vmatpush1.msra.mxu0 %v109
    %1819 = vmatprep.subr.mxu0 0.0
    %1820 = vmatpush1.msra.mxu0 %v112
    %1821 = vmatprep.subr.mxu0 0.0
    %1822 = vmatpush1.msra.mxu0 0.0
    %1823 = vmatprep.subr.mxu0 0.0
    %1824 = vmatpush1.msra.mxu0 0.0
    %1825 = vmatprep.subr.mxu0 0.0
    %1826 = vmatpush1.msra.mxu0 0.0
    %1827 = vmatprep.subr.mxu0 0.0
    %1828 = vmatpush1.msra.mxu0 0.0
    %1829 = vmatprep.subr.mxu0 0.0
    %1830 = vmatpush1.msra.mxu0 0.0
    %1831 = vmatprep.subr.mxu0 0.0
    %1832 = vmatpush1.msra.mxu0 0.0
    %1833 = vmatprep.subr.mxu0 0.0
    %1834 = vmatpush1.msra.mxu0 0.0
    %1835 = vmatprep.subr.mxu0 0.0
    %1836 = vmatpush1.msra.mxu0 0.0
    %1837 = vmatprep.subr.mxu0 0.0
    %1838 = vmatpush1.msra.mxu0 0.0
    %1839 = vmatprep.subr.mxu0 0.0
    %1840 = vmatpush1.msra.mxu0 0.0
    %1841 = vmatprep.subr.mxu0 0.0
    %1842 = vmatpush1.msra.mxu0 0.0
    %1843 = vmatprep.subr.mxu0 0.0
    %1844 = vmatpush1.msra.mxu0 0.0
    %1845 = vmatprep.subr.mxu0 0.0
    %1846 = vmatpush1.msra.mxu0 0.0
    %1847 = vmatprep.subr.mxu0 0.0
    %1848 = vmatpush1.msra.mxu0 0.0
    %1849 = vmatprep.subr.mxu0 0.0
    %1850 = vmatpush1.msra.mxu0 0.0
    %1851 = vmatprep.subr.mxu0 0.0
    %1852 = vmatpush1.msra.mxu0 0.0
    %1853 = vmatprep.mubr.f32.mxu0 0.0
    %1854 = vmatmul.mubr.f32.gmra.mrb[0].mxu0 %v1717
    %v1855 = vpop.f32.mrb[0].mxu0
    %v1856 = vadd.f32 %v125, %v1855
    %v1857 = vpop.f32.mrb[0].mxu0
    %1858 = vdwg.mxu0
    %1859 = vmatprep.subr.mxu0 %v271
    %1860 = vmatpush1.msra.mxu0 %v270
    %1861 = vmatprep.subr.mxu0 %v274
    %1862 = vmatpush1.msra.mxu0 %v273
    %1863 = vmatprep.subr.mxu0 %v277
    %1864 = vmatpush1.msra.mxu0 %v276
    %1865 = vmatprep.subr.mxu0 %v280
    %1866 = vmatpush1.msra.mxu0 %v279
    %1867 = vmatprep.subr.mxu0 %v283
    %1868 = vmatpush1.msra.mxu0 %v282
    %1869 = vmatprep.subr.mxu0 %v286
    %1870 = vmatpush1.msra.mxu0 %v285
    %1871 = vmatprep.subr.mxu0 %v289
    %1872 = vmatpush1.msra.mxu0 %v288
    %1873 = vmatprep.subr.mxu0 %v292
    %1874 = vmatpush1.msra.mxu0 %v291
    %1875 = vmatprep.subr.mxu0 %v295
    %1876 = vmatpush1.msra.mxu0 %v294
    %1877 = vmatprep.subr.mxu0 %v298
    %1878 = vmatpush1.msra.mxu0 %v297
    %1879 = vmatprep.subr.mxu0 %v301
    %1880 = vmatpush1.msra.mxu0 %v300
    %1881 = vmatprep.subr.mxu0 %v304
    %1882 = vmatpush1.msra.mxu0 %v303
    %1883 = vmatprep.subr.mxu0 %v307
    %1884 = vmatpush1.msra.mxu0 %v306
    %1885 = vmatprep.subr.mxu0 %v310
    %1886 = vmatpush1.msra.mxu0 %v309
    %1887 = vmatprep.subr.mxu0 %v313
    %1888 = vmatpush1.msra.mxu0 %v312
    %1889 = vmatprep.subr.mxu0 %v316
    %1890 = vmatpush1.msra.mxu0 %v315
    %1891 = vmatprep.subr.mxu0 0.0
    %1892 = vmatpush1.msra.mxu0 0.0
    %1893 = vmatprep.subr.mxu0 0.0
    %1894 = vmatpush1.msra.mxu0 0.0
    %1895 = vmatprep.subr.mxu0 0.0
    %1896 = vmatpush1.msra.mxu0 0.0
    %1897 = vmatprep.subr.mxu0 0.0
    %1898 = vmatpush1.msra.mxu0 0.0
    %1899 = vmatprep.subr.mxu0 0.0
    %1900 = vmatpush1.msra.mxu0 0.0
    %1901 = vmatprep.subr.mxu0 0.0
    %1902 = vmatpush1.msra.mxu0 0.0
    %1903 = vmatprep.subr.mxu0 0.0
    %1904 = vmatpush1.msra.mxu0 0.0
    %1905 = vmatprep.subr.mxu0 0.0
    %1906 = vmatpush1.msra.mxu0 0.0
    %1907 = vmatprep.subr.mxu0 0.0
    %1908 = vmatpush1.msra.mxu0 0.0
    %1909 = vmatprep.subr.mxu0 0.0
    %1910 = vmatpush1.msra.mxu0 0.0
    %1911 = vmatprep.subr.mxu0 0.0
    %1912 = vmatpush1.msra.mxu0 0.0
    %1913 = vmatprep.subr.mxu0 0.0
    %1914 = vmatpush1.msra.mxu0 0.0
    %1915 = vmatprep.subr.mxu0 0.0
    %1916 = vmatpush1.msra.mxu0 0.0
    %1917 = vmatprep.subr.mxu0 0.0
    %1918 = vmatpush1.msra.mxu0 0.0
    %1919 = vmatprep.subr.mxu0 0.0
    %1920 = vmatpush1.msra.mxu0 0.0
    %1921 = vmatprep.subr.mxu0 0.0
    %1922 = vmatpush1.msra.mxu0 0.0
    %1923 = vmatprep.mubr.f32.mxu0 0.0
    %1924 = vmatmul.mubr.f32.gmra.mrb[0].mxu0 %v1715
    %v1925 = vpop.f32.mrb[0].mxu0
    %v1926 = vadd.f32 %v322, %v1925
    %v1927 = vpop.f32.mrb[0].mxu0
    %v1928 = vadd.f32 %v326, %v1927
    %1929 = vdwg.mxu0
    %1930 = vmatprep.subr.mxu0 0.0
    %1931 = vmatpush1.msra.mxu0 %v272
    %1932 = vmatprep.subr.mxu0 0.0
    %1933 = vmatpush1.msra.mxu0 %v275
    %1934 = vmatprep.subr.mxu0 0.0
    %1935 = vmatpush1.msra.mxu0 %v278
    %1936 = vmatprep.subr.mxu0 0.0
    %1937 = vmatpush1.msra.mxu0 %v281
    %1938 = vmatprep.subr.mxu0 0.0
    %1939 = vmatpush1.msra.mxu0 %v284
    %1940 = vmatprep.subr.mxu0 0.0
    %1941 = vmatpush1.msra.mxu0 %v287
    %1942 = vmatprep.subr.mxu0 0.0
    %1943 = vmatpush1.msra.mxu0 %v290
    %1944 = vmatprep.subr.mxu0 0.0
    %1945 = vmatpush1.msra.mxu0 %v293
    %1946 = vmatprep.subr.mxu0 0.0
    %1947 = vmatpush1.msra.mxu0 %v296
    %1948 = vmatprep.subr.mxu0 0.0
    %1949 = vmatpush1.msra.mxu0 %v299
    %1950 = vmatprep.subr.mxu0 0.0
    %1951 = vmatpush1.msra.mxu0 %v302
    %1952 = vmatprep.subr.mxu0 0.0
    %1953 = vmatpush1.msra.mxu0 %v305
    %1954 = vmatprep.subr.mxu0 0.0
    %1955 = vmatpush1.msra.mxu0 %v308
    %1956 = vmatprep.subr.mxu0 0.0
    %1957 = vmatpush1.msra.mxu0 %v311
    %1958 = vmatprep.subr.mxu0 0.0
    %1959 = vmatpush1.msra.mxu0 %v314
    %1960 = vmatprep.subr.mxu0 0.0
    %1961 = vmatpush1.msra.mxu0 %v317
    %1962 = vmatprep.subr.mxu0 0.0
    %1963 = vmatpush1.msra.mxu0 0.0
    %1964 = vmatprep.subr.mxu0 0.0
    %1965 = vmatpush1.msra.mxu0 0.0
    %1966 = vmatprep.subr.mxu0 0.0
    %1967 = vmatpush1.msra.mxu0 0.0
    %1968 = vmatprep.subr.mxu0 0.0
    %1969 = vmatpush1.msra.mxu0 0.0
    %1970 = vmatprep.subr.mxu0 0.0
    %1971 = vmatpush1.msra.mxu0 0.0
    %1972 = vmatprep.subr.mxu0 0.0
    %1973 = vmatpush1.msra.mxu0 0.0
    %1974 = vmatprep.subr.mxu0 0.0
    %1975 = vmatpush1.msra.mxu0 0.0
    %1976 = vmatprep.subr.mxu0 0.0
    %1977 = vmatpush1.msra.mxu0 0.0
    %1978 = vmatprep.subr.mxu0 0.0
    %1979 = vmatpush1.msra.mxu0 0.0
    %1980 = vmatprep.subr.mxu0 0.0
    %1981 = vmatpush1.msra.mxu0 0.0
    %1982 = vmatprep.subr.mxu0 0.0
    %1983 = vmatpush1.msra.mxu0 0.0
    %1984 = vmatprep.subr.mxu0 0.0
    %1985 = vmatpush1.msra.mxu0 0.0
    %1986 = vmatprep.subr.mxu0 0.0
    %1987 = vmatpush1.msra.mxu0 0.0
    %1988 = vmatprep.subr.mxu0 0.0
    %1989 = vmatpush1.msra.mxu0 0.0
    %1990 = vmatprep.subr.mxu0 0.0
    %1991 = vmatpush1.msra.mxu0 0.0
    %1992 = vmatprep.subr.mxu0 0.0
    %1993 = vmatpush1.msra.mxu0 0.0
    %1994 = vmatprep.mubr.f32.mxu0 0.0
    %1995 = vmatmul.mubr.f32.gmra.mrb[0].mxu0 %v1715
    %v1996 = vpop.f32.mrb[0].mxu0
    %v1997 = vadd.f32 %v330, %v1996
    %v1998 = vpop.f32.mrb[0].mxu0
    %1999 = vdwg.mxu0
    %v2000 = vadd.f32 %v1785, %v1926
    %v2001 = vxor.u32 %v2000, 2147483648
    %v2002 = vmul.f32 %v2001, 1.442695
    %v2003 = vpow.pop %v2002
    %v2004 = vadd.f32 %v2003, 1.0
    %v2005 = vrcp.pop %v2004
    %v2006 = vmul.f32 1.0, %v2005
    %v2007 = vadd.f32 %v1787, %v1928
    %v2008 = vxor.u32 %v2007, 2147483648
    %v2009 = vmul.f32 %v2008, 1.442695
    %v2010 = vpow.pop %v2009
    %v2011 = vadd.f32 %v2010, 1.0
    %v2012 = vrcp.pop %v2011
    %v2013 = vmul.f32 1.0, %v2012
    %v2014 = vmul.f32 %v2006, %v1997
    %v2015 = vadd.f32 %v1856, %v2014
    %v2016 = vtanh.pop %v2015
    %v2017 = vsub.f32 1.0, %v2013
    %v2018 = vmul.f32 %v2017, %v2016
    %v2019 = vmul.f32 %v2013, %v1715
    %v2020 = vadd.f32 %v2018, %v2019
    %s2021 = scalar_lea.vmem [#allocation2], 48
    %v2022 = vld [vmem:[%s2021] sm:$0xff]
    %2023 = vmatprep.subr.mxu0 %v66
    %2024 = vmatpush1.msra.mxu0 %v65
    %2025 = vmatprep.subr.mxu0 %v69
    %2026 = vmatpush1.msra.mxu0 %v68
    %2027 = vmatprep.subr.mxu0 %v72
    %2028 = vmatpush1.msra.mxu0 %v71
    %2029 = vmatprep.subr.mxu0 %v75
    %2030 = vmatpush1.msra.mxu0 %v74
    %2031 = vmatprep.subr.mxu0 %v78
    %2032 = vmatpush1.msra.mxu0 %v77
    %2033 = vmatprep.subr.mxu0 %v81
    %2034 = vmatpush1.msra.mxu0 %v80
    %2035 = vmatprep.subr.mxu0 %v84
    %2036 = vmatpush1.msra.mxu0 %v83
    %2037 = vmatprep.subr.mxu0 %v87
    %2038 = vmatpush1.msra.mxu0 %v86
    %2039 = vmatprep.subr.mxu0 %v90
    %2040 = vmatpush1.msra.mxu0 %v89
    %2041 = vmatprep.subr.mxu0 %v93
    %2042 = vmatpush1.msra.mxu0 %v92
    %2043 = vmatprep.subr.mxu0 %v96
    %2044 = vmatpush1.msra.mxu0 %v95
    %2045 = vmatprep.subr.mxu0 %v99
    %2046 = vmatpush1.msra.mxu0 %v98
    %2047 = vmatprep.subr.mxu0 %v102
    %2048 = vmatpush1.msra.mxu0 %v101
    %2049 = vmatprep.subr.mxu0 %v105
    %2050 = vmatpush1.msra.mxu0 %v104
    %2051 = vmatprep.subr.mxu0 %v108
    %2052 = vmatpush1.msra.mxu0 %v107
    %2053 = vmatprep.subr.mxu0 %v111
    %2054 = vmatpush1.msra.mxu0 %v110
    %2055 = vmatprep.subr.mxu0 0.0
    %2056 = vmatpush1.msra.mxu0 0.0
    %2057 = vmatprep.subr.mxu0 0.0
    %2058 = vmatpush1.msra.mxu0 0.0
    %2059 = vmatprep.subr.mxu0 0.0
    %2060 = vmatpush1.msra.mxu0 0.0
    %2061 = vmatprep.subr.mxu0 0.0
    %2062 = vmatpush1.msra.mxu0 0.0
    %2063 = vmatprep.subr.mxu0 0.0
    %2064 = vmatpush1.msra.mxu0 0.0
    %2065 = vmatprep.subr.mxu0 0.0
    %2066 = vmatpush1.msra.mxu0 0.0
    %2067 = vmatprep.subr.mxu0 0.0
    %2068 = vmatpush1.msra.mxu0 0.0
    %2069 = vmatprep.subr.mxu0 0.0
    %2070 = vmatpush1.msra.mxu0 0.0
    %2071 = vmatprep.subr.mxu0 0.0
    %2072 = vmatpush1.msra.mxu0 0.0
    %2073 = vmatprep.subr.mxu0 0.0
    %2074 = vmatpush1.msra.mxu0 0.0
    %2075 = vmatprep.subr.mxu0 0.0
    %2076 = vmatpush1.msra.mxu0 0.0
    %2077 = vmatprep.subr.mxu0 0.0
    %2078 = vmatpush1.msra.mxu0 0.0
    %2079 = vmatprep.subr.mxu0 0.0
    %2080 = vmatpush1.msra.mxu0 0.0
    %2081 = vmatprep.subr.mxu0 0.0
    %2082 = vmatpush1.msra.mxu0 0.0
    %2083 = vmatprep.subr.mxu0 0.0
    %2084 = vmatpush1.msra.mxu0 0.0
    %2085 = vmatprep.subr.mxu0 0.0
    %2086 = vmatpush1.msra.mxu0 0.0
    %2087 = vmatprep.mubr.f32.mxu0 0.0
    %2088 = vmatmul.mubr.f32.gmra.mrb[0].mxu0 %v2022
    %v2089 = vpop.f32.mrb[0].mxu0
    %v2090 = vadd.f32 %v117, %v2089
    %v2091 = vpop.f32.mrb[0].mxu0
    %v2092 = vadd.f32 %v121, %v2091
    %2093 = vdwg.mxu0
    %2094 = vmatprep.subr.mxu0 0.0
    %2095 = vmatpush1.msra.mxu0 %v67
    %2096 = vmatprep.subr.mxu0 0.0
    %2097 = vmatpush1.msra.mxu0 %v70
    %2098 = vmatprep.subr.mxu0 0.0
    %2099 = vmatpush1.msra.mxu0 %v73
    %2100 = vmatprep.subr.mxu0 0.0
    %2101 = vmatpush1.msra.mxu0 %v76
    %2102 = vmatprep.subr.mxu0 0.0
    %2103 = vmatpush1.msra.mxu0 %v79
    %2104 = vmatprep.subr.mxu0 0.0
    %2105 = vmatpush1.msra.mxu0 %v82
    %2106 = vmatprep.subr.mxu0 0.0
    %2107 = vmatpush1.msra.mxu0 %v85
    %2108 = vmatprep.subr.mxu0 0.0
    %2109 = vmatpush1.msra.mxu0 %v88
    %2110 = vmatprep.subr.mxu0 0.0
    %2111 = vmatpush1.msra.mxu0 %v91
    %2112 = vmatprep.subr.mxu0 0.0
    %2113 = vmatpush1.msra.mxu0 %v94
    %2114 = vmatprep.subr.mxu0 0.0
    %2115 = vmatpush1.msra.mxu0 %v97
    %2116 = vmatprep.subr.mxu0 0.0
    %2117 = vmatpush1.msra.mxu0 %v100
    %2118 = vmatprep.subr.mxu0 0.0
    %2119 = vmatpush1.msra.mxu0 %v103
    %2120 = vmatprep.subr.mxu0 0.0
    %2121 = vmatpush1.msra.mxu0 %v106
    %2122 = vmatprep.subr.mxu0 0.0
    %2123 = vmatpush1.msra.mxu0 %v109
    %2124 = vmatprep.subr.mxu0 0.0
    %2125 = vmatpush1.msra.mxu0 %v112
    %2126 = vmatprep.subr.mxu0 0.0
    %2127 = vmatpush1.msra.mxu0 0.0
    %2128 = vmatprep.subr.mxu0 0.0
    %2129 = vmatpush1.msra.mxu0 0.0
    %2130 = vmatprep.subr.mxu0 0.0
    %2131 = vmatpush1.msra.mxu0 0.0
    %2132 = vmatprep.subr.mxu0 0.0
    %2133 = vmatpush1.msra.mxu0 0.0
    %2134 = vmatprep.subr.mxu0 0.0
    %2135 = vmatpush1.msra.mxu0 0.0
    %2136 = vmatprep.subr.mxu0 0.0
    %2137 = vmatpush1.msra.mxu0 0.0
    %2138 = vmatprep.subr.mxu0 0.0
    %2139 = vmatpush1.msra.mxu0 0.0
    %2140 = vmatprep.subr.mxu0 0.0
    %2141 = vmatpush1.msra.mxu0 0.0
    %2142 = vmatprep.subr.mxu0 0.0
    %2143 = vmatpush1.msra.mxu0 0.0
    %2144 = vmatprep.subr.mxu0 0.0
    %2145 = vmatpush1.msra.mxu0 0.0
    %2146 = vmatprep.subr.mxu0 0.0
    %2147 = vmatpush1.msra.mxu0 0.0
    %2148 = vmatprep.subr.mxu0 0.0
    %2149 = vmatpush1.msra.mxu0 0.0
    %2150 = vmatprep.subr.mxu0 0.0
    %2151 = vmatpush1.msra.mxu0 0.0
    %2152 = vmatprep.subr.mxu0 0.0
    %2153 = vmatpush1.msra.mxu0 0.0
    %2154 = vmatprep.subr.mxu0 0.0
    %2155 = vmatpush1.msra.mxu0 0.0
    %2156 = vmatprep.subr.mxu0 0.0
    %2157 = vmatpush1.msra.mxu0 0.0
    %2158 = vmatprep.mubr.f32.mxu0 0.0
    %2159 = vmatmul.mubr.f32.gmra.mrb[0].mxu0 %v2022
    %v2160 = vpop.f32.mrb[0].mxu0
    %v2161 = vadd.f32 %v125, %v2160
    %v2162 = vpop.f32.mrb[0].mxu0
    %2163 = vdwg.mxu0
    %2164 = vmatprep.subr.mxu0 %v271
    %2165 = vmatpush1.msra.mxu0 %v270
    %2166 = vmatprep.subr.mxu0 %v274
    %2167 = vmatpush1.msra.mxu0 %v273
    %2168 = vmatprep.subr.mxu0 %v277
    %2169 = vmatpush1.msra.mxu0 %v276
    %2170 = vmatprep.subr.mxu0 %v280
    %2171 = vmatpush1.msra.mxu0 %v279
    %2172 = vmatprep.subr.mxu0 %v283
    %2173 = vmatpush1.msra.mxu0 %v282
    %2174 = vmatprep.subr.mxu0 %v286
    %2175 = vmatpush1.msra.mxu0 %v285
    %2176 = vmatprep.subr.mxu0 %v289
    %2177 = vmatpush1.msra.mxu0 %v288
    %2178 = vmatprep.subr.mxu0 %v292
    %2179 = vmatpush1.msra.mxu0 %v291
    %2180 = vmatprep.subr.mxu0 %v295
    %2181 = vmatpush1.msra.mxu0 %v294
    %2182 = vmatprep.subr.mxu0 %v298
    %2183 = vmatpush1.msra.mxu0 %v297
    %2184 = vmatprep.subr.mxu0 %v301
    %2185 = vmatpush1.msra.mxu0 %v300
    %2186 = vmatprep.subr.mxu0 %v304
    %2187 = vmatpush1.msra.mxu0 %v303
    %2188 = vmatprep.subr.mxu0 %v307
    %2189 = vmatpush1.msra.mxu0 %v306
    %2190 = vmatprep.subr.mxu0 %v310
    %2191 = vmatpush1.msra.mxu0 %v309
    %2192 = vmatprep.subr.mxu0 %v313
    %2193 = vmatpush1.msra.mxu0 %v312
    %2194 = vmatprep.subr.mxu0 %v316
    %2195 = vmatpush1.msra.mxu0 %v315
    %2196 = vmatprep.subr.mxu0 0.0
    %2197 = vmatpush1.msra.mxu0 0.0
    %2198 = vmatprep.subr.mxu0 0.0
    %2199 = vmatpush1.msra.mxu0 0.0
    %2200 = vmatprep.subr.mxu0 0.0
    %2201 = vmatpush1.msra.mxu0 0.0
    %2202 = vmatprep.subr.mxu0 0.0
    %2203 = vmatpush1.msra.mxu0 0.0
    %2204 = vmatprep.subr.mxu0 0.0
    %2205 = vmatpush1.msra.mxu0 0.0
    %2206 = vmatprep.subr.mxu0 0.0
    %2207 = vmatpush1.msra.mxu0 0.0
    %2208 = vmatprep.subr.mxu0 0.0
    %2209 = vmatpush1.msra.mxu0 0.0
    %2210 = vmatprep.subr.mxu0 0.0
    %2211 = vmatpush1.msra.mxu0 0.0
    %2212 = vmatprep.subr.mxu0 0.0
    %2213 = vmatpush1.msra.mxu0 0.0
    %2214 = vmatprep.subr.mxu0 0.0
    %2215 = vmatpush1.msra.mxu0 0.0
    %2216 = vmatprep.subr.mxu0 0.0
    %2217 = vmatpush1.msra.mxu0 0.0
    %2218 = vmatprep.subr.mxu0 0.0
    %2219 = vmatpush1.msra.mxu0 0.0
    %2220 = vmatprep.subr.mxu0 0.0
    %2221 = vmatpush1.msra.mxu0 0.0
    %2222 = vmatprep.subr.mxu0 0.0
    %2223 = vmatpush1.msra.mxu0 0.0
    %2224 = vmatprep.subr.mxu0 0.0
    %2225 = vmatpush1.msra.mxu0 0.0
    %2226 = vmatprep.subr.mxu0 0.0
    %2227 = vmatpush1.msra.mxu0 0.0
    %2228 = vmatprep.mubr.f32.mxu0 0.0
    %2229 = vmatmul.mubr.f32.gmra.mrb[0].mxu0 %v2020
    %v2230 = vpop.f32.mrb[0].mxu0
    %v2231 = vadd.f32 %v322, %v2230
    %v2232 = vpop.f32.mrb[0].mxu0
    %v2233 = vadd.f32 %v326, %v2232
    %2234 = vdwg.mxu0
    %2235 = vmatprep.subr.mxu0 0.0
    %2236 = vmatpush1.msra.mxu0 %v272
    %2237 = vmatprep.subr.mxu0 0.0
    %2238 = vmatpush1.msra.mxu0 %v275
    %2239 = vmatprep.subr.mxu0 0.0
    %2240 = vmatpush1.msra.mxu0 %v278
    %2241 = vmatprep.subr.mxu0 0.0
    %2242 = vmatpush1.msra.mxu0 %v281
    %2243 = vmatprep.subr.mxu0 0.0
    %2244 = vmatpush1.msra.mxu0 %v284
    %2245 = vmatprep.subr.mxu0 0.0
    %2246 = vmatpush1.msra.mxu0 %v287
    %2247 = vmatprep.subr.mxu0 0.0
    %2248 = vmatpush1.msra.mxu0 %v290
    %2249 = vmatprep.subr.mxu0 0.0
    %2250 = vmatpush1.msra.mxu0 %v293
    %2251 = vmatprep.subr.mxu0 0.0
    %2252 = vmatpush1.msra.mxu0 %v296
    %2253 = vmatprep.subr.mxu0 0.0
    %2254 = vmatpush1.msra.mxu0 %v299
    %2255 = vmatprep.subr.mxu0 0.0
    %2256 = vmatpush1.msra.mxu0 %v302
    %2257 = vmatprep.subr.mxu0 0.0
    %2258 = vmatpush1.msra.mxu0 %v305
    %2259 = vmatprep.subr.mxu0 0.0
    %2260 = vmatpush1.msra.mxu0 %v308
    %2261 = vmatprep.subr.mxu0 0.0
    %2262 = vmatpush1.msra.mxu0 %v311
    %2263 = vmatprep.subr.mxu0 0.0
    %2264 = vmatpush1.msra.mxu0 %v314
    %2265 = vmatprep.subr.mxu0 0.0
    %2266 = vmatpush1.msra.mxu0 %v317
    %2267 = vmatprep.subr.mxu0 0.0
    %2268 = vmatpush1.msra.mxu0 0.0
    %2269 = vmatprep.subr.mxu0 0.0
    %2270 = vmatpush1.msra.mxu0 0.0
    %2271 = vmatprep.subr.mxu0 0.0
    %2272 = vmatpush1.msra.mxu0 0.0
    %2273 = vmatprep.subr.mxu0 0.0
    %2274 = vmatpush1.msra.mxu0 0.0
    %2275 = vmatprep.subr.mxu0 0.0
    %2276 = vmatpush1.msra.mxu0 0.0
    %2277 = vmatprep.subr.mxu0 0.0
    %2278 = vmatpush1.msra.mxu0 0.0
    %2279 = vmatprep.subr.mxu0 0.0
    %2280 = vmatpush1.msra.mxu0 0.0
    %2281 = vmatprep.subr.mxu0 0.0
    %2282 = vmatpush1.msra.mxu0 0.0
    %2283 = vmatprep.subr.mxu0 0.0
    %2284 = vmatpush1.msra.mxu0 0.0
    %2285 = vmatprep.subr.mxu0 0.0
    %2286 = vmatpush1.msra.mxu0 0.0
    %2287 = vmatprep.subr.mxu0 0.0
    %2288 = vmatpush1.msra.mxu0 0.0
    %2289 = vmatprep.subr.mxu0 0.0
    %2290 = vmatpush1.msra.mxu0 0.0
    %2291 = vmatprep.subr.mxu0 0.0
    %2292 = vmatpush1.msra.mxu0 0.0
    %2293 = vmatprep.subr.mxu0 0.0
    %2294 = vmatpush1.msra.mxu0 0.0
    %2295 = vmatprep.subr.mxu0 0.0
    %2296 = vmatpush1.msra.mxu0 0.0
    %2297 = vmatprep.subr.mxu0 0.0
    %2298 = vmatpush1.msra.mxu0 0.0
    %2299 = vmatprep.mubr.f32.mxu0 0.0
    %2300 = vmatmul.mubr.f32.gmra.mrb[0].mxu0 %v2020
    %v2301 = vpop.f32.mrb[0].mxu0
    %v2302 = vadd.f32 %v330, %v2301
    %v2303 = vpop.f32.mrb[0].mxu0
    %2304 = vdwg.mxu0
    %v2305 = vadd.f32 %v2090, %v2231
    %v2306 = vxor.u32 %v2305, 2147483648
    %v2307 = vmul.f32 %v2306, 1.442695
    %v2308 = vpow.pop %v2307
    %v2309 = vadd.f32 %v2308, 1.0
    %v2310 = vrcp.pop %v2309
    %v2311 = vmul.f32 1.0, %v2310
    %v2312 = vadd.f32 %v2092, %v2233
    %v2313 = vxor.u32 %v2312, 2147483648
    %v2314 = vmul.f32 %v2313, 1.442695
    %v2315 = vpow.pop %v2314
    %v2316 = vadd.f32 %v2315, 1.0
    %v2317 = vrcp.pop %v2316
    %v2318 = vmul.f32 1.0, %v2317
    %v2319 = vmul.f32 %v2311, %v2302
    %v2320 = vadd.f32 %v2161, %v2319
    %v2321 = vtanh.pop %v2320
    %v2322 = vsub.f32 1.0, %v2318
    %v2323 = vmul.f32 %v2322, %v2321
    %v2324 = vmul.f32 %v2318, %v2020
    %v2325 = vadd.f32 %v2323, %v2324
    %s2326 = scalar_lea.vmem [#allocation2], 56
    %v2327 = vld [vmem:[%s2326] sm:$0xff]
    %2328 = vmatprep.subr.mxu0 %v66
    %2329 = vmatpush1.msra.mxu0 %v65
    %2330 = vmatprep.subr.mxu0 %v69
    %2331 = vmatpush1.msra.mxu0 %v68
    %2332 = vmatprep.subr.mxu0 %v72
    %2333 = vmatpush1.msra.mxu0 %v71
    %2334 = vmatprep.subr.mxu0 %v75
    %2335 = vmatpush1.msra.mxu0 %v74
    %2336 = vmatprep.subr.mxu0 %v78
    %2337 = vmatpush1.msra.mxu0 %v77
    %2338 = vmatprep.subr.mxu0 %v81
    %2339 = vmatpush1.msra.mxu0 %v80
    %2340 = vmatprep.subr.mxu0 %v84
    %2341 = vmatpush1.msra.mxu0 %v83
    %2342 = vmatprep.subr.mxu0 %v87
    %2343 = vmatpush1.msra.mxu0 %v86
    %2344 = vmatprep.subr.mxu0 %v90
    %2345 = vmatpush1.msra.mxu0 %v89
    %2346 = vmatprep.subr.mxu0 %v93
    %2347 = vmatpush1.msra.mxu0 %v92
    %2348 = vmatprep.subr.mxu0 %v96
    %2349 = vmatpush1.msra.mxu0 %v95
    %2350 = vmatprep.subr.mxu0 %v99
    %2351 = vmatpush1.msra.mxu0 %v98
    %2352 = vmatprep.subr.mxu0 %v102
    %2353 = vmatpush1.msra.mxu0 %v101
    %2354 = vmatprep.subr.mxu0 %v105
    %2355 = vmatpush1.msra.mxu0 %v104
    %2356 = vmatprep.subr.mxu0 %v108
    %2357 = vmatpush1.msra.mxu0 %v107
    %2358 = vmatprep.subr.mxu0 %v111
    %2359 = vmatpush1.msra.mxu0 %v110
    %2360 = vmatprep.subr.mxu0 0.0
    %2361 = vmatpush1.msra.mxu0 0.0
    %2362 = vmatprep.subr.mxu0 0.0
    %2363 = vmatpush1.msra.mxu0 0.0
    %2364 = vmatprep.subr.mxu0 0.0
    %2365 = vmatpush1.msra.mxu0 0.0
    %2366 = vmatprep.subr.mxu0 0.0
    %2367 = vmatpush1.msra.mxu0 0.0
    %2368 = vmatprep.subr.mxu0 0.0
    %2369 = vmatpush1.msra.mxu0 0.0
    %2370 = vmatprep.subr.mxu0 0.0
    %2371 = vmatpush1.msra.mxu0 0.0
    %2372 = vmatprep.subr.mxu0 0.0
    %2373 = vmatpush1.msra.mxu0 0.0
    %2374 = vmatprep.subr.mxu0 0.0
    %2375 = vmatpush1.msra.mxu0 0.0
    %2376 = vmatprep.subr.mxu0 0.0
    %2377 = vmatpush1.msra.mxu0 0.0
    %2378 = vmatprep.subr.mxu0 0.0
    %2379 = vmatpush1.msra.mxu0 0.0
    %2380 = vmatprep.subr.mxu0 0.0
    %2381 = vmatpush1.msra.mxu0 0.0
    %2382 = vmatprep.subr.mxu0 0.0
    %2383 = vmatpush1.msra.mxu0 0.0
    %2384 = vmatprep.subr.mxu0 0.0
    %2385 = vmatpush1.msra.mxu0 0.0
    %2386 = vmatprep.subr.mxu0 0.0
    %2387 = vmatpush1.msra.mxu0 0.0
    %2388 = vmatprep.subr.mxu0 0.0
    %2389 = vmatpush1.msra.mxu0 0.0
    %2390 = vmatprep.subr.mxu0 0.0
    %2391 = vmatpush1.msra.mxu0 0.0
    %2392 = vmatprep.mubr.f32.mxu0 0.0
    %2393 = vmatmul.mubr.f32.gmra.mrb[0].mxu0 %v2327
    %v2394 = vpop.f32.mrb[0].mxu0
    %v2395 = vadd.f32 %v117, %v2394
    %v2396 = vpop.f32.mrb[0].mxu0
    %v2397 = vadd.f32 %v121, %v2396
    %2398 = vdwg.mxu0
    %2399 = vmatprep.subr.mxu0 0.0
    %2400 = vmatpush1.msra.mxu0 %v67
    %2401 = vmatprep.subr.mxu0 0.0
    %2402 = vmatpush1.msra.mxu0 %v70
    %2403 = vmatprep.subr.mxu0 0.0
    %2404 = vmatpush1.msra.mxu0 %v73
    %2405 = vmatprep.subr.mxu0 0.0
    %2406 = vmatpush1.msra.mxu0 %v76
    %2407 = vmatprep.subr.mxu0 0.0
    %2408 = vmatpush1.msra.mxu0 %v79
    %2409 = vmatprep.subr.mxu0 0.0
    %2410 = vmatpush1.msra.mxu0 %v82
    %2411 = vmatprep.subr.mxu0 0.0
    %2412 = vmatpush1.msra.mxu0 %v85
    %2413 = vmatprep.subr.mxu0 0.0
    %2414 = vmatpush1.msra.mxu0 %v88
    %2415 = vmatprep.subr.mxu0 0.0
    %2416 = vmatpush1.msra.mxu0 %v91
    %2417 = vmatprep.subr.mxu0 0.0
    %2418 = vmatpush1.msra.mxu0 %v94
    %2419 = vmatprep.subr.mxu0 0.0
    %2420 = vmatpush1.msra.mxu0 %v97
    %2421 = vmatprep.subr.mxu0 0.0
    %2422 = vmatpush1.msra.mxu0 %v100
    %2423 = vmatprep.subr.mxu0 0.0
    %2424 = vmatpush1.msra.mxu0 %v103
    %2425 = vmatprep.subr.mxu0 0.0
    %2426 = vmatpush1.msra.mxu0 %v106
    %2427 = vmatprep.subr.mxu0 0.0
    %2428 = vmatpush1.msra.mxu0 %v109
    %2429 = vmatprep.subr.mxu0 0.0
    %2430 = vmatpush1.msra.mxu0 %v112
    %2431 = vmatprep.subr.mxu0 0.0
    %2432 = vmatpush1.msra.mxu0 0.0
    %2433 = vmatprep.subr.mxu0 0.0
    %2434 = vmatpush1.msra.mxu0 0.0
    %2435 = vmatprep.subr.mxu0 0.0
    %2436 = vmatpush1.msra.mxu0 0.0
    %2437 = vmatprep.subr.mxu0 0.0
    %2438 = vmatpush1.msra.mxu0 0.0
    %2439 = vmatprep.subr.mxu0 0.0
    %2440 = vmatpush1.msra.mxu0 0.0
    %2441 = vmatprep.subr.mxu0 0.0
    %2442 = vmatpush1.msra.mxu0 0.0
    %2443 = vmatprep.subr.mxu0 0.0
    %2444 = vmatpush1.msra.mxu0 0.0
    %2445 = vmatprep.subr.mxu0 0.0
    %2446 = vmatpush1.msra.mxu0 0.0
    %2447 = vmatprep.subr.mxu0 0.0
    %2448 = vmatpush1.msra.mxu0 0.0
    %2449 = vmatprep.subr.mxu0 0.0
    %2450 = vmatpush1.msra.mxu0 0.0
    %2451 = vmatprep.subr.mxu0 0.0
    %2452 = vmatpush1.msra.mxu0 0.0
    %2453 = vmatprep.subr.mxu0 0.0
    %2454 = vmatpush1.msra.mxu0 0.0
    %2455 = vmatprep.subr.mxu0 0.0
    %2456 = vmatpush1.msra.mxu0 0.0
    %2457 = vmatprep.subr.mxu0 0.0
    %2458 = vmatpush1.msra.mxu0 0.0
    %2459 = vmatprep.subr.mxu0 0.0
    %2460 = vmatpush1.msra.mxu0 0.0
    %2461 = vmatprep.subr.mxu0 0.0
    %2462 = vmatpush1.msra.mxu0 0.0
    %2463 = vmatprep.mubr.f32.mxu0 0.0
    %2464 = vmatmul.mubr.f32.gmra.mrb[0].mxu0 %v2327
    %v2465 = vpop.f32.mrb[0].mxu0
    %v2466 = vadd.f32 %v125, %v2465
    %v2467 = vpop.f32.mrb[0].mxu0
    %2468 = vdwg.mxu0
    %2469 = vmatprep.subr.mxu0 %v271
    %2470 = vmatpush1.msra.mxu0 %v270
    %2471 = vmatprep.subr.mxu0 %v274
    %2472 = vmatpush1.msra.mxu0 %v273
    %2473 = vmatprep.subr.mxu0 %v277
    %2474 = vmatpush1.msra.mxu0 %v276
    %2475 = vmatprep.subr.mxu0 %v280
    %2476 = vmatpush1.msra.mxu0 %v279
    %2477 = vmatprep.subr.mxu0 %v283
    %2478 = vmatpush1.msra.mxu0 %v282
    %2479 = vmatprep.subr.mxu0 %v286
    %2480 = vmatpush1.msra.mxu0 %v285
    %2481 = vmatprep.subr.mxu0 %v289
    %2482 = vmatpush1.msra.mxu0 %v288
    %2483 = vmatprep.subr.mxu0 %v292
    %2484 = vmatpush1.msra.mxu0 %v291
    %2485 = vmatprep.subr.mxu0 %v295
    %2486 = vmatpush1.msra.mxu0 %v294
    %2487 = vmatprep.subr.mxu0 %v298
    %2488 = vmatpush1.msra.mxu0 %v297
    %2489 = vmatprep.subr.mxu0 %v301
    %2490 = vmatpush1.msra.mxu0 %v300
    %2491 = vmatprep.subr.mxu0 %v304
    %2492 = vmatpush1.msra.mxu0 %v303
    %2493 = vmatprep.subr.mxu0 %v307
    %2494 = vmatpush1.msra.mxu0 %v306
    %2495 = vmatprep.subr.mxu0 %v310
    %2496 = vmatpush1.msra.mxu0 %v309
    %2497 = vmatprep.subr.mxu0 %v313
    %2498 = vmatpush1.msra.mxu0 %v312
    %2499 = vmatprep.subr.mxu0 %v316
    %2500 = vmatpush1.msra.mxu0 %v315
    %2501 = vmatprep.subr.mxu0 0.0
    %2502 = vmatpush1.msra.mxu0 0.0
    %2503 = vmatprep.subr.mxu0 0.0
    %2504 = vmatpush1.msra.mxu0 0.0
    %2505 = vmatprep.subr.mxu0 0.0
    %2506 = vmatpush1.msra.mxu0 0.0
    %2507 = vmatprep.subr.mxu0 0.0
    %2508 = vmatpush1.msra.mxu0 0.0
    %2509 = vmatprep.subr.mxu0 0.0
    %2510 = vmatpush1.msra.mxu0 0.0
    %2511 = vmatprep.subr.mxu0 0.0
    %2512 = vmatpush1.msra.mxu0 0.0
    %2513 = vmatprep.subr.mxu0 0.0
    %2514 = vmatpush1.msra.mxu0 0.0
    %2515 = vmatprep.subr.mxu0 0.0
    %2516 = vmatpush1.msra.mxu0 0.0
    %2517 = vmatprep.subr.mxu0 0.0
    %2518 = vmatpush1.msra.mxu0 0.0
    %2519 = vmatprep.subr.mxu0 0.0
    %2520 = vmatpush1.msra.mxu0 0.0
    %2521 = vmatprep.subr.mxu0 0.0
    %2522 = vmatpush1.msra.mxu0 0.0
    %2523 = vmatprep.subr.mxu0 0.0
    %2524 = vmatpush1.msra.mxu0 0.0
    %2525 = vmatprep.subr.mxu0 0.0
    %2526 = vmatpush1.msra.mxu0 0.0
    %2527 = vmatprep.subr.mxu0 0.0
    %2528 = vmatpush1.msra.mxu0 0.0
    %2529 = vmatprep.subr.mxu0 0.0
    %2530 = vmatpush1.msra.mxu0 0.0
    %2531 = vmatprep.subr.mxu0 0.0
    %2532 = vmatpush1.msra.mxu0 0.0
    %2533 = vmatprep.mubr.f32.mxu0 0.0
    %2534 = vmatmul.mubr.f32.gmra.mrb[0].mxu0 %v2325
    %v2535 = vpop.f32.mrb[0].mxu0
    %v2536 = vadd.f32 %v322, %v2535
    %v2537 = vpop.f32.mrb[0].mxu0
    %v2538 = vadd.f32 %v326, %v2537
    %2539 = vdwg.mxu0
    %2540 = vmatprep.subr.mxu0 0.0
    %2541 = vmatpush1.msra.mxu0 %v272
    %2542 = vmatprep.subr.mxu0 0.0
    %2543 = vmatpush1.msra.mxu0 %v275
    %2544 = vmatprep.subr.mxu0 0.0
    %2545 = vmatpush1.msra.mxu0 %v278
    %2546 = vmatprep.subr.mxu0 0.0
    %2547 = vmatpush1.msra.mxu0 %v281
    %2548 = vmatprep.subr.mxu0 0.0
    %2549 = vmatpush1.msra.mxu0 %v284
    %2550 = vmatprep.subr.mxu0 0.0
    %2551 = vmatpush1.msra.mxu0 %v287
    %2552 = vmatprep.subr.mxu0 0.0
    %2553 = vmatpush1.msra.mxu0 %v290
    %2554 = vmatprep.subr.mxu0 0.0
    %2555 = vmatpush1.msra.mxu0 %v293
    %2556 = vmatprep.subr.mxu0 0.0
    %2557 = vmatpush1.msra.mxu0 %v296
    %2558 = vmatprep.subr.mxu0 0.0
    %2559 = vmatpush1.msra.mxu0 %v299
    %2560 = vmatprep.subr.mxu0 0.0
    %2561 = vmatpush1.msra.mxu0 %v302
    %2562 = vmatprep.subr.mxu0 0.0
    %2563 = vmatpush1.msra.mxu0 %v305
    %2564 = vmatprep.subr.mxu0 0.0
    %2565 = vmatpush1.msra.mxu0 %v308
    %2566 = vmatprep.subr.mxu0 0.0
    %2567 = vmatpush1.msra.mxu0 %v311
    %2568 = vmatprep.subr.mxu0 0.0
    %2569 = vmatpush1.msra.mxu0 %v314
    %2570 = vmatprep.subr.mxu0 0.0
    %2571 = vmatpush1.msra.mxu0 %v317
    %2572 = vmatprep.subr.mxu0 0.0
    %2573 = vmatpush1.msra.mxu0 0.0
    %2574 = vmatprep.subr.mxu0 0.0
    %2575 = vmatpush1.msra.mxu0 0.0
    %2576 = vmatprep.subr.mxu0 0.0
    %2577 = vmatpush1.msra.mxu0 0.0
    %2578 = vmatprep.subr.mxu0 0.0
    %2579 = vmatpush1.msra.mxu0 0.0
    %2580 = vmatprep.subr.mxu0 0.0
    %2581 = vmatpush1.msra.mxu0 0.0
    %2582 = vmatprep.subr.mxu0 0.0
    %2583 = vmatpush1.msra.mxu0 0.0
    %2584 = vmatprep.subr.mxu0 0.0
    %2585 = vmatpush1.msra.mxu0 0.0
    %2586 = vmatprep.subr.mxu0 0.0
    %2587 = vmatpush1.msra.mxu0 0.0
    %2588 = vmatprep.subr.mxu0 0.0
    %2589 = vmatpush1.msra.mxu0 0.0
    %2590 = vmatprep.subr.mxu0 0.0
    %2591 = vmatpush1.msra.mxu0 0.0
    %2592 = vmatprep.subr.mxu0 0.0
    %2593 = vmatpush1.msra.mxu0 0.0
    %2594 = vmatprep.subr.mxu0 0.0
    %2595 = vmatpush1.msra.mxu0 0.0
    %2596 = vmatprep.subr.mxu0 0.0
    %2597 = vmatpush1.msra.mxu0 0.0
    %2598 = vmatprep.subr.mxu0 0.0
    %2599 = vmatpush1.msra.mxu0 0.0
    %2600 = vmatprep.subr.mxu0 0.0
    %2601 = vmatpush1.msra.mxu0 0.0
    %2602 = vmatprep.subr.mxu0 0.0
    %2603 = vmatpush1.msra.mxu0 0.0
    %2604 = vmatprep.mubr.f32.mxu0 0.0
    %2605 = vmatmul.mubr.f32.gmra.mrb[0].mxu0 %v2325
    %v2606 = vpop.f32.mrb[0].mxu0
    %v2607 = vadd.f32 %v330, %v2606
    %v2608 = vpop.f32.mrb[0].mxu0
    %2609 = vdwg.mxu0
    %v2610 = vadd.f32 %v2395, %v2536
    %v2611 = vxor.u32 %v2610, 2147483648
    %v2612 = vmul.f32 %v2611, 1.442695
    %v2613 = vpow.pop %v2612
    %v2614 = vadd.f32 %v2613, 1.0
    %v2615 = vrcp.pop %v2614
    %v2616 = vmul.f32 1.0, %v2615
    %v2617 = vadd.f32 %v2397, %v2538
    %v2618 = vxor.u32 %v2617, 2147483648
    %v2619 = vmul.f32 %v2618, 1.442695
    %v2620 = vpow.pop %v2619
    %v2621 = vadd.f32 %v2620, 1.0
    %v2622 = vrcp.pop %v2621
    %v2623 = vmul.f32 1.0, %v2622
    %v2624 = vmul.f32 %v2616, %v2607
    %v2625 = vadd.f32 %v2466, %v2624
    %v2626 = vtanh.pop %v2625
    %v2627 = vsub.f32 1.0, %v2623
    %v2628 = vmul.f32 %v2627, %v2626
    %v2629 = vmul.f32 %v2623, %v2325
    %v2630 = vadd.f32 %v2628, %v2629
    %2631 = vst [vmem:[#allocation8] sm:$0xff] %v2630
    // Predicated region
    $region34: #{tpu_custom_call.1} parent=1 // pred_check
      _
    $region35: #{tpu_custom_call.1} parent=1 // pred_check_branch
      %2633 = sbr.rel (0) target = $region37
    $region36: #{tpu_custom_call.1} parent=1 // pred_region
      %s2635 = ssub.s32 128, 128
      %2636 = vsyncadd [#allocation4], %s2635
      %s2638 = sshll.u32 [#allocation8], 4
      %s2639 = int_to_ptr.vmem [resolvable:$true] %s2638
      %2641 = dma.vmem_to_hbm [thread:$0]  %s2639, 128, %s5, [#allocation4]
    $region37: #{tpu_custom_call.1} parent=1 // pred_fallthru
      _
    // Predicated region
    $region38: #{tpu_custom_call.1} parent=1 // pred_check
      _
    $region39: #{tpu_custom_call.1} parent=1 // pred_check_branch
      %2643 = sbr.rel (0) target = $region41
    $region40: #{tpu_custom_call.1} parent=1 // pred_region
      %2644 = dma.done [#allocation4], 128
    $region41: #{tpu_custom_call.1} parent=1 // pred_fallthru
      _
    %2645 = vsyncpa [#allocation3], 1
    %2646 = vsyncpa [#allocation6], 1
    %2647 = vsyncpa [#allocation4], 1

</llo_original>
